<compile_context>
chip_gen: v7x
topology: tpu7x:2x2x1
jax: 0.10.0
libtpu: 0.0.40
codegen_flags: <defaults>
</compile_context>

<pallas_src>
import functools
import math

import jax
import jax.numpy as jnp
from jax.experimental import pallas as pl
from jax.experimental.pallas import tpu as pltpu


# ----------------------------- in-kernel helpers ---------------------------

def _mm(a, b, dot_dtype):
    """Matmul with operands cast to dot_dtype (bf16 fast path) and f32 accumulation."""
    return jnp.dot(a.astype(dot_dtype), b.astype(dot_dtype),
                   preferred_element_type=jnp.float32)


def _layernorm(y, gamma, beta, eps=1e-5):
    mean = jnp.mean(y, axis=-1, keepdims=True)
    var = jnp.mean((y - mean) ** 2, axis=-1, keepdims=True)
    return (y - mean) * jax.lax.rsqrt(var + eps) * gamma + beta


def _attn_addnorm(xq, xkv, keep, wqkv, wo, gamma, beta, num_heads, fused_qkv,
                  dot_dtype, approx_recip):
    """LayerNorm(MultiHeadAttention(xq, xkv, xkv, keep) + xq); operands in VMEM."""
    sq, d = xq.shape
    dh = d // num_heads
    scale = 1.0 / math.sqrt(dh)

    if fused_qkv:  # self-attention: one lane-dense (Sq, 3D) projection
        qkv = _mm(xq, wqkv, dot_dtype)
        q, k, v = qkv[:, :d], qkv[:, d:2 * d], qkv[:, 2 * d:]
    else:          # cross-attention: q from xq, fused [K|V] from xkv
        q = _mm(xq, wqkv[:, :d], dot_dtype)
        kv = _mm(xkv, wqkv[:, d:], dot_dtype)
        k, v = kv[:, :d], kv[:, d:]

    # Per-head attention with Wo folded into the head loop as an accumulated sum:
    # no jnp.concatenate (XLU relayout) and only one (Sq, D) live accumulator.
    attn = jnp.zeros((sq, d), jnp.float32)
    for h in range(num_heads):  # static unroll
        lo = h * dh
        qh, kh, vh = q[:, lo:lo + dh], k[:, lo:lo + dh], v[:, lo:lo + dh]
        scores = jax.lax.dot_general(
            qh.astype(dot_dtype), kh.astype(dot_dtype),
            (((1,), (1,)), ((), ())),
            preferred_element_type=jnp.float32) * scale
        scores = jnp.where(keep, scores, jnp.float32(-1e6))   # d2l masked_softmax
        m = jnp.max(scores, axis=-1, keepdims=True)
        p = jnp.exp(scores - m)
        denom = jnp.sum(p, axis=-1, keepdims=True)
        if approx_recip:
            p = p * pl.reciprocal(denom, approx=True)          # EUP slot (nearly free)
        else:
            p = p / denom                                      # exact path
        oh = _mm(p, vh, dot_dtype)                             # (Sq, dh)
        attn = attn + _mm(oh, wo[lo:lo + dh, :], dot_dtype)    # fold Wo per head

    return _layernorm(attn + xq, gamma, beta)


# ----------------------------- Pallas kernels ------------------------------

def decoder_stack_kernel(vlens_ref,                    # SMEM (B,) int32 (scalar prefetch)
                         x_ref, enc_ref,
                         wqkv1_ref, wo1_ref, g1_ref, bt1_ref,
                         wqkv2_ref, wo2_ref, g2_ref, bt2_ref,
                         w1_ref, b1_ref, w2_ref, b2_ref, g3_ref, bt3_ref,
                         out_ref, *, num_heads, dot_dtype, approx_recip):
    """Whole decoder stack: grid=(B, L); the (S, D) activation is carried in the
    VMEM-resident output block across the L ("arbitrary") axis."""
    b = pl.program_id(0)
    l = pl.program_id(1)

    @pl.when(l == 0)
    def _():                      # seed the carried activation with the embedded input
        out_ref[0] = x_ref[0]

    x = out_ref[0]                # (S, D) running activation (VMEM resident across l)
    enc = enc_ref[0]              # (Se, D)
    s = x.shape[0]
    se = enc.shape[0]

    # training-mode dec_valid_lens = arange(1, S+1)  ->  causal mask, built in-register
    qi = jax.lax.broadcasted_iota(jnp.int32, (s, s), 0)
    ki = jax.lax.broadcasted_iota(jnp.int32, (s, s), 1)
    causal_keep = ki <= qi

    # encoder valid-length mask from the scalar-prefetched lengths
    eki = jax.lax.broadcasted_iota(jnp.int32, (s, se), 1)
    enc_keep = eki < vlens_ref[b]

    y = _attn_addnorm(x, x, causal_keep, wqkv1_ref[0], wo1_ref[0],
                      g1_ref[0], bt1_ref[0], num_heads, True, dot_dtype, approx_recip)
    z = _attn_addnorm(y, enc, enc_keep, wqkv2_ref[0], wo2_ref[0],
                      g2_ref[0], bt2_ref[0], num_heads, False, dot_dtype, approx_recip)

    h = jnp.maximum(_mm(z, w1_ref[0], dot_dtype) + b1_ref[0], 0.0)
    f = _mm(h, w2_ref[0], dot_dtype) + b2_ref[0]
    out_ref[0] = _layernorm(f + z, g3_ref[0], bt3_ref[0])


def dense_kernel(x_ref, w_ref, b_ref, out_ref, *, dot_dtype):
    """Final vocabulary projection: one (batch, V-tile) grid cell."""
    out_ref[0] = _mm(x_ref[0], w_ref[...], dot_dtype) + b_ref[...]


# ------------------------------ pallas_call wrappers ------------------------

_VMEM_LIMIT = 48 * 1024 * 1024   # headroom under v7x 64 MiB physical; fine on v5e/v6e


def decoder_blocks(x, enc, vlens, prep, num_heads, approx_recip=True):
    """All L DecoderBlocks in one pallas_call, grid=(B, L)."""
    B, S, D = x.shape
    Se = enc.shape[1]
    L = prep["wqkv1"].shape[0]
    F = prep["w1"].shape[2]
    dot_dtype = prep["dot_dtype"]

    kernel = functools.partial(decoder_stack_kernel, num_heads=num_heads,
                               dot_dtype=dot_dtype, approx_recip=approx_recip)

    def bspec(tail):               # per-batch activations: index by b only
        nd = len(tail)
        return pl.BlockSpec((1,) + tuple(tail), lambda b, l, vl: (b,) + (0,) * nd)

    def wspec(tail):               # stacked layer weights: index by l only
        nd = len(tail)
        return pl.BlockSpec((1,) + tuple(tail), lambda b, l, vl: (l,) + (0,) * nd)

    grid_spec = pltpu.PrefetchScalarGridSpec(
        num_scalar_prefetch=1,
        grid=(B, L),               # L innermost, sequential; B parallel (2 TCs on v7x)
        in_specs=[
            bspec((S, D)),         # x (embedded + pos-encoded input)
            bspec((Se, D)),        # encoder outputs
            wspec((D, 3 * D)),     # wqkv1
            wspec((D, D)),         # wo1
            wspec((1, D)), wspec((1, D)),        # gamma1, beta1
            wspec((D, 3 * D)),     # wqkv2
            wspec((D, D)),         # wo2
            wspec((1, D)), wspec((1, D)),        # gamma2, beta2
            wspec((D, F)), wspec((1, F)),        # ffn w1, b1
            wspec((F, D)), wspec((1, D)),        # ffn w2, b2
            wspec((1, D)), wspec((1, D)),        # gamma3, beta3
        ],
        # Same block index across l -> output stays VMEM-resident and carries the
        # activation between layers; written back to HBM once per batch item.
        out_specs=bspec((S, D)),
    )
    return pl.pallas_call(
        kernel,
        out_shape=jax.ShapeDtypeStruct((B, S, D), jnp.float32),
        grid_spec=grid_spec,
        compiler_params=pltpu.CompilerParams(
            dimension_semantics=("parallel", "arbitrary"),
            vmem_limit_bytes=_VMEM_LIMIT),
    )(vlens, x, enc,
      prep["wqkv1"], prep["wo1"], prep["g1"], prep["bt1"],
      prep["wqkv2"], prep["wo2"], prep["g2"], prep["bt2"],
      prep["w1"], prep["b1"], prep["w2"], prep["b2"],
      prep["g3"], prep["bt3"])


def dense(x, Wp, bp, vocab, *, dot_dtype, tv):
    """Vocab projection; Wp/bp are pre-padded (at prepare time) to a multiple of tv."""
    B, S, D = x.shape
    Vpad = Wp.shape[1]
    kernel = functools.partial(dense_kernel, dot_dtype=dot_dtype)
    out = pl.pallas_call(
        kernel,
        out_shape=jax.ShapeDtypeStruct((B, S, Vpad), jnp.float32),
        grid=(B, Vpad // tv),
        in_specs=[
            pl.BlockSpec((1, S, D), lambda bb, v: (bb, 0, 0)),
            pl.BlockSpec((D, tv), lambda bb, v: (0, v)),
            pl.BlockSpec((1, tv), lambda bb, v: (0, v)),
        ],
        out_specs=pl.BlockSpec((1, S, tv), lambda bb, v: (bb, 0, v)),
        compiler_params=pltpu.CompilerParams(
            dimension_semantics=("parallel", "parallel"),
            vmem_limit_bytes=_VMEM_LIMIT),
    )(x, Wp, bp)
    # TODO(synk): for large V, keep the padded logits downstream to skip this slice copy.
    return out[..., :vocab]


# --------------------------- parameter preparation ---------------------------

def prepare_decoder_params(params, matmul_dtype=jnp.bfloat16, tv_max=512):
    """One-time prep: stack per-layer weights with a leading L axis, cast matmul weights
    to the compute dtype (bf16 by default), and pre-pad the vocab projection to
    lane-dense tiles (so no per-forward jnp.pad of the (D, V) weight)."""
    blocks = params["blocks"]

    def st(sub, name, dtype=None):
        w = jnp.stack([blk[sub][name] for blk in blocks])
        return w.astype(dtype) if dtype is not None else w

    wd = matmul_dtype
    prep = {
        "emb": params["emb"], "pos": params["pos"],
        "wqkv1": st("att1", "wqkv", wd), "wo1": st("att1", "wo", wd),
        "g1": st("att1", "gamma"), "bt1": st("att1", "beta"),
        "wqkv2": st("att2", "wqkv", wd), "wo2": st("att2", "wo", wd),
        "g2": st("att2", "gamma"), "bt2": st("att2", "beta"),
        "w1": st("ffn", "w1", wd), "b1": st("ffn", "b1"),
        "w2": st("ffn", "w2", wd), "b2": st("ffn", "b2"),
        "g3": st("ffn", "gamma"), "bt3": st("ffn", "beta"),
    }
    V = params["Wd"].shape[1]
    tv = min(tv_max, ((V + 127) // 128) * 128)       # lane-dense tile, capped for VMEM
    Vpad = ((V + tv - 1) // tv) * tv
    prep["Wd"] = jnp.pad(params["Wd"], ((0, 0), (0, Vpad - V))).astype(wd)
    prep["bd"] = jnp.pad(params["bd"], ((0, 0), (0, Vpad - V)))
    prep["vocab"] = V
    prep["tv"] = tv
    prep["dot_dtype"] = wd
    return prep


# ------------------------------ decoder forward -----------------------------

def decoder_forward(prep, X_ids, enc_outputs, enc_valid_lens, num_heads,
                    approx_recip=True):
    """TransformerDecoder.forward (training-mode masking, dropout p=0.0)."""
    B, S = X_ids.shape
    D = prep["emb"].shape[1]

    # glue: embedding gather + positional encoding (not the hot path)
    X = jnp.take(prep["emb"], X_ids, axis=0) * math.sqrt(D)
    X = X + prep["pos"][:, :S, :]

    vlens = enc_valid_lens.astype(jnp.int32)

    # state[2][i] starts as None -> key_values = X on the first call.
    # TODO(synk): incremental-decode KV-cache concat path (state[2][i]).
    X = decoder_blocks(X, enc_outputs, vlens, prep, num_heads, approx_recip)

    return dense(X, prep["Wd"], prep["bd"], prep["vocab"],
                 dot_dtype=prep["dot_dtype"], tv=prep["tv"])


# ------------------------------ pure-JAX reference ---------------------------

def _ref_mm(a, b, dt):
    prec = jax.lax.Precision.HIGHEST if dt == jnp.float32 else None
    return jnp.dot(a.astype(dt), b.astype(dt),
                   preferred_element_type=jnp.float32, precision=prec)


def _ref_ln(y, gamma, beta, eps=1e-5):
    mean = y.mean(-1, keepdims=True)
    var = ((y - mean) ** 2).mean(-1, keepdims=True)
    return (y - mean) / jnp.sqrt(var + eps) * gamma + beta


def _ref_mha(xq, xkv, mask, w, H, dt):
    prec = jax.lax.Precision.HIGHEST if dt == jnp.float32 else None
    D = xq.shape[-1]
    q = _ref_mm(xq, w["wqkv"][:, :D], dt)
    k = _ref_mm(xkv, w["wqkv"][:, D:2 * D], dt)
    v = _ref_mm(xkv, w["wqkv"][:, 2 * D:], dt)
    B, Sq, _ = q.shape
    Sk = k.shape[1]
    dh = D // H
    qh = q.reshape(B, Sq, H, dh).transpose(0, 2, 1, 3)
    kh = k.reshape(B, Sk, H, dh).transpose(0, 2, 1, 3)
    vh = v.reshape(B, Sk, H, dh).transpose(0, 2, 1, 3)
    scores = jnp.einsum("bhqd,bhkd->bhqk", qh.astype(dt), kh.astype(dt),
                        preferred_element_type=jnp.float32,
                        precision=prec) / math.sqrt(dh)
    scores = jnp.where(mask[:, None] > 0, scores, -1e6)
    p = jax.nn.softmax(scores, axis=-1)
    o = jnp.einsum("bhqk,bhkd->bhqd", p.astype(dt), vh.astype(dt),
                   preferred_element_type=jnp.float32, precision=prec)
    o = o.transpose(0, 2, 1, 3).reshape(B, Sq, D)
    return _ref_mm(o, w["wo"], dt)


def ref_forward(params, X_ids, enc_outputs, enc_valid_lens, H, dt=jnp.float32):
    B, S = X_ids.shape
    D = params["emb"].shape[1]
    S_enc = enc_outputs.shape[1]
    X = jnp.take(params["emb"], X_ids, axis=0) * math.sqrt(D)
    X = X + params["pos"][:, :S, :]
    q = jnp.arange(S)
    dec_mask = jnp.broadcast_to(
        (jnp.arange(S)[None, :] <= q[:, None]).astype(jnp.float32)[None], (B, S, S))
    enc_mask = jnp.broadcast_to(
        (jnp.arange(S_enc)[None, None, :] < enc_valid_lens[:, None, None]
         ).astype(jnp.float32), (B, S, S_enc))
    for blk in params["blocks"]:
        a1 = blk["att1"]
        Y = _ref_ln(_ref_mha(X, X, dec_mask, a1, H, dt) + X, a1["gamma"], a1["beta"])
        a2 = blk["att2"]
        Z = _ref_ln(_ref_mha(Y, enc_outputs, enc_mask, a2, H, dt) + Y,
                    a2["gamma"], a2["beta"])
        f = blk["ffn"]
        h = jnp.maximum(_ref_mm(Z, f["w1"], dt) + f["b1"], 0.0)
        ff = _ref_mm(h, f["w2"], dt) + f["b2"]
        X = _ref_ln(ff + Z, f["gamma"], f["beta"])
    return _ref_mm(X, params["Wd"], dt) + params["bd"]


# ------------------------------ parameter init -------------------------------

def init_params(key, vocab, D, F, H, L, max_len=1000):
    keys = iter(jax.random.split(key, 12 * L + 8))

    def nrm(shape, scale=0.1):
        return jax.random.normal(next(keys), shape, jnp.float32) * scale

    params = {"emb": nrm((vocab, D), 1.0)}

    # positional encoding table (d2l PositionalEncoding)
    pos = (jnp.arange(max_len, dtype=jnp.float32)[:, None]
           / jnp.power(10000.0, jnp.arange(0, D, 2, dtype=jnp.float32) / D))
    P = jnp.zeros((max_len, D), jnp.float32)
    P = P.at[:, 0::2].set(jnp.sin(pos))
    P = P.at[:, 1::2].set(jnp.cos(pos))
    params["pos"] = P[None]

    def att_params():
        return {"wqkv": nrm((D, 3 * D)),     # [Wq | Wk | Wv], pre-fused
                "wo": nrm((D, D)),
                "gamma": jnp.ones((1, D), jnp.float32),
                "beta": jnp.zeros((1, D), jnp.float32)}

    blocks = []
    for _ in range(L):
        blocks.append({
            "att1": att_params(),
            "att2": att_params(),
            "ffn": {"w1": nrm((D, F)), "b1": nrm((1, F)),
                    "w2": nrm((F, D)), "b2": nrm((1, D)),
                    "gamma": jnp.ones((1, D), jnp.float32),
                    "beta": jnp.zeros((1, D), jnp.float32)},
        })
    params["blocks"] = blocks
    params["Wd"] = nrm((D, vocab))
    params["bd"] = nrm((1, vocab))
    return params


# ------------------------------------ main -----------------------------------

if __name__ == "__main__":
    B, S, S_enc = 2, 8, 8
    VOCAB, D, FFN, HEADS, LAYERS = 40, 32, 64, 4, 2

    key = jax.random.PRNGKey(0)
    k_param, k_ids, k_enc = jax.random.split(key, 3)
    params = init_params(k_param, VOCAB, D, FFN, HEADS, LAYERS)

    X_ids = jax.random.randint(k_ids, (B, S), 0, VOCAB)
    enc_outputs = jax.random.normal(k_enc, (B, S_enc, D), jnp.float32)
    enc_valid_lens = jnp.array([S_enc, 5], jnp.int32)

    # --- exact f32 path: semantics check against the f32 (HIGHEST precision) reference
    prep_f32 = prepare_decoder_params(params, matmul_dtype=jnp.float32)
    logits_f32 = decoder_forward(prep_f32, X_ids, enc_outputs, enc_valid_lens, HEADS)
    logits_f32 = jax.block_until_ready(logits_f32)
    assert logits_f32.shape == (B, S, VOCAB)
    ref_f32 = ref_forward(params, X_ids, enc_outputs, enc_valid_lens, HEADS, jnp.float32)
    err_f32 = float(jnp.max(jnp.abs(logits_f32 - ref_f32)))
    assert err_f32 < 2e-2, f"f32 kernel mismatch vs f32 reference: {err_f32}"

    # --- bf16 fast path (default perf config): check against a reference that models
    #     the same numerics (bf16 matmul operands, f32 accumulation)
    prep_bf16 = prepare_decoder_params(params, matmul_dtype=jnp.bfloat16)
    logits_bf16 = decoder_forward(prep_bf16, X_ids, enc_outputs, enc_valid_lens, HEADS)
    logits_bf16 = jax.block_until_ready(logits_bf16)
    assert logits_bf16.shape == (B, S, VOCAB)
    ref_bf16 = ref_forward(params, X_ids, enc_outputs, enc_valid_lens, HEADS,
                           jnp.bfloat16)
    err_bf16 = float(jnp.max(jnp.abs(logits_bf16 - ref_bf16)))
    assert err_bf16 < 1e-2, f"bf16 kernel mismatch vs bf16-numerics reference: {err_bf16}"

    print("KERNEL_OK")
</pallas_src>

<mosaic_0001>
module attributes {stable_mosaic.version = 11 : i64} {
  func.func @decoder_stack_kernel(%arg0: i32, %arg1: i32, %arg2: memref<2xi32, #tpu.memory_space<smem>>, %arg3: memref<1x8x32xf32, #tpu.memory_space<vmem>>, %arg4: memref<1x8x32xf32, #tpu.memory_space<vmem>>, %arg5: memref<1x32x96xf32, #tpu.memory_space<vmem>>, %arg6: memref<1x32x32xf32, #tpu.memory_space<vmem>>, %arg7: memref<1x1x32xf32, #tpu.memory_space<vmem>>, %arg8: memref<1x1x32xf32, #tpu.memory_space<vmem>>, %arg9: memref<1x32x96xf32, #tpu.memory_space<vmem>>, %arg10: memref<1x32x32xf32, #tpu.memory_space<vmem>>, %arg11: memref<1x1x32xf32, #tpu.memory_space<vmem>>, %arg12: memref<1x1x32xf32, #tpu.memory_space<vmem>>, %arg13: memref<1x32x64xf32, #tpu.memory_space<vmem>>, %arg14: memref<1x1x64xf32, #tpu.memory_space<vmem>>, %arg15: memref<1x64x32xf32, #tpu.memory_space<vmem>>, %arg16: memref<1x1x32xf32, #tpu.memory_space<vmem>>, %arg17: memref<1x1x32xf32, #tpu.memory_space<vmem>>, %arg18: memref<1x1x32xf32, #tpu.memory_space<vmem>>, %arg19: memref<1x8x32xf32, #tpu.memory_space<vmem>>) attributes {dimension_semantics = [#tpu.dimension_semantics<parallel>, #tpu.dimension_semantics<arbitrary>], iteration_bounds = array<i64: 2, 2>, scalar_prefetch = 1 : i64, scratch_operands = 0 : i64, tpu.core_type = #tpu.core_type<tc>, window_params = [{transform_indices = @transform_0, window_bounds = array<i64: 1, 8, 32>}, {transform_indices = @transform_1, window_bounds = array<i64: 1, 8, 32>}, {transform_indices = @transform_2, window_bounds = array<i64: 1, 32, 96>}, {transform_indices = @transform_3, window_bounds = array<i64: 1, 32, 32>}, {transform_indices = @transform_4, window_bounds = array<i64: 1, 1, 32>}, {transform_indices = @transform_5, window_bounds = array<i64: 1, 1, 32>}, {transform_indices = @transform_6, window_bounds = array<i64: 1, 32, 96>}, {transform_indices = @transform_7, window_bounds = array<i64: 1, 32, 32>}, {transform_indices = @transform_8, window_bounds = array<i64: 1, 1, 32>}, {transform_indices = @transform_9, window_bounds = array<i64: 1, 1, 32>}, {transform_indices = @transform_10, window_bounds = array<i64: 1, 32, 64>}, {transform_indices = @transform_11, window_bounds = array<i64: 1, 1, 64>}, {transform_indices = @transform_12, window_bounds = array<i64: 1, 64, 32>}, {transform_indices = @transform_13, window_bounds = array<i64: 1, 1, 32>}, {transform_indices = @transform_14, window_bounds = array<i64: 1, 1, 32>}, {transform_indices = @transform_15, window_bounds = array<i64: 1, 1, 32>}, {transform_indices = @transform_16, window_bounds = array<i64: 1, 8, 32>}]} {
    %c0_i32 = arith.constant 0 : i32
    %0 = arith.cmpi eq, %arg1, %c0_i32 : i32
    %1 = arith.extui %0 : i1 to i32
    %c0_i32_0 = arith.constant 0 : i32
    %2 = arith.cmpi ne, %1, %c0_i32_0 : i32
    scf.if %2 {
      %c0_129 = arith.constant 0 : index
      %c0_130 = arith.constant 0 : index
      %c0_131 = arith.constant 0 : index
      %311 = vector.load %arg3[%c0_129, %c0_130, %c0_131] : memref<1x8x32xf32, #tpu.memory_space<vmem>>, vector<1x8x32xf32>
      %312 = vector.shape_cast %311 : vector<1x8x32xf32> to vector<8x32xf32>
      %c0_132 = arith.constant 0 : index
      %c0_133 = arith.constant 0 : index
      %c0_134 = arith.constant 0 : index
      %313 = vector.load %arg19[%c0_132, %c0_133, %c0_134] : memref<1x8x32xf32, #tpu.memory_space<vmem>>, vector<1x8x32xf32>
      %314 = vector.shape_cast %313 : vector<1x8x32xf32> to vector<8x32xf32>
      %315 = vector.shape_cast %312 : vector<8x32xf32> to vector<1x8x32xf32>
      tpu.vector_store %arg19[%c0_132, %c0_133, %c0_134], %315 {strides = array<i32>} : memref<1x8x32xf32, #tpu.memory_space<vmem>>, vector<1x8x32xf32>,
    } else {
    }
    %c0 = arith.constant 0 : index
    %c0_1 = arith.constant 0 : index
    %c0_2 = arith.constant 0 : index
    %3 = vector.load %arg19[%c0, %c0_1, %c0_2] : memref<1x8x32xf32, #tpu.memory_space<vmem>>, vector<1x8x32xf32>
    %4 = vector.shape_cast %3 : vector<1x8x32xf32> to vector<8x32xf32>
    %c0_3 = arith.constant 0 : index
    %c0_4 = arith.constant 0 : index
    %c0_5 = arith.constant 0 : index
    %5 = vector.load %arg4[%c0_3, %c0_4, %c0_5] : memref<1x8x32xf32, #tpu.memory_space<vmem>>, vector<1x8x32xf32>
    %6 = vector.shape_cast %5 : vector<1x8x32xf32> to vector<8x32xf32>
    %7 = tpu.iota {dimensions = array<i32: 0>} : vector<8x8xi32>
    %8 = tpu.iota {dimensions = array<i32: 1>} : vector<8x8xi32>
    %9 = arith.cmpi sle, %8, %7 : vector<8x8xi32>
    %10 = tpu.iota {dimensions = array<i32: 1>} : vector<8x8xi32>
    %11 = arith.index_cast %arg0 : i32 to index
    %12 = memref.load %arg2[%11] : memref<2xi32, #tpu.memory_space<smem>>
    %13 = vector.broadcast %12 : i32 to vector<8x8xi32>
    %14 = arith.cmpi slt, %10, %13 : vector<8x8xi32>
    %c0_6 = arith.constant 0 : index
    %c0_7 = arith.constant 0 : index
    %c0_8 = arith.constant 0 : index
    %15 = vector.load %arg5[%c0_6, %c0_7, %c0_8] : memref<1x32x96xf32, #tpu.memory_space<vmem>>, vector<1x32x96xf32>
    %16 = vector.shape_cast %15 : vector<1x32x96xf32> to vector<32x96xf32>
    %c0_9 = arith.constant 0 : index
    %c0_10 = arith.constant 0 : index
    %c0_11 = arith.constant 0 : index
    %17 = vector.load %arg6[%c0_9, %c0_10, %c0_11] : memref<1x32x32xf32, #tpu.memory_space<vmem>>, vector<1x32x32xf32>
    %18 = vector.shape_cast %17 : vector<1x32x32xf32> to vector<32x32xf32>
    %c0_12 = arith.constant 0 : index
    %c0_13 = arith.constant 0 : index
    %c0_14 = arith.constant 0 : index
    %19 = vector.load %arg7[%c0_12, %c0_13, %c0_14] : memref<1x1x32xf32, #tpu.memory_space<vmem>>, vector<1x1x32xf32>
    %20 = vector.shape_cast %19 : vector<1x1x32xf32> to vector<1x32xf32>
    %c0_15 = arith.constant 0 : index
    %c0_16 = arith.constant 0 : index
    %c0_17 = arith.constant 0 : index
    %21 = vector.load %arg8[%c0_15, %c0_16, %c0_17] : memref<1x1x32xf32, #tpu.memory_space<vmem>>, vector<1x1x32xf32>
    %22 = vector.shape_cast %21 : vector<1x1x32xf32> to vector<1x32xf32>
    %cst = arith.constant dense<0.000000e+00> : vector<8x96xf32>
    %23 = tpu.matmul %4, %16, %cst {dimension_numbers = #tpu.dot_dimension_numbers<[1], [0], [0], [1], [0, 0, 1, 1], [], []>} : vector<8x32xf32>, vector<32x96xf32>, vector<8x96xf32> -> vector<8x96xf32>
    %24 = vector.extract_strided_slice %23 {offsets = [0, 0], sizes = [8, 32], strides = [1, 1]} : vector<8x96xf32> to vector<8x32xf32>
    %25 = vector.extract_strided_slice %23 {offsets = [0, 32], sizes = [8, 32], strides = [1, 1]} : vector<8x96xf32> to vector<8x32xf32>
    %26 = vector.extract_strided_slice %23 {offsets = [0, 64], sizes = [8, 32], strides = [1, 1]} : vector<8x96xf32> to vector<8x32xf32>
    %cst_18 = arith.constant 0.000000e+00 : f32
    %27 = vector.broadcast %cst_18 : f32 to vector<8x32xf32>
    %28 = vector.extract_strided_slice %24 {offsets = [0, 0], sizes = [8, 8], strides = [1, 1]} : vector<8x32xf32> to vector<8x8xf32>
    %29 = vector.extract_strided_slice %25 {offsets = [0, 0], sizes = [8, 8], strides = [1, 1]} : vector<8x32xf32> to vector<8x8xf32>
    %30 = vector.extract_strided_slice %26 {offsets = [0, 0], sizes = [8, 8], strides = [1, 1]} : vector<8x32xf32> to vector<8x8xf32>
    %cst_19 = arith.constant dense<0.000000e+00> : vector<8x8xf32>
    %31 = tpu.matmul %28, %29, %cst_19 {dimension_numbers = #tpu.dot_dimension_numbers<[1], [1], [0], [0], [0, 0, 1, 0], [], []>} : vector<8x8xf32>, vector<8x8xf32>, vector<8x8xf32> -> vector<8x8xf32>
    %cst_20 = arith.constant 0.353553385 : f32
    %32 = vector.broadcast %cst_20 : f32 to vector<8x8xf32>
    %33 = arith.mulf %31, %32 : vector<8x8xf32>
    %cst_21 = arith.constant -1.000000e+06 : f32
    %34 = vector.broadcast %cst_21 : f32 to vector<8x8xf32>
    %35 = arith.select %9, %33, %34 : vector<8x8xi1>, vector<8x8xf32>
    %cst_22 = arith.constant dense<0xFF800000> : vector<8xf32>
    %36 = vector.multi_reduction <maximumf>, %35, %cst_22 [1] : vector<8x8xf32> to vector<8xf32>
    %37 = vector.shape_cast %36 : vector<8xf32> to vector<8x1xf32>
    %38 = vector.broadcast %37 : vector<8x1xf32> to vector<8x8xf32>
    %39 = arith.subf %35, %38 : vector<8x8xf32>
    %40 = math.exp %39 : vector<8x8xf32>
    %cst_23 = arith.constant dense<0.000000e+00> : vector<8xf32>
    %41 = vector.multi_reduction <add>, %40, %cst_23 [1] : vector<8x8xf32> to vector<8xf32>
    %42 = vector.shape_cast %41 : vector<8xf32> to vector<8x1xf32>
    %43 = tpu.reciprocal %42 {approx = true} : vector<8x1xf32> -> vector<8x1xf32>
    %44 = vector.broadcast %43 : vector<8x1xf32> to vector<8x8xf32>
    %45 = arith.mulf %40, %44 : vector<8x8xf32>
    %cst_24 = arith.constant dense<0.000000e+00> : vector<8x8xf32>
    %46 = tpu.matmul %45, %30, %cst_24 {dimension_numbers = #tpu.dot_dimension_numbers<[1], [0], [0], [1], [0, 0, 1, 1], [], []>} : vector<8x8xf32>, vector<8x8xf32>, vector<8x8xf32> -> vector<8x8xf32>
    %47 = vector.extract_strided_slice %18 {offsets = [0, 0], sizes = [8, 32], strides = [1, 1]} : vector<32x32xf32> to vector<8x32xf32>
    %cst_25 = arith.constant dense<0.000000e+00> : vector<8x32xf32>
    %48 = tpu.matmul %46, %47, %cst_25 {dimension_numbers = #tpu.dot_dimension_numbers<[1], [0], [0], [1], [0, 0, 1, 1], [], []>} : vector<8x8xf32>, vector<8x32xf32>, vector<8x32xf32> -> vector<8x32xf32>
    %49 = arith.addf %27, %48 : vector<8x32xf32>
    %50 = vector.extract_strided_slice %24 {offsets = [0, 8], sizes = [8, 8], strides = [1, 1]} : vector<8x32xf32> to vector<8x8xf32>
    %51 = vector.extract_strided_slice %25 {offsets = [0, 8], sizes = [8, 8], strides = [1, 1]} : vector<8x32xf32> to vector<8x8xf32>
    %52 = vector.extract_strided_slice %26 {offsets = [0, 8], sizes = [8, 8], strides = [1, 1]} : vector<8x32xf32> to vector<8x8xf32>
    %cst_26 = arith.constant dense<0.000000e+00> : vector<8x8xf32>
    %53 = tpu.matmul %50, %51, %cst_26 {dimension_numbers = #tpu.dot_dimension_numbers<[1], [1], [0], [0], [0, 0, 1, 0], [], []>} : vector<8x8xf32>, vector<8x8xf32>, vector<8x8xf32> -> vector<8x8xf32>
    %cst_27 = arith.constant 0.353553385 : f32
    %54 = vector.broadcast %cst_27 : f32 to vector<8x8xf32>
    %55 = arith.mulf %53, %54 : vector<8x8xf32>
    %cst_28 = arith.constant -1.000000e+06 : f32
    %56 = vector.broadcast %cst_28 : f32 to vector<8x8xf32>
    %57 = arith.select %9, %55, %56 : vector<8x8xi1>, vector<8x8xf32>
    %cst_29 = arith.constant dense<0xFF800000> : vector<8xf32>
    %58 = vector.multi_reduction <maximumf>, %57, %cst_29 [1] : vector<8x8xf32> to vector<8xf32>
    %59 = vector.shape_cast %58 : vector<8xf32> to vector<8x1xf32>
    %60 = vector.broadcast %59 : vector<8x1xf32> to vector<8x8xf32>
    %61 = arith.subf %57, %60 : vector<8x8xf32>
    %62 = math.exp %61 : vector<8x8xf32>
    %cst_30 = arith.constant dense<0.000000e+00> : vector<8xf32>
    %63 = vector.multi_reduction <add>, %62, %cst_30 [1] : vector<8x8xf32> to vector<8xf32>
    %64 = vector.shape_cast %63 : vector<8xf32> to vector<8x1xf32>
    %65 = tpu.reciprocal %64 {approx = true} : vector<8x1xf32> -> vector<8x1xf32>
    %66 = vector.broadcast %65 : vector<8x1xf32> to vector<8x8xf32>
    %67 = arith.mulf %62, %66 : vector<8x8xf32>
    %cst_31 = arith.constant dense<0.000000e+00> : vector<8x8xf32>
    %68 = tpu.matmul %67, %52, %cst_31 {dimension_numbers = #tpu.dot_dimension_numbers<[1], [0], [0], [1], [0, 0, 1, 1], [], []>} : vector<8x8xf32>, vector<8x8xf32>, vector<8x8xf32> -> vector<8x8xf32>
    %69 = vector.extract_strided_slice %18 {offsets = [8, 0], sizes = [8, 32], strides = [1, 1]} : vector<32x32xf32> to vector<8x32xf32>
    %cst_32 = arith.constant dense<0.000000e+00> : vector<8x32xf32>
    %70 = tpu.matmul %68, %69, %cst_32 {dimension_numbers = #tpu.dot_dimension_numbers<[1], [0], [0], [1], [0, 0, 1, 1], [], []>} : vector<8x8xf32>, vector<8x32xf32>, vector<8x32xf32> -> vector<8x32xf32>
    %71 = arith.addf %49, %70 : vector<8x32xf32>
    %72 = vector.extract_strided_slice %24 {offsets = [0, 16], sizes = [8, 8], strides = [1, 1]} : vector<8x32xf32> to vector<8x8xf32>
    %73 = vector.extract_strided_slice %25 {offsets = [0, 16], sizes = [8, 8], strides = [1, 1]} : vector<8x32xf32> to vector<8x8xf32>
    %74 = vector.extract_strided_slice %26 {offsets = [0, 16], sizes = [8, 8], strides = [1, 1]} : vector<8x32xf32> to vector<8x8xf32>
    %cst_33 = arith.constant dense<0.000000e+00> : vector<8x8xf32>
    %75 = tpu.matmul %72, %73, %cst_33 {dimension_numbers = #tpu.dot_dimension_numbers<[1], [1], [0], [0], [0, 0, 1, 0], [], []>} : vector<8x8xf32>, vector<8x8xf32>, vector<8x8xf32> -> vector<8x8xf32>
    %cst_34 = arith.constant 0.353553385 : f32
    %76 = vector.broadcast %cst_34 : f32 to vector<8x8xf32>
    %77 = arith.mulf %75, %76 : vector<8x8xf32>
    %cst_35 = arith.constant -1.000000e+06 : f32
    %78 = vector.broadcast %cst_35 : f32 to vector<8x8xf32>
    %79 = arith.select %9, %77, %78 : vector<8x8xi1>, vector<8x8xf32>
    %cst_36 = arith.constant dense<0xFF800000> : vector<8xf32>
    %80 = vector.multi_reduction <maximumf>, %79, %cst_36 [1] : vector<8x8xf32> to vector<8xf32>
    %81 = vector.shape_cast %80 : vector<8xf32> to vector<8x1xf32>
    %82 = vector.broadcast %81 : vector<8x1xf32> to vector<8x8xf32>
    %83 = arith.subf %79, %82 : vector<8x8xf32>
    %84 = math.exp %83 : vector<8x8xf32>
    %cst_37 = arith.constant dense<0.000000e+00> : vector<8xf32>
    %85 = vector.multi_reduction <add>, %84, %cst_37 [1] : vector<8x8xf32> to vector<8xf32>
    %86 = vector.shape_cast %85 : vector<8xf32> to vector<8x1xf32>
    %87 = tpu.reciprocal %86 {approx = true} : vector<8x1xf32> -> vector<8x1xf32>
    %88 = vector.broadcast %87 : vector<8x1xf32> to vector<8x8xf32>
    %89 = arith.mulf %84, %88 : vector<8x8xf32>
    %cst_38 = arith.constant dense<0.000000e+00> : vector<8x8xf32>
    %90 = tpu.matmul %89, %74, %cst_38 {dimension_numbers = #tpu.dot_dimension_numbers<[1], [0], [0], [1], [0, 0, 1, 1], [], []>} : vector<8x8xf32>, vector<8x8xf32>, vector<8x8xf32> -> vector<8x8xf32>
    %91 = vector.extract_strided_slice %18 {offsets = [16, 0], sizes = [8, 32], strides = [1, 1]} : vector<32x32xf32> to vector<8x32xf32>
    %cst_39 = arith.constant dense<0.000000e+00> : vector<8x32xf32>
    %92 = tpu.matmul %90, %91, %cst_39 {dimension_numbers = #tpu.dot_dimension_numbers<[1], [0], [0], [1], [0, 0, 1, 1], [], []>} : vector<8x8xf32>, vector<8x32xf32>, vector<8x32xf32> -> vector<8x32xf32>
    %93 = arith.addf %71, %92 : vector<8x32xf32>
    %94 = vector.extract_strided_slice %24 {offsets = [0, 24], sizes = [8, 8], strides = [1, 1]} : vector<8x32xf32> to vector<8x8xf32>
    %95 = vector.extract_strided_slice %25 {offsets = [0, 24], sizes = [8, 8], strides = [1, 1]} : vector<8x32xf32> to vector<8x8xf32>
    %96 = vector.extract_strided_slice %26 {offsets = [0, 24], sizes = [8, 8], strides = [1, 1]} : vector<8x32xf32> to vector<8x8xf32>
    %cst_40 = arith.constant dense<0.000000e+00> : vector<8x8xf32>
    %97 = tpu.matmul %94, %95, %cst_40 {dimension_numbers = #tpu.dot_dimension_numbers<[1], [1], [0], [0], [0, 0, 1, 0], [], []>} : vector<8x8xf32>, vector<8x8xf32>, vector<8x8xf32> -> vector<8x8xf32>
    %cst_41 = arith.constant 0.353553385 : f32
    %98 = vector.broadcast %cst_41 : f32 to vector<8x8xf32>
    %99 = arith.mulf %97, %98 : vector<8x8xf32>
    %cst_42 = arith.constant -1.000000e+06 : f32
    %100 = vector.broadcast %cst_42 : f32 to vector<8x8xf32>
    %101 = arith.select %9, %99, %100 : vector<8x8xi1>, vector<8x8xf32>
    %cst_43 = arith.constant dense<0xFF800000> : vector<8xf32>
    %102 = vector.multi_reduction <maximumf>, %101, %cst_43 [1] : vector<8x8xf32> to vector<8xf32>
    %103 = vector.shape_cast %102 : vector<8xf32> to vector<8x1xf32>
    %104 = vector.broadcast %103 : vector<8x1xf32> to vector<8x8xf32>
    %105 = arith.subf %101, %104 : vector<8x8xf32>
    %106 = math.exp %105 : vector<8x8xf32>
    %cst_44 = arith.constant dense<0.000000e+00> : vector<8xf32>
    %107 = vector.multi_reduction <add>, %106, %cst_44 [1] : vector<8x8xf32> to vector<8xf32>
    %108 = vector.shape_cast %107 : vector<8xf32> to vector<8x1xf32>
    %109 = tpu.reciprocal %108 {approx = true} : vector<8x1xf32> -> vector<8x1xf32>
    %110 = vector.broadcast %109 : vector<8x1xf32> to vector<8x8xf32>
    %111 = arith.mulf %106, %110 : vector<8x8xf32>
    %cst_45 = arith.constant dense<0.000000e+00> : vector<8x8xf32>
    %112 = tpu.matmul %111, %96, %cst_45 {dimension_numbers = #tpu.dot_dimension_numbers<[1], [0], [0], [1], [0, 0, 1, 1], [], []>} : vector<8x8xf32>, vector<8x8xf32>, vector<8x8xf32> -> vector<8x8xf32>
    %113 = vector.extract_strided_slice %18 {offsets = [24, 0], sizes = [8, 32], strides = [1, 1]} : vector<32x32xf32> to vector<8x32xf32>
    %cst_46 = arith.constant dense<0.000000e+00> : vector<8x32xf32>
    %114 = tpu.matmul %112, %113, %cst_46 {dimension_numbers = #tpu.dot_dimension_numbers<[1], [0], [0], [1], [0, 0, 1, 1], [], []>} : vector<8x8xf32>, vector<8x32xf32>, vector<8x32xf32> -> vector<8x32xf32>
    %115 = arith.addf %93, %114 : vector<8x32xf32>
    %116 = arith.addf %115, %4 : vector<8x32xf32>
    %cst_47 = arith.constant dense<0.000000e+00> : vector<8xf32>
    %117 = vector.multi_reduction <add>, %116, %cst_47 [1] : vector<8x32xf32> to vector<8xf32>
    %118 = vector.shape_cast %117 : vector<8xf32> to vector<8x1xf32>
    %cst_48 = arith.constant 3.200000e+01 : f32
    %119 = vector.broadcast %cst_48 : f32 to vector<8x1xf32>
    %120 = arith.divf %118, %119 : vector<8x1xf32>
    %121 = vector.broadcast %120 : vector<8x1xf32> to vector<8x32xf32>
    %122 = arith.subf %116, %121 : vector<8x32xf32>
    %123 = arith.mulf %122, %122 : vector<8x32xf32>
    %cst_49 = arith.constant dense<0.000000e+00> : vector<8xf32>
    %124 = vector.multi_reduction <add>, %123, %cst_49 [1] : vector<8x32xf32> to vector<8xf32>
    %125 = vector.shape_cast %124 : vector<8xf32> to vector<8x1xf32>
    %cst_50 = arith.constant 3.200000e+01 : f32
    %126 = vector.broadcast %cst_50 : f32 to vector<8x1xf32>
    %127 = arith.divf %125, %126 : vector<8x1xf32>
    %128 = vector.broadcast %120 : vector<8x1xf32> to vector<8x32xf32>
    %129 = arith.subf %116, %128 : vector<8x32xf32>
    %cst_51 = arith.constant 9.99999974E-6 : f32
    %130 = vector.broadcast %cst_51 : f32 to vector<8x1xf32>
    %131 = arith.addf %127, %130 : vector<8x1xf32>
    %132 = math.rsqrt %131 : vector<8x1xf32>
    %133 = vector.broadcast %132 : vector<8x1xf32> to vector<8x32xf32>
    %134 = arith.mulf %129, %133 : vector<8x32xf32>
    %135 = vector.broadcast %20 : vector<1x32xf32> to vector<8x32xf32>
    %136 = arith.mulf %134, %135 : vector<8x32xf32>
    %137 = vector.broadcast %22 : vector<1x32xf32> to vector<8x32xf32>
    %138 = arith.addf %136, %137 : vector<8x32xf32>
    %c0_52 = arith.constant 0 : index
    %c0_53 = arith.constant 0 : index
    %c0_54 = arith.constant 0 : index
    %139 = vector.load %arg9[%c0_52, %c0_53, %c0_54] : memref<1x32x96xf32, #tpu.memory_space<vmem>>, vector<1x32x96xf32>
    %140 = vector.shape_cast %139 : vector<1x32x96xf32> to vector<32x96xf32>
    %c0_55 = arith.constant 0 : index
    %c0_56 = arith.constant 0 : index
    %c0_57 = arith.constant 0 : index
    %141 = vector.load %arg10[%c0_55, %c0_56, %c0_57] : memref<1x32x32xf32, #tpu.memory_space<vmem>>, vector<1x32x32xf32>
    %142 = vector.shape_cast %141 : vector<1x32x32xf32> to vector<32x32xf32>
    %c0_58 = arith.constant 0 : index
    %c0_59 = arith.constant 0 : index
    %c0_60 = arith.constant 0 : index
    %143 = vector.load %arg11[%c0_58, %c0_59, %c0_60] : memref<1x1x32xf32, #tpu.memory_space<vmem>>, vector<1x1x32xf32>
    %144 = vector.shape_cast %143 : vector<1x1x32xf32> to vector<1x32xf32>
    %c0_61 = arith.constant 0 : index
    %c0_62 = arith.constant 0 : index
    %c0_63 = arith.constant 0 : index
    %145 = vector.load %arg12[%c0_61, %c0_62, %c0_63] : memref<1x1x32xf32, #tpu.memory_space<vmem>>, vector<1x1x32xf32>
    %146 = vector.shape_cast %145 : vector<1x1x32xf32> to vector<1x32xf32>
    %147 = vector.extract_strided_slice %140 {offsets = [0, 0], sizes = [32, 32], strides = [1, 1]} : vector<32x96xf32> to vector<32x32xf32>
    %cst_64 = arith.constant dense<0.000000e+00> : vector<8x32xf32>
    %148 = tpu.matmul %138, %147, %cst_64 {dimension_numbers = #tpu.dot_dimension_numbers<[1], [0], [0], [1], [0, 0, 1, 1], [], []>} : vector<8x32xf32>, vector<32x32xf32>, vector<8x32xf32> -> vector<8x32xf32>
    %149 = vector.extract_strided_slice %140 {offsets = [0, 32], sizes = [32, 64], strides = [1, 1]} : vector<32x96xf32> to vector<32x64xf32>
    %cst_65 = arith.constant dense<0.000000e+00> : vector<8x64xf32>
    %150 = tpu.matmul %6, %149, %cst_65 {dimension_numbers = #tpu.dot_dimension_numbers<[1], [0], [0], [1], [0, 0, 1, 1], [], []>} : vector<8x32xf32>, vector<32x64xf32>, vector<8x64xf32> -> vector<8x64xf32>
    %151 = vector.extract_strided_slice %150 {offsets = [0, 0], sizes = [8, 32], strides = [1, 1]} : vector<8x64xf32> to vector<8x32xf32>
    %152 = vector.extract_strided_slice %150 {offsets = [0, 32], sizes = [8, 32], strides = [1, 1]} : vector<8x64xf32> to vector<8x32xf32>
    %cst_66 = arith.constant 0.000000e+00 : f32
    %153 = vector.broadcast %cst_66 : f32 to vector<8x32xf32>
    %154 = vector.extract_strided_slice %148 {offsets = [0, 0], sizes = [8, 8], strides = [1, 1]} : vector<8x32xf32> to vector<8x8xf32>
    %155 = vector.extract_strided_slice %151 {offsets = [0, 0], sizes = [8, 8], strides = [1, 1]} : vector<8x32xf32> to vector<8x8xf32>
    %156 = vector.extract_strided_slice %152 {offsets = [0, 0], sizes = [8, 8], strides = [1, 1]} : vector<8x32xf32> to vector<8x8xf32>
    %cst_67 = arith.constant dense<0.000000e+00> : vector<8x8xf32>
    %157 = tpu.matmul %154, %155, %cst_67 {dimension_numbers = #tpu.dot_dimension_numbers<[1], [1], [0], [0], [0, 0, 1, 0], [], []>} : vector<8x8xf32>, vector<8x8xf32>, vector<8x8xf32> -> vector<8x8xf32>
    %cst_68 = arith.constant 0.353553385 : f32
    %158 = vector.broadcast %cst_68 : f32 to vector<8x8xf32>
    %159 = arith.mulf %157, %158 : vector<8x8xf32>
    %cst_69 = arith.constant -1.000000e+06 : f32
    %160 = vector.broadcast %cst_69 : f32 to vector<8x8xf32>
    %161 = arith.select %14, %159, %160 : vector<8x8xi1>, vector<8x8xf32>
    %cst_70 = arith.constant dense<0xFF800000> : vector<8xf32>
    %162 = vector.multi_reduction <maximumf>, %161, %cst_70 [1] : vector<8x8xf32> to vector<8xf32>
    %163 = vector.shape_cast %162 : vector<8xf32> to vector<8x1xf32>
    %164 = vector.broadcast %163 : vector<8x1xf32> to vector<8x8xf32>
    %165 = arith.subf %161, %164 : vector<8x8xf32>
    %166 = math.exp %165 : vector<8x8xf32>
    %cst_71 = arith.constant dense<0.000000e+00> : vector<8xf32>
    %167 = vector.multi_reduction <add>, %166, %cst_71 [1] : vector<8x8xf32> to vector<8xf32>
    %168 = vector.shape_cast %167 : vector<8xf32> to vector<8x1xf32>
    %169 = tpu.reciprocal %168 {approx = true} : vector<8x1xf32> -> vector<8x1xf32>
    %170 = vector.broadcast %169 : vector<8x1xf32> to vector<8x8xf32>
    %171 = arith.mulf %166, %170 : vector<8x8xf32>
    %cst_72 = arith.constant dense<0.000000e+00> : vector<8x8xf32>
    %172 = tpu.matmul %171, %156, %cst_72 {dimension_numbers = #tpu.dot_dimension_numbers<[1], [0], [0], [1], [0, 0, 1, 1], [], []>} : vector<8x8xf32>, vector<8x8xf32>, vector<8x8xf32> -> vector<8x8xf32>
    %173 = vector.extract_strided_slice %142 {offsets = [0, 0], sizes = [8, 32], strides = [1, 1]} : vector<32x32xf32> to vector<8x32xf32>
    %cst_73 = arith.constant dense<0.000000e+00> : vector<8x32xf32>
    %174 = tpu.matmul %172, %173, %cst_73 {dimension_numbers = #tpu.dot_dimension_numbers<[1], [0], [0], [1], [0, 0, 1, 1], [], []>} : vector<8x8xf32>, vector<8x32xf32>, vector<8x32xf32> -> vector<8x32xf32>
    %175 = arith.addf %153, %174 : vector<8x32xf32>
    %176 = vector.extract_strided_slice %148 {offsets = [0, 8], sizes = [8, 8], strides = [1, 1]} : vector<8x32xf32> to vector<8x8xf32>
    %177 = vector.extract_strided_slice %151 {offsets = [0, 8], sizes = [8, 8], strides = [1, 1]} : vector<8x32xf32> to vector<8x8xf32>
    %178 = vector.extract_strided_slice %152 {offsets = [0, 8], sizes = [8, 8], strides = [1, 1]} : vector<8x32xf32> to vector<8x8xf32>
    %cst_74 = arith.constant dense<0.000000e+00> : vector<8x8xf32>
    %179 = tpu.matmul %176, %177, %cst_74 {dimension_numbers = #tpu.dot_dimension_numbers<[1], [1], [0], [0], [0, 0, 1, 0], [], []>} : vector<8x8xf32>, vector<8x8xf32>, vector<8x8xf32> -> vector<8x8xf32>
    %cst_75 = arith.constant 0.353553385 : f32
    %180 = vector.broadcast %cst_75 : f32 to vector<8x8xf32>
    %181 = arith.mulf %179, %180 : vector<8x8xf32>
    %cst_76 = arith.constant -1.000000e+06 : f32
    %182 = vector.broadcast %cst_76 : f32 to vector<8x8xf32>
    %183 = arith.select %14, %181, %182 : vector<8x8xi1>, vector<8x8xf32>
    %cst_77 = arith.constant dense<0xFF800000> : vector<8xf32>
    %184 = vector.multi_reduction <maximumf>, %183, %cst_77 [1] : vector<8x8xf32> to vector<8xf32>
    %185 = vector.shape_cast %184 : vector<8xf32> to vector<8x1xf32>
    %186 = vector.broadcast %185 : vector<8x1xf32> to vector<8x8xf32>
    %187 = arith.subf %183, %186 : vector<8x8xf32>
    %188 = math.exp %187 : vector<8x8xf32>
    %cst_78 = arith.constant dense<0.000000e+00> : vector<8xf32>
    %189 = vector.multi_reduction <add>, %188, %cst_78 [1] : vector<8x8xf32> to vector<8xf32>
    %190 = vector.shape_cast %189 : vector<8xf32> to vector<8x1xf32>
    %191 = tpu.reciprocal %190 {approx = true} : vector<8x1xf32> -> vector<8x1xf32>
    %192 = vector.broadcast %191 : vector<8x1xf32> to vector<8x8xf32>
    %193 = arith.mulf %188, %192 : vector<8x8xf32>
    %cst_79 = arith.constant dense<0.000000e+00> : vector<8x8xf32>
    %194 = tpu.matmul %193, %178, %cst_79 {dimension_numbers = #tpu.dot_dimension_numbers<[1], [0], [0], [1], [0, 0, 1, 1], [], []>} : vector<8x8xf32>, vector<8x8xf32>, vector<8x8xf32> -> vector<8x8xf32>
    %195 = vector.extract_strided_slice %142 {offsets = [8, 0], sizes = [8, 32], strides = [1, 1]} : vector<32x32xf32> to vector<8x32xf32>
    %cst_80 = arith.constant dense<0.000000e+00> : vector<8x32xf32>
    %196 = tpu.matmul %194, %195, %cst_80 {dimension_numbers = #tpu.dot_dimension_numbers<[1], [0], [0], [1], [0, 0, 1, 1], [], []>} : vector<8x8xf32>, vector<8x32xf32>, vector<8x32xf32> -> vector<8x32xf32>
    %197 = arith.addf %175, %196 : vector<8x32xf32>
    %198 = vector.extract_strided_slice %148 {offsets = [0, 16], sizes = [8, 8], strides = [1, 1]} : vector<8x32xf32> to vector<8x8xf32>
    %199 = vector.extract_strided_slice %151 {offsets = [0, 16], sizes = [8, 8], strides = [1, 1]} : vector<8x32xf32> to vector<8x8xf32>
    %200 = vector.extract_strided_slice %152 {offsets = [0, 16], sizes = [8, 8], strides = [1, 1]} : vector<8x32xf32> to vector<8x8xf32>
    %cst_81 = arith.constant dense<0.000000e+00> : vector<8x8xf32>
    %201 = tpu.matmul %198, %199, %cst_81 {dimension_numbers = #tpu.dot_dimension_numbers<[1], [1], [0], [0], [0, 0, 1, 0], [], []>} : vector<8x8xf32>, vector<8x8xf32>, vector<8x8xf32> -> vector<8x8xf32>
    %cst_82 = arith.constant 0.353553385 : f32
    %202 = vector.broadcast %cst_82 : f32 to vector<8x8xf32>
    %203 = arith.mulf %201, %202 : vector<8x8xf32>
    %cst_83 = arith.constant -1.000000e+06 : f32
    %204 = vector.broadcast %cst_83 : f32 to vector<8x8xf32>
    %205 = arith.select %14, %203, %204 : vector<8x8xi1>, vector<8x8xf32>
    %cst_84 = arith.constant dense<0xFF800000> : vector<8xf32>
    %206 = vector.multi_reduction <maximumf>, %205, %cst_84 [1] : vector<8x8xf32> to vector<8xf32>
    %207 = vector.shape_cast %206 : vector<8xf32> to vector<8x1xf32>
    %208 = vector.broadcast %207 : vector<8x1xf32> to vector<8x8xf32>
    %209 = arith.subf %205, %208 : vector<8x8xf32>
    %210 = math.exp %209 : vector<8x8xf32>
    %cst_85 = arith.constant dense<0.000000e+00> : vector<8xf32>
    %211 = vector.multi_reduction <add>, %210, %cst_85 [1] : vector<8x8xf32> to vector<8xf32>
    %212 = vector.shape_cast %211 : vector<8xf32> to vector<8x1xf32>
    %213 = tpu.reciprocal %212 {approx = true} : vector<8x1xf32> -> vector<8x1xf32>
    %214 = vector.broadcast %213 : vector<8x1xf32> to vector<8x8xf32>
    %215 = arith.mulf %210, %214 : vector<8x8xf32>
    %cst_86 = arith.constant dense<0.000000e+00> : vector<8x8xf32>
    %216 = tpu.matmul %215, %200, %cst_86 {dimension_numbers = #tpu.dot_dimension_numbers<[1], [0], [0], [1], [0, 0, 1, 1], [], []>} : vector<8x8xf32>, vector<8x8xf32>, vector<8x8xf32> -> vector<8x8xf32>
    %217 = vector.extract_strided_slice %142 {offsets = [16, 0], sizes = [8, 32], strides = [1, 1]} : vector<32x32xf32> to vector<8x32xf32>
    %cst_87 = arith.constant dense<0.000000e+00> : vector<8x32xf32>
    %218 = tpu.matmul %216, %217, %cst_87 {dimension_numbers = #tpu.dot_dimension_numbers<[1], [0], [0], [1], [0, 0, 1, 1], [], []>} : vector<8x8xf32>, vector<8x32xf32>, vector<8x32xf32> -> vector<8x32xf32>
    %219 = arith.addf %197, %218 : vector<8x32xf32>
    %220 = vector.extract_strided_slice %148 {offsets = [0, 24], sizes = [8, 8], strides = [1, 1]} : vector<8x32xf32> to vector<8x8xf32>
    %221 = vector.extract_strided_slice %151 {offsets = [0, 24], sizes = [8, 8], strides = [1, 1]} : vector<8x32xf32> to vector<8x8xf32>
    %222 = vector.extract_strided_slice %152 {offsets = [0, 24], sizes = [8, 8], strides = [1, 1]} : vector<8x32xf32> to vector<8x8xf32>
    %cst_88 = arith.constant dense<0.000000e+00> : vector<8x8xf32>
    %223 = tpu.matmul %220, %221, %cst_88 {dimension_numbers = #tpu.dot_dimension_numbers<[1], [1], [0], [0], [0, 0, 1, 0], [], []>} : vector<8x8xf32>, vector<8x8xf32>, vector<8x8xf32> -> vector<8x8xf32>
    %cst_89 = arith.constant 0.353553385 : f32
    %224 = vector.broadcast %cst_89 : f32 to vector<8x8xf32>
    %225 = arith.mulf %223, %224 : vector<8x8xf32>
    %cst_90 = arith.constant -1.000000e+06 : f32
    %226 = vector.broadcast %cst_90 : f32 to vector<8x8xf32>
    %227 = arith.select %14, %225, %226 : vector<8x8xi1>, vector<8x8xf32>
    %cst_91 = arith.constant dense<0xFF800000> : vector<8xf32>
    %228 = vector.multi_reduction <maximumf>, %227, %cst_91 [1] : vector<8x8xf32> to vector<8xf32>
    %229 = vector.shape_cast %228 : vector<8xf32> to vector<8x1xf32>
    %230 = vector.broadcast %229 : vector<8x1xf32> to vector<8x8xf32>
    %231 = arith.subf %227, %230 : vector<8x8xf32>
    %232 = math.exp %231 : vector<8x8xf32>
    %cst_92 = arith.constant dense<0.000000e+00> : vector<8xf32>
    %233 = vector.multi_reduction <add>, %232, %cst_92 [1] : vector<8x8xf32> to vector<8xf32>
    %234 = vector.shape_cast %233 : vector<8xf32> to vector<8x1xf32>
    %235 = tpu.reciprocal %234 {approx = true} : vector<8x1xf32> -> vector<8x1xf32>
    %236 = vector.broadcast %235 : vector<8x1xf32> to vector<8x8xf32>
    %237 = arith.mulf %232, %236 : vector<8x8xf32>
    %cst_93 = arith.constant dense<0.000000e+00> : vector<8x8xf32>
    %238 = tpu.matmul %237, %222, %cst_93 {dimension_numbers = #tpu.dot_dimension_numbers<[1], [0], [0], [1], [0, 0, 1, 1], [], []>} : vector<8x8xf32>, vector<8x8xf32>, vector<8x8xf32> -> vector<8x8xf32>
    %239 = vector.extract_strided_slice %142 {offsets = [24, 0], sizes = [8, 32], strides = [1, 1]} : vector<32x32xf32> to vector<8x32xf32>
    %cst_94 = arith.constant dense<0.000000e+00> : vector<8x32xf32>
    %240 = tpu.matmul %238, %239, %cst_94 {dimension_numbers = #tpu.dot_dimension_numbers<[1], [0], [0], [1], [0, 0, 1, 1], [], []>} : vector<8x8xf32>, vector<8x32xf32>, vector<8x32xf32> -> vector<8x32xf32>
    %241 = arith.addf %219, %240 : vector<8x32xf32>
    %242 = arith.addf %241, %138 : vector<8x32xf32>
    %cst_95 = arith.constant dense<0.000000e+00> : vector<8xf32>
    %243 = vector.multi_reduction <add>, %242, %cst_95 [1] : vector<8x32xf32> to vector<8xf32>
    %244 = vector.shape_cast %243 : vector<8xf32> to vector<8x1xf32>
    %cst_96 = arith.constant 3.200000e+01 : f32
    %245 = vector.broadcast %cst_96 : f32 to vector<8x1xf32>
    %246 = arith.divf %244, %245 : vector<8x1xf32>
    %247 = vector.broadcast %246 : vector<8x1xf32> to vector<8x32xf32>
    %248 = arith.subf %242, %247 : vector<8x32xf32>
    %249 = arith.mulf %248, %248 : vector<8x32xf32>
    %cst_97 = arith.constant dense<0.000000e+00> : vector<8xf32>
    %250 = vector.multi_reduction <add>, %249, %cst_97 [1] : vector<8x32xf32> to vector<8xf32>
    %251 = vector.shape_cast %250 : vector<8xf32> to vector<8x1xf32>
    %cst_98 = arith.constant 3.200000e+01 : f32
    %252 = vector.broadcast %cst_98 : f32 to vector<8x1xf32>
    %253 = arith.divf %251, %252 : vector<8x1xf32>
    %254 = vector.broadcast %246 : vector<8x1xf32> to vector<8x32xf32>
    %255 = arith.subf %242, %254 : vector<8x32xf32>
    %cst_99 = arith.constant 9.99999974E-6 : f32
    %256 = vector.broadcast %cst_99 : f32 to vector<8x1xf32>
    %257 = arith.addf %253, %256 : vector<8x1xf32>
    %258 = math.rsqrt %257 : vector<8x1xf32>
    %259 = vector.broadcast %258 : vector<8x1xf32> to vector<8x32xf32>
    %260 = arith.mulf %255, %259 : vector<8x32xf32>
    %261 = vector.broadcast %144 : vector<1x32xf32> to vector<8x32xf32>
    %262 = arith.mulf %260, %261 : vector<8x32xf32>
    %263 = vector.broadcast %146 : vector<1x32xf32> to vector<8x32xf32>
    %264 = arith.addf %262, %263 : vector<8x32xf32>
    %c0_100 = arith.constant 0 : index
    %c0_101 = arith.constant 0 : index
    %c0_102 = arith.constant 0 : index
    %265 = vector.load %arg13[%c0_100, %c0_101, %c0_102] : memref<1x32x64xf32, #tpu.memory_space<vmem>>, vector<1x32x64xf32>
    %266 = vector.shape_cast %265 : vector<1x32x64xf32> to vector<32x64xf32>
    %cst_103 = arith.constant dense<0.000000e+00> : vector<8x64xf32>
    %267 = tpu.matmul %264, %266, %cst_103 {dimension_numbers = #tpu.dot_dimension_numbers<[1], [0], [0], [1], [0, 0, 1, 1], [], []>} : vector<8x32xf32>, vector<32x64xf32>, vector<8x64xf32> -> vector<8x64xf32>
    %c0_104 = arith.constant 0 : index
    %c0_105 = arith.constant 0 : index
    %c0_106 = arith.constant 0 : index
    %268 = vector.load %arg14[%c0_104, %c0_105, %c0_106] : memref<1x1x64xf32, #tpu.memory_space<vmem>>, vector<1x1x64xf32>
    %269 = vector.shape_cast %268 : vector<1x1x64xf32> to vector<1x64xf32>
    %270 = vector.broadcast %269 : vector<1x64xf32> to vector<8x64xf32>
    %271 = arith.addf %267, %270 : vector<8x64xf32>
    %cst_107 = arith.constant 0.000000e+00 : f32
    %272 = vector.broadcast %cst_107 : f32 to vector<8x64xf32>
    %273 = arith.maximumf %271, %272 : vector<8x64xf32>
    %c0_108 = arith.constant 0 : index
    %c0_109 = arith.constant 0 : index
    %c0_110 = arith.constant 0 : index
    %274 = vector.load %arg15[%c0_108, %c0_109, %c0_110] : memref<1x64x32xf32, #tpu.memory_space<vmem>>, vector<1x64x32xf32>
    %275 = vector.shape_cast %274 : vector<1x64x32xf32> to vector<64x32xf32>
    %cst_111 = arith.constant dense<0.000000e+00> : vector<8x32xf32>
    %276 = tpu.matmul %273, %275, %cst_111 {dimension_numbers = #tpu.dot_dimension_numbers<[1], [0], [0], [1], [0, 0, 1, 1], [], []>} : vector<8x64xf32>, vector<64x32xf32>, vector<8x32xf32> -> vector<8x32xf32>
    %c0_112 = arith.constant 0 : index
    %c0_113 = arith.constant 0 : index
    %c0_114 = arith.constant 0 : index
    %277 = vector.load %arg16[%c0_112, %c0_113, %c0_114] : memref<1x1x32xf32, #tpu.memory_space<vmem>>, vector<1x1x32xf32>
    %278 = vector.shape_cast %277 : vector<1x1x32xf32> to vector<1x32xf32>
    %279 = vector.broadcast %278 : vector<1x32xf32> to vector<8x32xf32>
    %280 = arith.addf %276, %279 : vector<8x32xf32>
    %281 = arith.addf %280, %264 : vector<8x32xf32>
    %c0_115 = arith.constant 0 : index
    %c0_116 = arith.constant 0 : index
    %c0_117 = arith.constant 0 : index
    %282 = vector.load %arg17[%c0_115, %c0_116, %c0_117] : memref<1x1x32xf32, #tpu.memory_space<vmem>>, vector<1x1x32xf32>
    %283 = vector.shape_cast %282 : vector<1x1x32xf32> to vector<1x32xf32>
    %c0_118 = arith.constant 0 : index
    %c0_119 = arith.constant 0 : index
    %c0_120 = arith.constant 0 : index
    %284 = vector.load %arg18[%c0_118, %c0_119, %c0_120] : memref<1x1x32xf32, #tpu.memory_space<vmem>>, vector<1x1x32xf32>
    %285 = vector.shape_cast %284 : vector<1x1x32xf32> to vector<1x32xf32>
    %cst_121 = arith.constant dense<0.000000e+00> : vector<8xf32>
    %286 = vector.multi_reduction <add>, %281, %cst_121 [1] : vector<8x32xf32> to vector<8xf32>
    %287 = vector.shape_cast %286 : vector<8xf32> to vector<8x1xf32>
    %cst_122 = arith.constant 3.200000e+01 : f32
    %288 = vector.broadcast %cst_122 : f32 to vector<8x1xf32>
    %289 = arith.divf %287, %288 : vector<8x1xf32>
    %290 = vector.broadcast %289 : vector<8x1xf32> to vector<8x32xf32>
    %291 = arith.subf %281, %290 : vector<8x32xf32>
    %292 = arith.mulf %291, %291 : vector<8x32xf32>
    %cst_123 = arith.constant dense<0.000000e+00> : vector<8xf32>
    %293 = vector.multi_reduction <add>, %292, %cst_123 [1] : vector<8x32xf32> to vector<8xf32>
    %294 = vector.shape_cast %293 : vector<8xf32> to vector<8x1xf32>
    %cst_124 = arith.constant 3.200000e+01 : f32
    %295 = vector.broadcast %cst_124 : f32 to vector<8x1xf32>
    %296 = arith.divf %294, %295 : vector<8x1xf32>
    %297 = vector.broadcast %289 : vector<8x1xf32> to vector<8x32xf32>
    %298 = arith.subf %281, %297 : vector<8x32xf32>
    %cst_125 = arith.constant 9.99999974E-6 : f32
    %299 = vector.broadcast %cst_125 : f32 to vector<8x1xf32>
    %300 = arith.addf %296, %299 : vector<8x1xf32>
    %301 = math.rsqrt %300 : vector<8x1xf32>
    %302 = vector.broadcast %301 : vector<8x1xf32> to vector<8x32xf32>
    %303 = arith.mulf %298, %302 : vector<8x32xf32>
    %304 = vector.broadcast %283 : vector<1x32xf32> to vector<8x32xf32>
    %305 = arith.mulf %303, %304 : vector<8x32xf32>
    %306 = vector.broadcast %285 : vector<1x32xf32> to vector<8x32xf32>
    %307 = arith.addf %305, %306 : vector<8x32xf32>
    %c0_126 = arith.constant 0 : index
    %c0_127 = arith.constant 0 : index
    %c0_128 = arith.constant 0 : index
    %308 = vector.load %arg19[%c0_126, %c0_127, %c0_128] : memref<1x8x32xf32, #tpu.memory_space<vmem>>, vector<1x8x32xf32>
    %309 = vector.shape_cast %308 : vector<1x8x32xf32> to vector<8x32xf32>
    %310 = vector.shape_cast %307 : vector<8x32xf32> to vector<1x8x32xf32>
    tpu.vector_store %arg19[%c0_126, %c0_127, %c0_128], %310 {strides = array<i32>} : memref<1x8x32xf32, #tpu.memory_space<vmem>>, vector<1x8x32xf32>,
    return
  }
  func.func @transform_0(%arg0: i32, %arg1: i32, %arg2: memref<2xi32, #tpu.memory_space<smem>>) -> (i32, i32, i32) {
    %c0_i32 = arith.constant 0 : i32
    %c0_i32_0 = arith.constant 0 : i32
    %c0_i32_1 = arith.constant 0 : i32
    return %arg0, %c0_i32, %c0_i32_0 : i32, i32, i32
  }
  func.func @transform_1(%arg0: i32, %arg1: i32, %arg2: memref<2xi32, #tpu.memory_space<smem>>) -> (i32, i32, i32) {
    %c0_i32 = arith.constant 0 : i32
    %c0_i32_0 = arith.constant 0 : i32
    %c0_i32_1 = arith.constant 0 : i32
    return %arg0, %c0_i32, %c0_i32_0 : i32, i32, i32
  }
  func.func @transform_2(%arg0: i32, %arg1: i32, %arg2: memref<2xi32, #tpu.memory_space<smem>>) -> (i32, i32, i32) {
    %c0_i32 = arith.constant 0 : i32
    %c0_i32_0 = arith.constant 0 : i32
    %c0_i32_1 = arith.constant 0 : i32
    return %arg1, %c0_i32, %c0_i32_0 : i32, i32, i32
  }
  func.func @transform_3(%arg0: i32, %arg1: i32, %arg2: memref<2xi32, #tpu.memory_space<smem>>) -> (i32, i32, i32) {
    %c0_i32 = arith.constant 0 : i32
    %c0_i32_0 = arith.constant 0 : i32
    %c0_i32_1 = arith.constant 0 : i32
    return %arg1, %c0_i32, %c0_i32_0 : i32, i32, i32
  }
  func.func @transform_4(%arg0: i32, %arg1: i32, %arg2: memref<2xi32, #tpu.memory_space<smem>>) -> (i32, i32, i32) {
    %c0_i32 = arith.constant 0 : i32
    %c0_i32_0 = arith.constant 0 : i32
    %c0_i32_1 = arith.constant 0 : i32
    return %arg1, %c0_i32, %c0_i32_0 : i32, i32, i32
  }
  func.func @transform_5(%arg0: i32, %arg1: i32, %arg2: memref<2xi32, #tpu.memory_space<smem>>) -> (i32, i32, i32) {
    %c0_i32 = arith.constant 0 : i32
    %c0_i32_0 = arith.constant 0 : i32
    %c0_i32_1 = arith.constant 0 : i32
    return %arg1, %c0_i32, %c0_i32_0 : i32, i32, i32
  }
  func.func @transform_6(%arg0: i32, %arg1: i32, %arg2: memref<2xi32, #tpu.memory_space<smem>>) -> (i32, i32, i32) {
    %c0_i32 = arith.constant 0 : i32
    %c0_i32_0 = arith.constant 0 : i32
    %c0_i32_1 = arith.constant 0 : i32
    return %arg1, %c0_i32, %c0_i32_0 : i32, i32, i32
  }
  func.func @transform_7(%arg0: i32, %arg1: i32, %arg2: memref<2xi32, #tpu.memory_space<smem>>) -> (i32, i32, i32) {
    %c0_i32 = arith.constant 0 : i32
    %c0_i32_0 = arith.constant 0 : i32
    %c0_i32_1 = arith.constant 0 : i32
    return %arg1, %c0_i32, %c0_i32_0 : i32, i32, i32
  }
  func.func @transform_8(%arg0: i32, %arg1: i32, %arg2: memref<2xi32, #tpu.memory_space<smem>>) -> (i32, i32, i32) {
    %c0_i32 = arith.constant 0 : i32
    %c0_i32_0 = arith.constant 0 : i32
    %c0_i32_1 = arith.constant 0 : i32
    return %arg1, %c0_i32, %c0_i32_0 : i32, i32, i32
  }
  func.func @transform_9(%arg0: i32, %arg1: i32, %arg2: memref<2xi32, #tpu.memory_space<smem>>) -> (i32, i32, i32) {
    %c0_i32 = arith.constant 0 : i32
    %c0_i32_0 = arith.constant 0 : i32
    %c0_i32_1 = arith.constant 0 : i32
    return %arg1, %c0_i32, %c0_i32_0 : i32, i32, i32
  }
  func.func @transform_10(%arg0: i32, %arg1: i32, %arg2: memref<2xi32, #tpu.memory_space<smem>>) -> (i32, i32, i32) {
    %c0_i32 = arith.constant 0 : i32
    %c0_i32_0 = arith.constant 0 : i32
    %c0_i32_1 = arith.constant 0 : i32
    return %arg1, %c0_i32, %c0_i32_0 : i32, i32, i32
  }
  func.func @transform_11(%arg0: i32, %arg1: i32, %arg2: memref<2xi32, #tpu.memory_space<smem>>) -> (i32, i32, i32) {
    %c0_i32 = arith.constant 0 : i32
    %c0_i32_0 = arith.constant 0 : i32
    %c0_i32_1 = arith.constant 0 : i32
    return %arg1, %c0_i32, %c0_i32_0 : i32, i32, i32
  }
  func.func @transform_12(%arg0: i32, %arg1: i32, %arg2: memref<2xi32, #tpu.memory_space<smem>>) -> (i32, i32, i32) {
    %c0_i32 = arith.constant 0 : i32
    %c0_i32_0 = arith.constant 0 : i32
    %c0_i32_1 = arith.constant 0 : i32
    return %arg1, %c0_i32, %c0_i32_0 : i32, i32, i32
  }
  func.func @transform_13(%arg0: i32, %arg1: i32, %arg2: memref<2xi32, #tpu.memory_space<smem>>) -> (i32, i32, i32) {
    %c0_i32 = arith.constant 0 : i32
    %c0_i32_0 = arith.constant 0 : i32
    %c0_i32_1 = arith.constant 0 : i32
    return %arg1, %c0_i32, %c0_i32_0 : i32, i32, i32
  }
  func.func @transform_14(%arg0: i32, %arg1: i32, %arg2: memref<2xi32, #tpu.memory_space<smem>>) -> (i32, i32, i32) {
    %c0_i32 = arith.constant 0 : i32
    %c0_i32_0 = arith.constant 0 : i32
    %c0_i32_1 = arith.constant 0 : i32
    return %arg1, %c0_i32, %c0_i32_0 : i32, i32, i32
  }
  func.func @transform_15(%arg0: i32, %arg1: i32, %arg2: memref<2xi32, #tpu.memory_space<smem>>) -> (i32, i32, i32) {
    %c0_i32 = arith.constant 0 : i32
    %c0_i32_0 = arith.constant 0 : i32
    %c0_i32_1 = arith.constant 0 : i32
    return %arg1, %c0_i32, %c0_i32_0 : i32, i32, i32
  }
  func.func @transform_16(%arg0: i32, %arg1: i32, %arg2: memref<2xi32, #tpu.memory_space<smem>>) -> (i32, i32, i32) {
    %c0_i32 = arith.constant 0 : i32
    %c0_i32_0 = arith.constant 0 : i32
    %c0_i32_1 = arith.constant 0 : i32
    return %arg0, %c0_i32, %c0_i32_0 : i32, i32, i32
  }
}

</mosaic_0001>

<llo_original>
// kernel: tpu_custom_call.1
$region0: #{tpu_custom_call.1}
  #allocation0 [shape = 'u32[]', space=smem, size = 0x4, offset = 0x4, fixed_abs, tag = 'smem constant byte address 0x4 - core index']
  #allocation1 [shape = 'u32[144,128]{1,0:T(1,128)}', space=vmem, size = 0x12000, scoped, tag = 'internal scratch']
  #allocation2 [shape = 's32[1]{0}', space=sflag, size = 0x4, scoped, tag = 'scoped memory for tpu_custom_call.1']
  #allocation3 [shape = 'u8[512]{0}', space=smem, size = 0x200, scoped, tag = 'prefetched SMEM operand 0']
  %s0 = inlined_call_operand.hbm [shape: s32[2], index: 0, kind: input, shape index: {}]
  %s1 = inlined_call_operand.hbm [shape: f32[2,8,32], index: 1, kind: input, shape index: {}]
  %s2 = inlined_call_operand.hbm [shape: f32[2,8,32], index: 2, kind: input, shape index: {}]
  %s3 = inlined_call_operand.vmem [shape: f32[2,32,96], index: 3, kind: input, shape index: {}]
  %s4 = inlined_call_operand.vmem [shape: f32[2,32,32], index: 4, kind: input, shape index: {}]
  %s5 = inlined_call_operand.vmem [shape: f32[2,1,32], index: 5, kind: input, shape index: {}]
  %s6 = inlined_call_operand.vmem [shape: f32[2,1,32], index: 6, kind: input, shape index: {}]
  %s7 = inlined_call_operand.vmem [shape: f32[2,32,96], index: 7, kind: input, shape index: {}]
  %s8 = inlined_call_operand.hbm [shape: f32[2,32,32], index: 8, kind: input, shape index: {}]
  %s9 = inlined_call_operand.vmem [shape: f32[2,1,32], index: 9, kind: input, shape index: {}]
  %s10 = inlined_call_operand.vmem [shape: f32[2,1,32], index: 10, kind: input, shape index: {}]
  %s11 = inlined_call_operand.hbm [shape: f32[2,32,64], index: 11, kind: input, shape index: {}]
  %s12 = inlined_call_operand.vmem [shape: f32[2,1,64], index: 12, kind: input, shape index: {}]
  %s13 = inlined_call_operand.vmem [shape: f32[2,64,32], index: 13, kind: input, shape index: {}]
  %s14 = inlined_call_operand.vmem [shape: f32[2,1,32], index: 14, kind: input, shape index: {}]
  %s15 = inlined_call_operand.vmem [shape: f32[2,1,32], index: 15, kind: input, shape index: {}]
  %s16 = inlined_call_operand.vmem [shape: f32[2,1,32], index: 16, kind: input, shape index: {}]
  %s17 = inlined_call_operand.hbm [shape: f32[2,8,32], index: 17, kind: output, shape index: {}]
  %s18 = sld [smem:[#allocation0]]
  $region117: #{tpu_custom_call.1} parent=0
    _
  %s20 = ssub.s32 1, %s18
  %s21 = scalar_select 0, %s20, %s18
  %23 = dma.hbm_to_smem %s0, 16, [#allocation3], [#allocation2]
  %24 = dma.done [#allocation2], 16
  %25 = sfence
  $region1: #{tpu_custom_call.1} parent=0
    #allocation4 [shape = 'u8[8192]{0}', space=vmem, size = 0x2000, scoped, tag = 'input window, operand 1']
    #allocation5 [shape = 's32[2]{0}', space=sflag, size = 0x8, scoped, tag = 'scoped memory for tpu_custom_call.1']
    #allocation6 [shape = 's32[2]{0}', space=sflag, size = 0x8, scoped, tag = 'scoped memory for tpu_custom_call.1']
    #allocation7 [shape = 'u8[8192]{0}', space=vmem, size = 0x2000, scoped, tag = 'input window, operand 2']
    #allocation8 [shape = 's32[2]{0}', space=sflag, size = 0x8, scoped, tag = 'scoped memory for tpu_custom_call.1']
    #allocation9 [shape = 'u8[32768]{0}', space=vmem, size = 0x8000, scoped, tag = 'input window, operand 8']
    #allocation10 [shape = 'u8[32768]{0}', space=vmem, size = 0x8000, scoped, tag = 'input window, operand 11']
    #allocation11 [shape = 's32[2]{0}', space=sflag, size = 0x8, scoped, tag = 'scoped memory for tpu_custom_call.1']
    #allocation12 [shape = 'u8[8192]{0}', space=vmem, size = 0x2000, scoped, tag = 'output window, operand 0']
    %26 = vsyncpa [#allocation5], 0
    %s27 = scalar_lea.sflag [#allocation5], 1
    %28 = vsyncpa %s27, 0
    %29 = vsyncpa [#allocation8], 0
    %s30 = scalar_lea.sflag [#allocation8], 1
    %31 = vsyncpa %s30, 0
    %32 = vsyncpa [#allocation11], 0
    %s33 = scalar_lea.sflag [#allocation11], 1
    %34 = vsyncpa %s33, 0
    %35 = vsyncpa [#allocation6], 0
    %s36 = scalar_lea.sflag [#allocation6], 1
    %37 = vsyncpa %s36, 0
    loop: start=0, step=1, limit=6
    $region2: #{tpu_custom_call.1} parent=1 // loop_pre_header
      _
    $region3: #{tpu_custom_call.1} parent=1 // loop_header
      %s39 = sphi 0, %s43
      %p40 = scmp.ge.s32.totalorder %s39, 6
      %s46 = sphi 0, %s58
      %s47 = sphi 0, %s54
      %s48 = sphi 0, %s46
      %s49 = sphi 0, %s47
      %s50 = sphi 0, %s48
      %s51 = sphi 0, %s49
      %s61 = sphi 0, %s63
      %s64 = sphi 0, %s61
      %s65 = sphi 0, %s64
      %s81 = sphi 0, %s65
      %s87 = sphi 0, %s89
      %s90 = sphi 0, %s87
      %s91 = sphi 0, %s90
      %s107 = sphi 0, %s91
      %s113 = sphi 0, %s115
      %s116 = sphi 0, %s113
      %s117 = sphi 0, %s116
      %s133 = sphi 0, %s117
      %s139 = sphi 0, %s141
      %s142 = sphi 0, %s139
      %s143 = sphi 0, %s142
      %s159 = sphi 0, %s143
      %s165 = sphi 0, %s167
      %s168 = sphi 0, %s165
      %s169 = sphi 0, %s168
      %s185 = sphi 0, %s169
      %s191 = sphi 0, %s193
      %s194 = sphi 0, %s191
      %s195 = sphi 0, %s194
      %s211 = sphi 0, %s195
      %s217 = sphi 0, %s219
      %s220 = sphi 0, %s217
      %s221 = sphi 0, %s220
      %s237 = sphi 0, %s221
      %s243 = sphi 0, %s245
      %s246 = sphi 0, %s243
      %s247 = sphi 0, %s246
      %s263 = sphi 0, %s247
      %s269 = sphi 0, %s271
      %s272 = sphi 0, %s269
      %s273 = sphi 0, %s272
      %s289 = sphi 0, %s273
      %s295 = sphi 0, %s297
      %s298 = sphi 0, %s295
      %s299 = sphi 0, %s298
      %s315 = sphi 0, %s299
      %s321 = sphi 0, %s323
      %s324 = sphi 0, %s321
      %s325 = sphi 0, %s324
      %s341 = sphi 0, %s325
      %s347 = sphi 0, %s349
      %s350 = sphi 0, %s347
      %s351 = sphi 0, %s350
      %s367 = sphi 0, %s351
      %s373 = sphi 0, %s375
      %s376 = sphi 0, %s373
      %s377 = sphi 0, %s376
      %s393 = sphi 0, %s377
      %s399 = sphi 0, %s401
      %s402 = sphi 0, %s399
      %s403 = sphi 0, %s402
      %s419 = sphi 0, %s403
      %s425 = sphi 0, %s427
      %s428 = sphi 0, %s425
      %s429 = sphi 0, %s428
      %s445 = sphi 0, %s429
      %s451 = sphi 0, %s453
      %s454 = sphi 0, %s451
      %s455 = sphi 0, %s454
      %s471 = sphi 0, %s455
      %s477 = sphi 0, %s479
      %s480 = sphi 0, %s477
      %s481 = sphi 0, %s480
      %s497 = sphi 0, %s481
    $region4: #{tpu_custom_call.1} parent=1 // loop_header_branch
      %42 = sbr.rel (%p40) target = $region8
    $region5: #{tpu_custom_call.1} parent=1 // loop_body
      %s44 = ssub.s32 %s39, 1
      %s45 = ssub.s32 %s39, 2
      %s52 = sadd.s32 1, %s47
      %p53 = scmp.ge.s32.totalorder %s52, 2
      %s54 = scalar_select %p53, 0, %s52
      %s55 = sadd.s32 1, %s46
      %s56 = scalar_select %p53, %s55, %s46
      %p57 = scmp.ge.s32.totalorder %s56, 2
      %s58 = scalar_select %p57, 0, %s56
      %s59 = ssub.s32 %s46, %s58
      %p60 = scmp.eq.s32.totalorder %s59, 0
      %s62 = sadd.s32 %s61, 1
      %s63 = scalar_select %p60, %s61, %s62
      %p66 = pneg %p60
      %p67 = scmp.eq.s32.totalorder %s39, 3
      %p68 = por %p66, %p67
      %p69 = scmp.ne.s32.totalorder %s61, %s64
      %p70 = scmp.eq.s32.totalorder %s39, 0
      %p71 = por %p69, %p70
      %p72 = scmp.ne.s32.totalorder %s61, %s64
      %p73 = scmp.eq.s32.totalorder %s44, 3
      %p74 = por %p72, %p73
      %p75 = scmp.ne.s32.totalorder %s64, %s65
      %p76 = scmp.eq.s32.totalorder %s44, 0
      %p77 = por %p75, %p76
      %p78 = scmp.ne.s32.totalorder %s64, %s65
      %p79 = scmp.eq.s32.totalorder %s45, 3
      %p80 = por %p78, %p79
      %p82 = scmp.ne.s32.totalorder %s65, %s81
      %p83 = scmp.eq.s32.totalorder %s45, 0
      %p84 = por %p82, %p83
      %s85 = ssub.s32 %s46, %s58
      %p86 = scmp.eq.s32.totalorder %s85, 0
      %s88 = sadd.s32 %s87, 1
      %s89 = scalar_select %p86, %s87, %s88
      %p92 = pneg %p86
      %p93 = scmp.eq.s32.totalorder %s39, 3
      %p94 = por %p92, %p93
      %p95 = scmp.ne.s32.totalorder %s87, %s90
      %p96 = scmp.eq.s32.totalorder %s39, 0
      %p97 = por %p95, %p96
      %p98 = scmp.ne.s32.totalorder %s87, %s90
      %p99 = scmp.eq.s32.totalorder %s44, 3
      %p100 = por %p98, %p99
      %p101 = scmp.ne.s32.totalorder %s90, %s91
      %p102 = scmp.eq.s32.totalorder %s44, 0
      %p103 = por %p101, %p102
      %p104 = scmp.ne.s32.totalorder %s90, %s91
      %p105 = scmp.eq.s32.totalorder %s45, 3
      %p106 = por %p104, %p105
      %p108 = scmp.ne.s32.totalorder %s91, %s107
      %p109 = scmp.eq.s32.totalorder %s45, 0
      %p110 = por %p108, %p109
      %s111 = ssub.s32 %s47, %s54
      %p112 = scmp.eq.s32.totalorder %s111, 0
      %s114 = sadd.s32 %s113, 1
      %s115 = scalar_select %p112, %s113, %s114
      %p118 = pneg %p112
      %p119 = scmp.eq.s32.totalorder %s39, 3
      %p120 = por %p118, %p119
      %p121 = scmp.ne.s32.totalorder %s113, %s116
      %p122 = scmp.eq.s32.totalorder %s39, 0
      %p123 = por %p121, %p122
      %p124 = scmp.ne.s32.totalorder %s113, %s116
      %p125 = scmp.eq.s32.totalorder %s44, 3
      %p126 = por %p124, %p125
      %p127 = scmp.ne.s32.totalorder %s116, %s117
      %p128 = scmp.eq.s32.totalorder %s44, 0
      %p129 = por %p127, %p128
      %p130 = scmp.ne.s32.totalorder %s116, %s117
      %p131 = scmp.eq.s32.totalorder %s45, 3
      %p132 = por %p130, %p131
      %p134 = scmp.ne.s32.totalorder %s117, %s133
      %p135 = scmp.eq.s32.totalorder %s45, 0
      %p136 = por %p134, %p135
      %s137 = ssub.s32 %s47, %s54
      %p138 = scmp.eq.s32.totalorder %s137, 0
      %s140 = sadd.s32 %s139, 1
      %s141 = scalar_select %p138, %s139, %s140
      %p144 = pneg %p138
      %p145 = scmp.eq.s32.totalorder %s39, 3
      %p146 = por %p144, %p145
      %p147 = scmp.ne.s32.totalorder %s139, %s142
      %p148 = scmp.eq.s32.totalorder %s39, 0
      %p149 = por %p147, %p148
      %p150 = scmp.ne.s32.totalorder %s139, %s142
      %p151 = scmp.eq.s32.totalorder %s44, 3
      %p152 = por %p150, %p151
      %p153 = scmp.ne.s32.totalorder %s142, %s143
      %p154 = scmp.eq.s32.totalorder %s44, 0
      %p155 = por %p153, %p154
      %p156 = scmp.ne.s32.totalorder %s142, %s143
      %p157 = scmp.eq.s32.totalorder %s45, 3
      %p158 = por %p156, %p157
      %p160 = scmp.ne.s32.totalorder %s143, %s159
      %p161 = scmp.eq.s32.totalorder %s45, 0
      %p162 = por %p160, %p161
      %s163 = ssub.s32 %s47, %s54
      %p164 = scmp.eq.s32.totalorder %s163, 0
      %s166 = sadd.s32 %s165, 1
      %s167 = scalar_select %p164, %s165, %s166
      %p170 = pneg %p164
      %p171 = scmp.eq.s32.totalorder %s39, 3
      %p172 = por %p170, %p171
      %p173 = scmp.ne.s32.totalorder %s165, %s168
      %p174 = scmp.eq.s32.totalorder %s39, 0
      %p175 = por %p173, %p174
      %p176 = scmp.ne.s32.totalorder %s165, %s168
      %p177 = scmp.eq.s32.totalorder %s44, 3
      %p178 = por %p176, %p177
      %p179 = scmp.ne.s32.totalorder %s168, %s169
      %p180 = scmp.eq.s32.totalorder %s44, 0
      %p181 = por %p179, %p180
      %p182 = scmp.ne.s32.totalorder %s168, %s169
      %p183 = scmp.eq.s32.totalorder %s45, 3
      %p184 = por %p182, %p183
      %p186 = scmp.ne.s32.totalorder %s169, %s185
      %p187 = scmp.eq.s32.totalorder %s45, 0
      %p188 = por %p186, %p187
      %s189 = ssub.s32 %s47, %s54
      %p190 = scmp.eq.s32.totalorder %s189, 0
      %s192 = sadd.s32 %s191, 1
      %s193 = scalar_select %p190, %s191, %s192
      %p196 = pneg %p190
      %p197 = scmp.eq.s32.totalorder %s39, 3
      %p198 = por %p196, %p197
      %p199 = scmp.ne.s32.totalorder %s191, %s194
      %p200 = scmp.eq.s32.totalorder %s39, 0
      %p201 = por %p199, %p200
      %p202 = scmp.ne.s32.totalorder %s191, %s194
      %p203 = scmp.eq.s32.totalorder %s44, 3
      %p204 = por %p202, %p203
      %p205 = scmp.ne.s32.totalorder %s194, %s195
      %p206 = scmp.eq.s32.totalorder %s44, 0
      %p207 = por %p205, %p206
      %p208 = scmp.ne.s32.totalorder %s194, %s195
      %p209 = scmp.eq.s32.totalorder %s45, 3
      %p210 = por %p208, %p209
      %p212 = scmp.ne.s32.totalorder %s195, %s211
      %p213 = scmp.eq.s32.totalorder %s45, 0
      %p214 = por %p212, %p213
      %s215 = ssub.s32 %s47, %s54
      %p216 = scmp.eq.s32.totalorder %s215, 0
      %s218 = sadd.s32 %s217, 1
      %s219 = scalar_select %p216, %s217, %s218
      %p222 = pneg %p216
      %p223 = scmp.eq.s32.totalorder %s39, 3
      %p224 = por %p222, %p223
      %p225 = scmp.ne.s32.totalorder %s217, %s220
      %p226 = scmp.eq.s32.totalorder %s39, 0
      %p227 = por %p225, %p226
      %p228 = scmp.ne.s32.totalorder %s217, %s220
      %p229 = scmp.eq.s32.totalorder %s44, 3
      %p230 = por %p228, %p229
      %p231 = scmp.ne.s32.totalorder %s220, %s221
      %p232 = scmp.eq.s32.totalorder %s44, 0
      %p233 = por %p231, %p232
      %p234 = scmp.ne.s32.totalorder %s220, %s221
      %p235 = scmp.eq.s32.totalorder %s45, 3
      %p236 = por %p234, %p235
      %p238 = scmp.ne.s32.totalorder %s221, %s237
      %p239 = scmp.eq.s32.totalorder %s45, 0
      %p240 = por %p238, %p239
      %s241 = ssub.s32 %s47, %s54
      %p242 = scmp.eq.s32.totalorder %s241, 0
      %s244 = sadd.s32 %s243, 1
      %s245 = scalar_select %p242, %s243, %s244
      %p248 = pneg %p242
      %p249 = scmp.eq.s32.totalorder %s39, 3
      %p250 = por %p248, %p249
      %p251 = scmp.ne.s32.totalorder %s243, %s246
      %p252 = scmp.eq.s32.totalorder %s39, 0
      %p253 = por %p251, %p252
      %p254 = scmp.ne.s32.totalorder %s243, %s246
      %p255 = scmp.eq.s32.totalorder %s44, 3
      %p256 = por %p254, %p255
      %p257 = scmp.ne.s32.totalorder %s246, %s247
      %p258 = scmp.eq.s32.totalorder %s44, 0
      %p259 = por %p257, %p258
      %p260 = scmp.ne.s32.totalorder %s246, %s247
      %p261 = scmp.eq.s32.totalorder %s45, 3
      %p262 = por %p260, %p261
      %p264 = scmp.ne.s32.totalorder %s247, %s263
      %p265 = scmp.eq.s32.totalorder %s45, 0
      %p266 = por %p264, %p265
      %s267 = ssub.s32 %s47, %s54
      %p268 = scmp.eq.s32.totalorder %s267, 0
      %s270 = sadd.s32 %s269, 1
      %s271 = scalar_select %p268, %s269, %s270
      %p274 = pneg %p268
      %p275 = scmp.eq.s32.totalorder %s39, 3
      %p276 = por %p274, %p275
      %p277 = scmp.ne.s32.totalorder %s269, %s272
      %p278 = scmp.eq.s32.totalorder %s39, 0
      %p279 = por %p277, %p278
      %p280 = scmp.ne.s32.totalorder %s269, %s272
      %p281 = scmp.eq.s32.totalorder %s44, 3
      %p282 = por %p280, %p281
      %p283 = scmp.ne.s32.totalorder %s272, %s273
      %p284 = scmp.eq.s32.totalorder %s44, 0
      %p285 = por %p283, %p284
      %p286 = scmp.ne.s32.totalorder %s272, %s273
      %p287 = scmp.eq.s32.totalorder %s45, 3
      %p288 = por %p286, %p287
      %p290 = scmp.ne.s32.totalorder %s273, %s289
      %p291 = scmp.eq.s32.totalorder %s45, 0
      %p292 = por %p290, %p291
      %s293 = ssub.s32 %s47, %s54
      %p294 = scmp.eq.s32.totalorder %s293, 0
      %s296 = sadd.s32 %s295, 1
      %s297 = scalar_select %p294, %s295, %s296
      %p300 = pneg %p294
      %p301 = scmp.eq.s32.totalorder %s39, 3
      %p302 = por %p300, %p301
      %p303 = scmp.ne.s32.totalorder %s295, %s298
      %p304 = scmp.eq.s32.totalorder %s39, 0
      %p305 = por %p303, %p304
      %p306 = scmp.ne.s32.totalorder %s295, %s298
      %p307 = scmp.eq.s32.totalorder %s44, 3
      %p308 = por %p306, %p307
      %p309 = scmp.ne.s32.totalorder %s298, %s299
      %p310 = scmp.eq.s32.totalorder %s44, 0
      %p311 = por %p309, %p310
      %p312 = scmp.ne.s32.totalorder %s298, %s299
      %p313 = scmp.eq.s32.totalorder %s45, 3
      %p314 = por %p312, %p313
      %p316 = scmp.ne.s32.totalorder %s299, %s315
      %p317 = scmp.eq.s32.totalorder %s45, 0
      %p318 = por %p316, %p317
      %s319 = ssub.s32 %s47, %s54
      %p320 = scmp.eq.s32.totalorder %s319, 0
      %s322 = sadd.s32 %s321, 1
      %s323 = scalar_select %p320, %s321, %s322
      %p326 = pneg %p320
      %p327 = scmp.eq.s32.totalorder %s39, 3
      %p328 = por %p326, %p327
      %p329 = scmp.ne.s32.totalorder %s321, %s324
      %p330 = scmp.eq.s32.totalorder %s39, 0
      %p331 = por %p329, %p330
      %p332 = scmp.ne.s32.totalorder %s321, %s324
      %p333 = scmp.eq.s32.totalorder %s44, 3
      %p334 = por %p332, %p333
      %p335 = scmp.ne.s32.totalorder %s324, %s325
      %p336 = scmp.eq.s32.totalorder %s44, 0
      %p337 = por %p335, %p336
      %p338 = scmp.ne.s32.totalorder %s324, %s325
      %p339 = scmp.eq.s32.totalorder %s45, 3
      %p340 = por %p338, %p339
      %p342 = scmp.ne.s32.totalorder %s325, %s341
      %p343 = scmp.eq.s32.totalorder %s45, 0
      %p344 = por %p342, %p343
      %s345 = ssub.s32 %s47, %s54
      %p346 = scmp.eq.s32.totalorder %s345, 0
      %s348 = sadd.s32 %s347, 1
      %s349 = scalar_select %p346, %s347, %s348
      %p352 = pneg %p346
      %p353 = scmp.eq.s32.totalorder %s39, 3
      %p354 = por %p352, %p353
      %p355 = scmp.ne.s32.totalorder %s347, %s350
      %p356 = scmp.eq.s32.totalorder %s39, 0
      %p357 = por %p355, %p356
      %p358 = scmp.ne.s32.totalorder %s347, %s350
      %p359 = scmp.eq.s32.totalorder %s44, 3
      %p360 = por %p358, %p359
      %p361 = scmp.ne.s32.totalorder %s350, %s351
      %p362 = scmp.eq.s32.totalorder %s44, 0
      %p363 = por %p361, %p362
      %p364 = scmp.ne.s32.totalorder %s350, %s351
      %p365 = scmp.eq.s32.totalorder %s45, 3
      %p366 = por %p364, %p365
      %p368 = scmp.ne.s32.totalorder %s351, %s367
      %p369 = scmp.eq.s32.totalorder %s45, 0
      %p370 = por %p368, %p369
      %s371 = ssub.s32 %s47, %s54
      %p372 = scmp.eq.s32.totalorder %s371, 0
      %s374 = sadd.s32 %s373, 1
      %s375 = scalar_select %p372, %s373, %s374
      %p378 = pneg %p372
      %p379 = scmp.eq.s32.totalorder %s39, 3
      %p380 = por %p378, %p379
      %p381 = scmp.ne.s32.totalorder %s373, %s376
      %p382 = scmp.eq.s32.totalorder %s39, 0
      %p383 = por %p381, %p382
      %p384 = scmp.ne.s32.totalorder %s373, %s376
      %p385 = scmp.eq.s32.totalorder %s44, 3
      %p386 = por %p384, %p385
      %p387 = scmp.ne.s32.totalorder %s376, %s377
      %p388 = scmp.eq.s32.totalorder %s44, 0
      %p389 = por %p387, %p388
      %p390 = scmp.ne.s32.totalorder %s376, %s377
      %p391 = scmp.eq.s32.totalorder %s45, 3
      %p392 = por %p390, %p391
      %p394 = scmp.ne.s32.totalorder %s377, %s393
      %p395 = scmp.eq.s32.totalorder %s45, 0
      %p396 = por %p394, %p395
      %s397 = ssub.s32 %s47, %s54
      %p398 = scmp.eq.s32.totalorder %s397, 0
      %s400 = sadd.s32 %s399, 1
      %s401 = scalar_select %p398, %s399, %s400
      %p404 = pneg %p398
      %p405 = scmp.eq.s32.totalorder %s39, 3
      %p406 = por %p404, %p405
      %p407 = scmp.ne.s32.totalorder %s399, %s402
      %p408 = scmp.eq.s32.totalorder %s39, 0
      %p409 = por %p407, %p408
      %p410 = scmp.ne.s32.totalorder %s399, %s402
      %p411 = scmp.eq.s32.totalorder %s44, 3
      %p412 = por %p410, %p411
      %p413 = scmp.ne.s32.totalorder %s402, %s403
      %p414 = scmp.eq.s32.totalorder %s44, 0
      %p415 = por %p413, %p414
      %p416 = scmp.ne.s32.totalorder %s402, %s403
      %p417 = scmp.eq.s32.totalorder %s45, 3
      %p418 = por %p416, %p417
      %p420 = scmp.ne.s32.totalorder %s403, %s419
      %p421 = scmp.eq.s32.totalorder %s45, 0
      %p422 = por %p420, %p421
      %s423 = ssub.s32 %s47, %s54
      %p424 = scmp.eq.s32.totalorder %s423, 0
      %s426 = sadd.s32 %s425, 1
      %s427 = scalar_select %p424, %s425, %s426
      %p430 = pneg %p424
      %p431 = scmp.eq.s32.totalorder %s39, 3
      %p432 = por %p430, %p431
      %p433 = scmp.ne.s32.totalorder %s425, %s428
      %p434 = scmp.eq.s32.totalorder %s39, 0
      %p435 = por %p433, %p434
      %p436 = scmp.ne.s32.totalorder %s425, %s428
      %p437 = scmp.eq.s32.totalorder %s44, 3
      %p438 = por %p436, %p437
      %p439 = scmp.ne.s32.totalorder %s428, %s429
      %p440 = scmp.eq.s32.totalorder %s44, 0
      %p441 = por %p439, %p440
      %p442 = scmp.ne.s32.totalorder %s428, %s429
      %p443 = scmp.eq.s32.totalorder %s45, 3
      %p444 = por %p442, %p443
      %p446 = scmp.ne.s32.totalorder %s429, %s445
      %p447 = scmp.eq.s32.totalorder %s45, 0
      %p448 = por %p446, %p447
      %s449 = ssub.s32 %s47, %s54
      %p450 = scmp.eq.s32.totalorder %s449, 0
      %s452 = sadd.s32 %s451, 1
      %s453 = scalar_select %p450, %s451, %s452
      %p456 = pneg %p450
      %p457 = scmp.eq.s32.totalorder %s39, 3
      %p458 = por %p456, %p457
      %p459 = scmp.ne.s32.totalorder %s451, %s454
      %p460 = scmp.eq.s32.totalorder %s39, 0
      %p461 = por %p459, %p460
      %p462 = scmp.ne.s32.totalorder %s451, %s454
      %p463 = scmp.eq.s32.totalorder %s44, 3
      %p464 = por %p462, %p463
      %p465 = scmp.ne.s32.totalorder %s454, %s455
      %p466 = scmp.eq.s32.totalorder %s44, 0
      %p467 = por %p465, %p466
      %p468 = scmp.ne.s32.totalorder %s454, %s455
      %p469 = scmp.eq.s32.totalorder %s45, 3
      %p470 = por %p468, %p469
      %p472 = scmp.ne.s32.totalorder %s455, %s471
      %p473 = scmp.eq.s32.totalorder %s45, 0
      %p474 = por %p472, %p473
      %s475 = ssub.s32 %s46, %s58
      %p476 = scmp.eq.s32.totalorder %s475, 0
      %s478 = sadd.s32 %s477, 1
      %s479 = scalar_select %p476, %s477, %s478
      %p482 = pneg %p476
      %p483 = scmp.eq.s32.totalorder %s39, 3
      %p484 = por %p482, %p483
      %p485 = scmp.ne.s32.totalorder %s477, %s480
      %p486 = scmp.eq.s32.totalorder %s39, 0
      %p487 = por %p485, %p486
      %p488 = scmp.ne.s32.totalorder %s477, %s480
      %p489 = scmp.eq.s32.totalorder %s44, 3
      %p490 = por %p488, %p489
      %p491 = scmp.ne.s32.totalorder %s480, %s481
      %p492 = scmp.eq.s32.totalorder %s44, 0
      %p493 = por %p491, %p492
      %p494 = scmp.ne.s32.totalorder %s480, %s481
      %p495 = scmp.eq.s32.totalorder %s45, 3
      %p496 = por %p494, %p495
      %p498 = scmp.ne.s32.totalorder %s481, %s497
      %p499 = scmp.eq.s32.totalorder %s45, 0
      %p500 = por %p498, %p499
      %p501 = scmp.le.s32.totalorder 1, %s39
      %p502 = scmp.lt.s32.totalorder %s39, 5
      %p503 = pnand %p501, %p502
      %p504 = pneg %p503
      // Predicated region
      $region9: #{tpu_custom_call.1} parent=5 // pred_check
        _
      $region10: #{tpu_custom_call.1} parent=5 // pred_check_branch
        %506 = sbr.rel (%p503) target = $region12
      $region11: #{tpu_custom_call.1} parent=5 // pred_region
        %s507 = ssub.s32 %s39, 1
      $region12: #{tpu_custom_call.1} parent=5 // pred_fallthru
        _
      %p508 = scmp.lt.s32.totalorder %s39, 4
      // Predicated region
      $region13: #{tpu_custom_call.1} parent=5 // pred_check
        %p509 = pneg %p508
      $region14: #{tpu_custom_call.1} parent=5 // pred_check_branch
        %511 = sbr.rel (%p509) target = $region16
      $region15: #{tpu_custom_call.1} parent=5 // pred_region
        // Predicated region
        $region17: #{tpu_custom_call.1} parent=15 // pred_check
          %p512 = pneg %p71
        $region18: #{tpu_custom_call.1} parent=15 // pred_check_branch
          %514 = sbr.rel (%p512) target = $region20
        $region19: #{tpu_custom_call.1} parent=15 // pred_region
          %s515 = sand.u32 %s61, 1
          %s516 = scalar_lea.sflag [#allocation5], %s515
          %s517 = sand.u32 %s61, 1
          %s518 = smul.addr %s517, 8
          %s519 = scalar_lea.vmem [#allocation4], %s518
          %s521 = ssub.s32 128, 128
          %522 = vsyncadd %s516, %s521
          %s523 = smul.addr %s46, 128
          %s524 = scalar_lea.hbm %s1, %s523
          %s526 = sshll.u32 %s519, 4
          %s527 = int_to_ptr.vmem [resolvable:$true] %s526
          %529 = dma.hbm_to_vmem [thread:$0]  %s524, 128, %s527, %s516
        $region20: #{tpu_custom_call.1} parent=15 // pred_fallthru
          _
        // Predicated region
        $region21: #{tpu_custom_call.1} parent=15 // pred_check
          %p530 = pneg %p97
        $region22: #{tpu_custom_call.1} parent=15 // pred_check_branch
          %532 = sbr.rel (%p530) target = $region24
        $region23: #{tpu_custom_call.1} parent=15 // pred_region
          %s533 = sand.u32 %s39, 1
          %s534 = scalar_lea.sflag [#allocation8], %s533
          %s535 = sand.u32 %s87, 1
          %s536 = smul.addr %s535, 8
          %s537 = scalar_lea.vmem [#allocation7], %s536
          %s539 = ssub.s32 128, 128
          %540 = vsyncadd %s534, %s539
          %s541 = smul.addr %s46, 128
          %s542 = scalar_lea.hbm %s2, %s541
          %s544 = sshll.u32 %s537, 4
          %s545 = int_to_ptr.vmem [resolvable:$true] %s544
          %547 = dma.hbm_to_vmem [thread:$0]  %s542, 128, %s545, %s534
        $region24: #{tpu_custom_call.1} parent=15 // pred_fallthru
          _
        // Predicated region
        $region25: #{tpu_custom_call.1} parent=15 // pred_check
          %p548 = pneg %p123
        $region26: #{tpu_custom_call.1} parent=15 // pred_check_branch
          %550 = sbr.rel (%p548) target = $region28
        $region27: #{tpu_custom_call.1} parent=15 // pred_region
          %p551 = scmp.lt.s32.totalorder %s47, 1
          %s552 = scalar_select %p551, %s47, 1
          %s553 = smul.addr %s552, 4
          %s554 = smul.addr %s553, 8
          %s555 = scalar_lea.vmem %s3, %s554
        $region28: #{tpu_custom_call.1} parent=15 // pred_fallthru
          _
        // Predicated region
        $region29: #{tpu_custom_call.1} parent=15 // pred_check
          %p556 = pneg %p149
        $region30: #{tpu_custom_call.1} parent=15 // pred_check_branch
          %558 = sbr.rel (%p556) target = $region32
        $region31: #{tpu_custom_call.1} parent=15 // pred_region
          %p559 = scmp.lt.s32.totalorder %s47, 1
          %s560 = scalar_select %p559, %s47, 1
          %s561 = smul.addr %s560, 4
          %s562 = smul.addr %s561, 8
          %s563 = scalar_lea.vmem %s4, %s562
        $region32: #{tpu_custom_call.1} parent=15 // pred_fallthru
          _
        // Predicated region
        $region33: #{tpu_custom_call.1} parent=15 // pred_check
          %p564 = pneg %p175
        $region34: #{tpu_custom_call.1} parent=15 // pred_check_branch
          %566 = sbr.rel (%p564) target = $region36
        $region35: #{tpu_custom_call.1} parent=15 // pred_region
          %p567 = scmp.lt.s32.totalorder %s47, 1
          %s568 = scalar_select %p567, %s47, 1
          %s569 = scalar_lea.vmem %s5, %s568
        $region36: #{tpu_custom_call.1} parent=15 // pred_fallthru
          _
        // Predicated region
        $region37: #{tpu_custom_call.1} parent=15 // pred_check
          %p570 = pneg %p201
        $region38: #{tpu_custom_call.1} parent=15 // pred_check_branch
          %572 = sbr.rel (%p570) target = $region40
        $region39: #{tpu_custom_call.1} parent=15 // pred_region
          %p573 = scmp.lt.s32.totalorder %s47, 1
          %s574 = scalar_select %p573, %s47, 1
          %s575 = scalar_lea.vmem %s6, %s574
        $region40: #{tpu_custom_call.1} parent=15 // pred_fallthru
          _
        // Predicated region
        $region41: #{tpu_custom_call.1} parent=15 // pred_check
          %p576 = pneg %p227
        $region42: #{tpu_custom_call.1} parent=15 // pred_check_branch
          %578 = sbr.rel (%p576) target = $region44
        $region43: #{tpu_custom_call.1} parent=15 // pred_region
          %p579 = scmp.lt.s32.totalorder %s47, 1
          %s580 = scalar_select %p579, %s47, 1
          %s581 = smul.addr %s580, 4
          %s582 = smul.addr %s581, 8
          %s583 = scalar_lea.vmem %s7, %s582
        $region44: #{tpu_custom_call.1} parent=15 // pred_fallthru
          _
        // Predicated region
        $region45: #{tpu_custom_call.1} parent=15 // pred_check
          %p584 = pneg %p253
        $region46: #{tpu_custom_call.1} parent=15 // pred_check_branch
          %586 = sbr.rel (%p584) target = $region48
        $region47: #{tpu_custom_call.1} parent=15 // pred_region
          %s587 = sand.u32 %s39, 1
          %s588 = scalar_lea.sflag [#allocation8], %s587
          %s589 = sand.u32 %s243, 1
          %s590 = smul.addr %s589, 32
          %s591 = scalar_lea.vmem [#allocation9], %s590
          %s593 = ssub.s32 512, 512
          %594 = vsyncadd %s588, %s593
          %s595 = smul.addr %s47, 4
          %s596 = smul.addr %s595, 128
          %s597 = scalar_lea.hbm %s8, %s596
          %s598 = sshll.u32 %s591, 4
          %s599 = int_to_ptr.vmem [resolvable:$true] %s598
          %604 = dma.hbm_to_vmem [thread:$0]  %s597, 512, %s599, %s588, 128, 128, 8
        $region48: #{tpu_custom_call.1} parent=15 // pred_fallthru
          _
        // Predicated region
        $region49: #{tpu_custom_call.1} parent=15 // pred_check
          %p605 = pneg %p279
        $region50: #{tpu_custom_call.1} parent=15 // pred_check_branch
          %607 = sbr.rel (%p605) target = $region52
        $region51: #{tpu_custom_call.1} parent=15 // pred_region
          %p608 = scmp.lt.s32.totalorder %s47, 1
          %s609 = scalar_select %p608, %s47, 1
          %s610 = scalar_lea.vmem %s9, %s609
        $region52: #{tpu_custom_call.1} parent=15 // pred_fallthru
          _
        // Predicated region
        $region53: #{tpu_custom_call.1} parent=15 // pred_check
          %p611 = pneg %p305
        $region54: #{tpu_custom_call.1} parent=15 // pred_check_branch
          %613 = sbr.rel (%p611) target = $region56
        $region55: #{tpu_custom_call.1} parent=15 // pred_region
          %p614 = scmp.lt.s32.totalorder %s47, 1
          %s615 = scalar_select %p614, %s47, 1
          %s616 = scalar_lea.vmem %s10, %s615
        $region56: #{tpu_custom_call.1} parent=15 // pred_fallthru
          _
        // Predicated region
        $region57: #{tpu_custom_call.1} parent=15 // pred_check
          %p617 = pneg %p331
        $region58: #{tpu_custom_call.1} parent=15 // pred_check_branch
          %619 = sbr.rel (%p617) target = $region60
        $region59: #{tpu_custom_call.1} parent=15 // pred_region
          %s620 = sand.u32 %s321, 1
          %s621 = scalar_lea.sflag [#allocation11], %s620
          %s622 = sand.u32 %s321, 1
          %s623 = smul.addr %s622, 32
          %s624 = scalar_lea.vmem [#allocation10], %s623
          %s626 = ssub.s32 512, 512
          %627 = vsyncadd %s621, %s626
          %s628 = smul.addr %s47, 4
          %s629 = smul.addr %s628, 128
          %s630 = scalar_lea.hbm %s11, %s629
          %s631 = sshll.u32 %s624, 4
          %s632 = int_to_ptr.vmem [resolvable:$true] %s631
          %637 = dma.hbm_to_vmem [thread:$0]  %s630, 512, %s632, %s621, 128, 128, 8
        $region60: #{tpu_custom_call.1} parent=15 // pred_fallthru
          _
        // Predicated region
        $region61: #{tpu_custom_call.1} parent=15 // pred_check
          %p638 = pneg %p357
        $region62: #{tpu_custom_call.1} parent=15 // pred_check_branch
          %640 = sbr.rel (%p638) target = $region64
        $region63: #{tpu_custom_call.1} parent=15 // pred_region
          %p641 = scmp.lt.s32.totalorder %s47, 1
          %s642 = scalar_select %p641, %s47, 1
          %s643 = scalar_lea.vmem %s12, %s642
        $region64: #{tpu_custom_call.1} parent=15 // pred_fallthru
          _
        // Predicated region
        $region65: #{tpu_custom_call.1} parent=15 // pred_check
          %p644 = pneg %p383
        $region66: #{tpu_custom_call.1} parent=15 // pred_check_branch
          %646 = sbr.rel (%p644) target = $region68
        $region67: #{tpu_custom_call.1} parent=15 // pred_region
          %p647 = scmp.lt.s32.totalorder %s47, 1
          %s648 = scalar_select %p647, %s47, 1
          %s649 = smul.addr %s648, 8
          %s650 = smul.addr %s649, 8
          %s651 = scalar_lea.vmem %s13, %s650
        $region68: #{tpu_custom_call.1} parent=15 // pred_fallthru
          _
        // Predicated region
        $region69: #{tpu_custom_call.1} parent=15 // pred_check
          %p652 = pneg %p409
        $region70: #{tpu_custom_call.1} parent=15 // pred_check_branch
          %654 = sbr.rel (%p652) target = $region72
        $region71: #{tpu_custom_call.1} parent=15 // pred_region
          %p655 = scmp.lt.s32.totalorder %s47, 1
          %s656 = scalar_select %p655, %s47, 1
          %s657 = scalar_lea.vmem %s14, %s656
        $region72: #{tpu_custom_call.1} parent=15 // pred_fallthru
          _
        // Predicated region
        $region73: #{tpu_custom_call.1} parent=15 // pred_check
          %p658 = pneg %p435
        $region74: #{tpu_custom_call.1} parent=15 // pred_check_branch
          %660 = sbr.rel (%p658) target = $region76
        $region75: #{tpu_custom_call.1} parent=15 // pred_region
          %p661 = scmp.lt.s32.totalorder %s47, 1
          %s662 = scalar_select %p661, %s47, 1
          %s663 = scalar_lea.vmem %s15, %s662
        $region76: #{tpu_custom_call.1} parent=15 // pred_fallthru
          _
        // Predicated region
        $region77: #{tpu_custom_call.1} parent=15 // pred_check
          %p664 = pneg %p461
        $region78: #{tpu_custom_call.1} parent=15 // pred_check_branch
          %666 = sbr.rel (%p664) target = $region80
        $region79: #{tpu_custom_call.1} parent=15 // pred_region
          %p667 = scmp.lt.s32.totalorder %s47, 1
          %s668 = scalar_select %p667, %s47, 1
          %s669 = scalar_lea.vmem %s16, %s668
        $region80: #{tpu_custom_call.1} parent=15 // pred_fallthru
          _
      $region16: #{tpu_custom_call.1} parent=5 // pred_fallthru
        _
      %p670 = scmp.le.s32.totalorder 1, %s39
      %p671 = scmp.lt.s32.totalorder %s39, 5
      %p672 = pnand %p670, %p671
      %p673 = pneg %p672
      // Predicated region
      $region81: #{tpu_custom_call.1} parent=5 // pred_check
        _
      $region82: #{tpu_custom_call.1} parent=5 // pred_check_branch
        %675 = sbr.rel (%p672) target = $region84
      $region83: #{tpu_custom_call.1} parent=5 // pred_region
        %s676 = ssub.s32 %s39, 1
        %s677 = sand.u32 %s64, 1
        %s678 = scalar_lea.sflag [#allocation5], %s677
        %s679 = sand.u32 %s64, 1
        %s680 = smul.addr %s679, 8
        %s681 = scalar_lea.vmem [#allocation4], %s680
        // Predicated region
        $region85: #{tpu_custom_call.1} parent=83 // pred_check
          %p682 = pneg %p77
        $region86: #{tpu_custom_call.1} parent=83 // pred_check_branch
          %684 = sbr.rel (%p682) target = $region88
        $region87: #{tpu_custom_call.1} parent=83 // pred_region
          %685 = dma.done %s678, 128
        $region88: #{tpu_custom_call.1} parent=83 // pred_fallthru
          _
        %s686 = sand.u32 %s44, 1
        %s687 = scalar_lea.sflag [#allocation8], %s686
        %s688 = sand.u32 %s90, 1
        %s689 = smul.addr %s688, 8
        %s690 = scalar_lea.vmem [#allocation7], %s689
        // Predicated region
        $region89: #{tpu_custom_call.1} parent=83 // pred_check
          %p691 = pneg %p103
        $region90: #{tpu_custom_call.1} parent=83 // pred_check_branch
          %693 = sbr.rel (%p691) target = $region92
        $region91: #{tpu_custom_call.1} parent=83 // pred_region
          %694 = dma.done %s687, 128
        $region92: #{tpu_custom_call.1} parent=83 // pred_fallthru
          _
        %s695 = sand.u32 %s44, 1
        %s696 = scalar_lea.sflag [#allocation8], %s695
        %s697 = sand.u32 %s246, 1
        %s698 = smul.addr %s697, 32
        %s699 = scalar_lea.vmem [#allocation9], %s698
        // Predicated region
        $region93: #{tpu_custom_call.1} parent=83 // pred_check
          %p700 = pneg %p259
        $region94: #{tpu_custom_call.1} parent=83 // pred_check_branch
          %702 = sbr.rel (%p700) target = $region96
        $region95: #{tpu_custom_call.1} parent=83 // pred_region
          %703 = dma.done %s696, 512
        $region96: #{tpu_custom_call.1} parent=83 // pred_fallthru
          _
        %s704 = sand.u32 %s324, 1
        %s705 = scalar_lea.sflag [#allocation11], %s704
        %s706 = sand.u32 %s324, 1
        %s707 = smul.addr %s706, 32
        %s708 = scalar_lea.vmem [#allocation10], %s707
        // Predicated region
        $region97: #{tpu_custom_call.1} parent=83 // pred_check
          %p709 = pneg %p337
        $region98: #{tpu_custom_call.1} parent=83 // pred_check_branch
          %711 = sbr.rel (%p709) target = $region100
        $region99: #{tpu_custom_call.1} parent=83 // pred_region
          %712 = dma.done %s705, 512
        $region100: #{tpu_custom_call.1} parent=83 // pred_fallthru
          _
        %s713 = sand.u32 %s64, 1
        %s714 = scalar_lea.sflag [#allocation5], %s713
        %s715 = sand.u32 %s64, 1
        %s716 = smul.addr %s715, 8
        %s717 = scalar_lea.vmem [#allocation4], %s716
        %p718 = pneg %p77
        %p719 = pneg %p74
        %s720 = sand.u32 %s44, 1
        %s721 = scalar_lea.sflag [#allocation8], %s720
        %s722 = sand.u32 %s90, 1
        %s723 = smul.addr %s722, 8
        %s724 = scalar_lea.vmem [#allocation7], %s723
        %p725 = pneg %p103
        %p726 = pneg %p100
        %p727 = scmp.lt.s32.totalorder %s49, 1
        %s728 = scalar_select %p727, %s49, 1
        %s729 = smul.addr %s728, 4
        %s730 = smul.addr %s729, 8
        %s731 = scalar_lea.vmem %s3, %s730
        %p732 = pneg %p129
        %p733 = pneg %p126
        %p734 = scmp.lt.s32.totalorder %s49, 1
        %s735 = scalar_select %p734, %s49, 1
        %s736 = smul.addr %s735, 4
        %s737 = smul.addr %s736, 8
        %s738 = scalar_lea.vmem %s4, %s737
        %p739 = pneg %p155
        %p740 = pneg %p152
        %p741 = scmp.lt.s32.totalorder %s49, 1
        %s742 = scalar_select %p741, %s49, 1
        %s743 = scalar_lea.vmem %s5, %s742
        %p744 = pneg %p181
        %p745 = pneg %p178
        %p746 = scmp.lt.s32.totalorder %s49, 1
        %s747 = scalar_select %p746, %s49, 1
        %s748 = scalar_lea.vmem %s6, %s747
        %p749 = pneg %p207
        %p750 = pneg %p204
        %p751 = scmp.lt.s32.totalorder %s49, 1
        %s752 = scalar_select %p751, %s49, 1
        %s753 = smul.addr %s752, 4
        %s754 = smul.addr %s753, 8
        %s755 = scalar_lea.vmem %s7, %s754
        %p756 = pneg %p233
        %p757 = pneg %p230
        %s758 = sand.u32 %s44, 1
        %s759 = scalar_lea.sflag [#allocation8], %s758
        %s760 = sand.u32 %s246, 1
        %s761 = smul.addr %s760, 32
        %s762 = scalar_lea.vmem [#allocation9], %s761
        %p763 = pneg %p259
        %p764 = pneg %p256
        %p765 = scmp.lt.s32.totalorder %s49, 1
        %s766 = scalar_select %p765, %s49, 1
        %s767 = scalar_lea.vmem %s9, %s766
        %p768 = pneg %p285
        %p769 = pneg %p282
        %p770 = scmp.lt.s32.totalorder %s49, 1
        %s771 = scalar_select %p770, %s49, 1
        %s772 = scalar_lea.vmem %s10, %s771
        %p773 = pneg %p311
        %p774 = pneg %p308
        %s775 = sand.u32 %s324, 1
        %s776 = scalar_lea.sflag [#allocation11], %s775
        %s777 = sand.u32 %s324, 1
        %s778 = smul.addr %s777, 32
        %s779 = scalar_lea.vmem [#allocation10], %s778
        %p780 = pneg %p337
        %p781 = pneg %p334
        %p782 = scmp.lt.s32.totalorder %s49, 1
        %s783 = scalar_select %p782, %s49, 1
        %s784 = scalar_lea.vmem %s12, %s783
        %p785 = pneg %p363
        %p786 = pneg %p360
        %p787 = scmp.lt.s32.totalorder %s49, 1
        %s788 = scalar_select %p787, %s49, 1
        %s789 = smul.addr %s788, 8
        %s790 = smul.addr %s789, 8
        %s791 = scalar_lea.vmem %s13, %s790
        %p792 = pneg %p389
        %p793 = pneg %p386
        %p794 = scmp.lt.s32.totalorder %s49, 1
        %s795 = scalar_select %p794, %s49, 1
        %s796 = scalar_lea.vmem %s14, %s795
        %p797 = pneg %p415
        %p798 = pneg %p412
        %p799 = scmp.lt.s32.totalorder %s49, 1
        %s800 = scalar_select %p799, %s49, 1
        %s801 = scalar_lea.vmem %s15, %s800
        %p802 = pneg %p441
        %p803 = pneg %p438
        %p804 = scmp.lt.s32.totalorder %s49, 1
        %s805 = scalar_select %p804, %s49, 1
        %s806 = scalar_lea.vmem %s16, %s805
        %p807 = pneg %p467
        %p808 = pneg %p464
        %p809 = pneg %p493
        %p810 = pneg %p490
        %s811 = sand.u32 %s480, 1
        %s812 = scalar_lea.sflag [#allocation6], %s811
        %s813 = sand.u32 %s480, 1
        %s814 = smul.addr %s813, 8
        %s815 = scalar_lea.vmem [#allocation12], %s814
        %p816 = scmp.lt.s32.totalorder %s49, 1
        %s817 = scalar_select %p816, %s49, 1
        %s818 = smul.addr %s817, 4
        %s819 = smul.addr %s818, 8
        %s820 = scalar_lea.vmem %s3, %s819
        %p821 = scmp.lt.s32.totalorder %s49, 1
        %s822 = scalar_select %p821, %s49, 1
        %s823 = smul.addr %s822, 4
        %s824 = smul.addr %s823, 8
        %s825 = scalar_lea.vmem %s4, %s824
        %p826 = scmp.lt.s32.totalorder %s49, 1
        %s827 = scalar_select %p826, %s49, 1
        %s828 = scalar_lea.vmem %s5, %s827
        %p829 = scmp.lt.s32.totalorder %s49, 1
        %s830 = scalar_select %p829, %s49, 1
        %s831 = scalar_lea.vmem %s6, %s830
        %p832 = scmp.lt.s32.totalorder %s49, 1
        %s833 = scalar_select %p832, %s49, 1
        %s834 = smul.addr %s833, 4
        %s835 = smul.addr %s834, 8
        %s836 = scalar_lea.vmem %s7, %s835
        %p837 = scmp.lt.s32.totalorder %s49, 1
        %s838 = scalar_select %p837, %s49, 1
        %s839 = scalar_lea.vmem %s9, %s838
        %p840 = scmp.lt.s32.totalorder %s49, 1
        %s841 = scalar_select %p840, %s49, 1
        %s842 = scalar_lea.vmem %s10, %s841
        %p843 = scmp.lt.s32.totalorder %s49, 1
        %s844 = scalar_select %p843, %s49, 1
        %s845 = scalar_lea.vmem %s12, %s844
        %p846 = scmp.lt.s32.totalorder %s49, 1
        %s847 = scalar_select %p846, %s49, 1
        %s848 = smul.addr %s847, 8
        %s849 = smul.addr %s848, 8
        %s850 = scalar_lea.vmem %s13, %s849
        %p851 = scmp.lt.s32.totalorder %s49, 1
        %s852 = scalar_select %p851, %s49, 1
        %s853 = scalar_lea.vmem %s14, %s852
        %p854 = scmp.lt.s32.totalorder %s49, 1
        %s855 = scalar_select %p854, %s49, 1
        %s856 = scalar_lea.vmem %s15, %s855
        %p857 = scmp.lt.s32.totalorder %s49, 1
        %s858 = scalar_select %p857, %s49, 1
        %s859 = scalar_lea.vmem %s16, %s858
        %p860 = scmp.eq.s32.totalorder %s49, 0
        // Predicated region
        $region101: #{tpu_custom_call.1} parent=83 // pred_check
          %p861 = pneg %p860
        $region102: #{tpu_custom_call.1} parent=83 // pred_check_branch
          %863 = sbr.rel (%p861) target = $region104
        $region103: #{tpu_custom_call.1} parent=83 // pred_region
          %v864 = vld [vmem:[%s681] sm:$0xff]
          %vm865 = vcmask 261120
          %866 = vst.msk [vmem:[%s815] sm:$0xff] %vm865, %v864
        $region104: #{tpu_custom_call.1} parent=83 // pred_fallthru
          _
        %v867 = vld [vmem:[%s815] sm:$0xff]
        %v868 = vld [vmem:[%s690] sm:$0xff]
        %v869 = vlaneseq
        %v870 = vshrl.u32 %v869, 7
        %v871 = vlaneseq
        %v872 = vand.u32 %v871, 127
        %vm873 = vcmp.le.s32.totalorder %v872, %v870
        %s874 = sld [smem:[#allocation3 + %s48]]
        %v875 = vstv %s874
        %vm876 = vcmp.lt.s32.totalorder %v872, %v875
        %v877 = vld [vmem:[%s820] sm:$0xff]
        %v878 = vld [vmem:[%s820 + $0x8] sm:$0xff]
        %v879 = vld [vmem:[%s820 + $0x10] sm:$0xff]
        %v880 = vld [vmem:[%s820 + $0x18] sm:$0xff]
        %v881 = vld [vmem:[%s825] sm:$0xff]
        %v882 = vld [vmem:[%s825 + $0x8] sm:$0xff]
        %v883 = vld [vmem:[%s825 + $0x10] sm:$0xff]
        %v884 = vld [vmem:[%s825 + $0x18] sm:$0xff]
        %v885 = vld [vmem:[%s828] sm:$0x1]
        %v886 = vld [vmem:[%s831] sm:$0x1]
        %vm887 = vcmask 261120
        %v889 = vsel %vm887, %v867, 0
        %891 = vmatprep.subr.mxu0 0.0
        %892 = vmatpush1.msra.mxu0 %v877
        %893 = vmatprep.subr.mxu0 0.0
        %894 = vmatpush1.msra.mxu0 %v878
        %895 = vmatprep.subr.mxu0 0.0
        %896 = vmatpush1.msra.mxu0 %v879
        %897 = vmatprep.subr.mxu0 0.0
        %898 = vmatpush1.msra.mxu0 %v880
        %899 = vmatprep.subr.mxu0 0.0
        %900 = vmatpush1.msra.mxu0 0.0
        %901 = vmatprep.subr.mxu0 0.0
        %902 = vmatpush1.msra.mxu0 0.0
        %903 = vmatprep.subr.mxu0 0.0
        %904 = vmatpush1.msra.mxu0 0.0
        %905 = vmatprep.subr.mxu0 0.0
        %906 = vmatpush1.msra.mxu0 0.0
        %907 = vmatprep.subr.mxu0 0.0
        %908 = vmatpush1.msra.mxu0 0.0
        %909 = vmatprep.subr.mxu0 0.0
        %910 = vmatpush1.msra.mxu0 0.0
        %911 = vmatprep.subr.mxu0 0.0
        %912 = vmatpush1.msra.mxu0 0.0
        %913 = vmatprep.subr.mxu0 0.0
        %914 = vmatpush1.msra.mxu0 0.0
        %915 = vmatprep.subr.mxu0 0.0
        %916 = vmatpush1.msra.mxu0 0.0
        %917 = vmatprep.subr.mxu0 0.0
        %918 = vmatpush1.msra.mxu0 0.0
        %919 = vmatprep.subr.mxu0 0.0
        %920 = vmatpush1.msra.mxu0 0.0
        %921 = vmatprep.subr.mxu0 0.0
        %922 = vmatpush1.msra.mxu0 0.0
        %923 = vmatprep.subr.mxu0 0.0
        %924 = vmatpush1.msra.mxu0 0.0
        %925 = vmatprep.subr.mxu0 0.0
        %926 = vmatpush1.msra.mxu0 0.0
        %927 = vmatprep.subr.mxu0 0.0
        %928 = vmatpush1.msra.mxu0 0.0
        %929 = vmatprep.subr.mxu0 0.0
        %930 = vmatpush1.msra.mxu0 0.0
        %931 = vmatprep.subr.mxu0 0.0
        %932 = vmatpush1.msra.mxu0 0.0
        %933 = vmatprep.subr.mxu0 0.0
        %934 = vmatpush1.msra.mxu0 0.0
        %935 = vmatprep.subr.mxu0 0.0
        %936 = vmatpush1.msra.mxu0 0.0
        %937 = vmatprep.subr.mxu0 0.0
        %938 = vmatpush1.msra.mxu0 0.0
        %939 = vmatprep.subr.mxu0 0.0
        %940 = vmatpush1.msra.mxu0 0.0
        %941 = vmatprep.subr.mxu0 0.0
        %942 = vmatpush1.msra.mxu0 0.0
        %943 = vmatprep.subr.mxu0 0.0
        %944 = vmatpush1.msra.mxu0 0.0
        %945 = vmatprep.subr.mxu0 0.0
        %946 = vmatpush1.msra.mxu0 0.0
        %947 = vmatprep.subr.mxu0 0.0
        %948 = vmatpush1.msra.mxu0 0.0
        %949 = vmatprep.subr.mxu0 0.0
        %950 = vmatpush1.msra.mxu0 0.0
        %951 = vmatprep.subr.mxu0 0.0
        %952 = vmatpush1.msra.mxu0 0.0
        %953 = vmatprep.subr.mxu0 0.0
        %954 = vmatpush1.msra.mxu0 0.0
        %955 = vmatprep.mubr.f32.mxu0 0.0
        %956 = vmatmul.mubr.f32.gmra.mrb[0].mxu0 %v889
        %v957 = vpop.f32.mrb[0].mxu0
        %v958 = vadd.f32 0.0, %v957
        %v959 = vpop.f32.mrb[0].mxu0
        %960 = vdwg.mxu0
        %962 = vrot.lane.b32.xlu0 %v958, 96
        %v963 = vpop.permute.xlu0 %962
        %vm964 = vcmask 64512
        %v965 = vsel %vm964, %v958, 0
        %v967 = vsel %vm964, %v963, 0
        %969 = vmatprep.subr.mxu0 0.0
        %970 = vmatpush1.xpose.msra.mxu0 %v967
        %971 = vmatprep.subr.mxu0 0.0
        %972 = vmatpush1.xpose.msra.mxu0 0.0
        %973 = vmatprep.subr.mxu0 0.0
        %974 = vmatpush1.xpose.msra.mxu0 0.0
        %975 = vmatprep.subr.mxu0 0.0
        %976 = vmatpush1.xpose.msra.mxu0 0.0
        %977 = vmatprep.subr.mxu0 0.0
        %978 = vmatpush1.xpose.msra.mxu0 0.0
        %979 = vmatprep.subr.mxu0 0.0
        %980 = vmatpush1.xpose.msra.mxu0 0.0
        %981 = vmatprep.subr.mxu0 0.0
        %982 = vmatpush1.xpose.msra.mxu0 0.0
        %983 = vmatprep.subr.mxu0 0.0
        %984 = vmatpush1.xpose.msra.mxu0 0.0
        %985 = vmatprep.subr.mxu0 0.0
        %986 = vmatpush1.xpose.msra.mxu0 0.0
        %987 = vmatprep.subr.mxu0 0.0
        %988 = vmatpush1.xpose.msra.mxu0 0.0
        %989 = vmatprep.subr.mxu0 0.0
        %990 = vmatpush1.xpose.msra.mxu0 0.0
        %991 = vmatprep.subr.mxu0 0.0
        %992 = vmatpush1.xpose.msra.mxu0 0.0
        %993 = vmatprep.subr.mxu0 0.0
        %994 = vmatpush1.xpose.msra.mxu0 0.0
        %995 = vmatprep.subr.mxu0 0.0
        %996 = vmatpush1.xpose.msra.mxu0 0.0
        %997 = vmatprep.subr.mxu0 0.0
        %998 = vmatpush1.xpose.msra.mxu0 0.0
        %999 = vmatprep.subr.mxu0 0.0
        %1000 = vmatpush1.xpose.msra.mxu0 0.0
        %1001 = vmatprep.subr.mxu0 0.0
        %1002 = vmatpush1.xpose.msra.mxu0 0.0
        %1003 = vmatprep.subr.mxu0 0.0
        %1004 = vmatpush1.xpose.msra.mxu0 0.0
        %1005 = vmatprep.subr.mxu0 0.0
        %1006 = vmatpush1.xpose.msra.mxu0 0.0
        %1007 = vmatprep.subr.mxu0 0.0
        %1008 = vmatpush1.xpose.msra.mxu0 0.0
        %1009 = vmatprep.subr.mxu0 0.0
        %1010 = vmatpush1.xpose.msra.mxu0 0.0
        %1011 = vmatprep.subr.mxu0 0.0
        %1012 = vmatpush1.xpose.msra.mxu0 0.0
        %1013 = vmatprep.subr.mxu0 0.0
        %1014 = vmatpush1.xpose.msra.mxu0 0.0
        %1015 = vmatprep.subr.mxu0 0.0
        %1016 = vmatpush1.xpose.msra.mxu0 0.0
        %1017 = vmatprep.subr.mxu0 0.0
        %1018 = vmatpush1.xpose.msra.mxu0 0.0
        %1019 = vmatprep.subr.mxu0 0.0
        %1020 = vmatpush1.xpose.msra.mxu0 0.0
        %1021 = vmatprep.subr.mxu0 0.0
        %1022 = vmatpush1.xpose.msra.mxu0 0.0
        %1023 = vmatprep.subr.mxu0 0.0
        %1024 = vmatpush1.xpose.msra.mxu0 0.0
        %1025 = vmatprep.subr.mxu0 0.0
        %1026 = vmatpush1.xpose.msra.mxu0 0.0
        %1027 = vmatprep.subr.mxu0 0.0
        %1028 = vmatpush1.xpose.msra.mxu0 0.0
        %1029 = vmatprep.subr.mxu0 0.0
        %1030 = vmatpush1.xpose.msra.mxu0 0.0
        %1031 = vmatprep.subr.mxu0 0.0
        %1032 = vmatpush1.xpose.msra.mxu0 0.0
        %1033 = vmatprep.mubr.f32.mxu0 0.0
        %1034 = vmatmul.mubr.f32.gmra.mrb[0].mxu0 %v965
        %v1035 = vpop.f32.mrb[0].mxu0
        %v1036 = vadd.f32 0.0, %v1035
        %v1037 = vpop.f32.mrb[0].mxu0
        %1038 = vdwg.mxu0
        %v1039 = vmul.f32 %v1036, 0.35355338
        %v1040 = vsel %vm873, %v1039, -1000000.0
        %v1041 = vsel %vm964, %v1040, -inf
        %1042 = vmax.xlane.f32.xlu0 %v1041
        %v1043 = vpop.xlane.xlu0 %1042
        %v1044 = vsub.f32 %v1040, %v1043
        %v1045 = vmul.f32 %v1044, 1.442695
        %v1046 = vpow.pop %v1045
        %v1047 = vsel %vm964, %v1046, 0.0
        %1048 = vadd.xlane.f32.xlu0 %v1047
        %v1049 = vpop.xlane.xlu0 %1048
        %v1050 = vrcp.pop %v1049
        %v1051 = vmul.f32 %v1046, %v1050
        %1052 = vrot.lane.b32.xlu0 %v958, 64
        %v1053 = vpop.permute.xlu0 %1052
        %v1056 = vsel %vm964, %v1051, 0
        %1058 = vmatprep.subr.mxu0 0.0
        %1059 = vmatpush1.msra.mxu0 %v1053
        %1060 = vmatprep.subr.mxu0 0.0
        %1061 = vmatpush1.msra.mxu0 0.0
        %1062 = vmatprep.subr.mxu0 0.0
        %1063 = vmatpush1.msra.mxu0 0.0
        %1064 = vmatprep.subr.mxu0 0.0
        %1065 = vmatpush1.msra.mxu0 0.0
        %1066 = vmatprep.subr.mxu0 0.0
        %1067 = vmatpush1.msra.mxu0 0.0
        %1068 = vmatprep.subr.mxu0 0.0
        %1069 = vmatpush1.msra.mxu0 0.0
        %1070 = vmatprep.subr.mxu0 0.0
        %1071 = vmatpush1.msra.mxu0 0.0
        %1072 = vmatprep.subr.mxu0 0.0
        %1073 = vmatpush1.msra.mxu0 0.0
        %1074 = vmatprep.subr.mxu0 0.0
        %1075 = vmatpush1.msra.mxu0 0.0
        %1076 = vmatprep.subr.mxu0 0.0
        %1077 = vmatpush1.msra.mxu0 0.0
        %1078 = vmatprep.subr.mxu0 0.0
        %1079 = vmatpush1.msra.mxu0 0.0
        %1080 = vmatprep.subr.mxu0 0.0
        %1081 = vmatpush1.msra.mxu0 0.0
        %1082 = vmatprep.subr.mxu0 0.0
        %1083 = vmatpush1.msra.mxu0 0.0
        %1084 = vmatprep.subr.mxu0 0.0
        %1085 = vmatpush1.msra.mxu0 0.0
        %1086 = vmatprep.subr.mxu0 0.0
        %1087 = vmatpush1.msra.mxu0 0.0
        %1088 = vmatprep.subr.mxu0 0.0
        %1089 = vmatpush1.msra.mxu0 0.0
        %1090 = vmatprep.subr.mxu0 0.0
        %1091 = vmatpush1.msra.mxu0 0.0
        %1092 = vmatprep.subr.mxu0 0.0
        %1093 = vmatpush1.msra.mxu0 0.0
        %1094 = vmatprep.subr.mxu0 0.0
        %1095 = vmatpush1.msra.mxu0 0.0
        %1096 = vmatprep.subr.mxu0 0.0
        %1097 = vmatpush1.msra.mxu0 0.0
        %1098 = vmatprep.subr.mxu0 0.0
        %1099 = vmatpush1.msra.mxu0 0.0
        %1100 = vmatprep.subr.mxu0 0.0
        %1101 = vmatpush1.msra.mxu0 0.0
        %1102 = vmatprep.subr.mxu0 0.0
        %1103 = vmatpush1.msra.mxu0 0.0
        %1104 = vmatprep.subr.mxu0 0.0
        %1105 = vmatpush1.msra.mxu0 0.0
        %1106 = vmatprep.subr.mxu0 0.0
        %1107 = vmatpush1.msra.mxu0 0.0
        %1108 = vmatprep.subr.mxu0 0.0
        %1109 = vmatpush1.msra.mxu0 0.0
        %1110 = vmatprep.subr.mxu0 0.0
        %1111 = vmatpush1.msra.mxu0 0.0
        %1112 = vmatprep.subr.mxu0 0.0
        %1113 = vmatpush1.msra.mxu0 0.0
        %1114 = vmatprep.subr.mxu0 0.0
        %1115 = vmatpush1.msra.mxu0 0.0
        %1116 = vmatprep.subr.mxu0 0.0
        %1117 = vmatpush1.msra.mxu0 0.0
        %1118 = vmatprep.subr.mxu0 0.0
        %1119 = vmatpush1.msra.mxu0 0.0
        %1120 = vmatprep.subr.mxu0 0.0
        %1121 = vmatpush1.msra.mxu0 0.0
        %1122 = vmatprep.mubr.f32.mxu0 0.0
        %1123 = vmatmul.mubr.f32.gmra.mrb[0].mxu0 %v1056
        %v1124 = vpop.f32.mrb[0].mxu0
        %v1125 = vadd.f32 0.0, %v1124
        %v1126 = vpop.f32.mrb[0].mxu0
        %1127 = vdwg.mxu0
        %1128 = vrot.lane.b32.xlu0 %v958, 120
        %v1129 = vpop.permute.xlu0 %1128
        %1130 = vrot.lane.b32.xlu0 %v958, 88
        %v1131 = vpop.permute.xlu0 %1130
        %v1132 = vsel %vm964, %v1129, 0
        %v1134 = vsel %vm964, %v1131, 0
        %1136 = vmatprep.subr.mxu0 0.0
        %1137 = vmatpush1.xpose.msra.mxu0 %v1134
        %1138 = vmatprep.subr.mxu0 0.0
        %1139 = vmatpush1.xpose.msra.mxu0 0.0
        %1140 = vmatprep.subr.mxu0 0.0
        %1141 = vmatpush1.xpose.msra.mxu0 0.0
        %1142 = vmatprep.subr.mxu0 0.0
        %1143 = vmatpush1.xpose.msra.mxu0 0.0
        %1144 = vmatprep.subr.mxu0 0.0
        %1145 = vmatpush1.xpose.msra.mxu0 0.0
        %1146 = vmatprep.subr.mxu0 0.0
        %1147 = vmatpush1.xpose.msra.mxu0 0.0
        %1148 = vmatprep.subr.mxu0 0.0
        %1149 = vmatpush1.xpose.msra.mxu0 0.0
        %1150 = vmatprep.subr.mxu0 0.0
        %1151 = vmatpush1.xpose.msra.mxu0 0.0
        %1152 = vmatprep.subr.mxu0 0.0
        %1153 = vmatpush1.xpose.msra.mxu0 0.0
        %1154 = vmatprep.subr.mxu0 0.0
        %1155 = vmatpush1.xpose.msra.mxu0 0.0
        %1156 = vmatprep.subr.mxu0 0.0
        %1157 = vmatpush1.xpose.msra.mxu0 0.0
        %1158 = vmatprep.subr.mxu0 0.0
        %1159 = vmatpush1.xpose.msra.mxu0 0.0
        %1160 = vmatprep.subr.mxu0 0.0
        %1161 = vmatpush1.xpose.msra.mxu0 0.0
        %1162 = vmatprep.subr.mxu0 0.0
        %1163 = vmatpush1.xpose.msra.mxu0 0.0
        %1164 = vmatprep.subr.mxu0 0.0
        %1165 = vmatpush1.xpose.msra.mxu0 0.0
        %1166 = vmatprep.subr.mxu0 0.0
        %1167 = vmatpush1.xpose.msra.mxu0 0.0
        %1168 = vmatprep.subr.mxu0 0.0
        %1169 = vmatpush1.xpose.msra.mxu0 0.0
        %1170 = vmatprep.subr.mxu0 0.0
        %1171 = vmatpush1.xpose.msra.mxu0 0.0
        %1172 = vmatprep.subr.mxu0 0.0
        %1173 = vmatpush1.xpose.msra.mxu0 0.0
        %1174 = vmatprep.subr.mxu0 0.0
        %1175 = vmatpush1.xpose.msra.mxu0 0.0
        %1176 = vmatprep.subr.mxu0 0.0
        %1177 = vmatpush1.xpose.msra.mxu0 0.0
        %1178 = vmatprep.subr.mxu0 0.0
        %1179 = vmatpush1.xpose.msra.mxu0 0.0
        %1180 = vmatprep.subr.mxu0 0.0
        %1181 = vmatpush1.xpose.msra.mxu0 0.0
        %1182 = vmatprep.subr.mxu0 0.0
        %1183 = vmatpush1.xpose.msra.mxu0 0.0
        %1184 = vmatprep.subr.mxu0 0.0
        %1185 = vmatpush1.xpose.msra.mxu0 0.0
        %1186 = vmatprep.subr.mxu0 0.0
        %1187 = vmatpush1.xpose.msra.mxu0 0.0
        %1188 = vmatprep.subr.mxu0 0.0
        %1189 = vmatpush1.xpose.msra.mxu0 0.0
        %1190 = vmatprep.subr.mxu0 0.0
        %1191 = vmatpush1.xpose.msra.mxu0 0.0
        %1192 = vmatprep.subr.mxu0 0.0
        %1193 = vmatpush1.xpose.msra.mxu0 0.0
        %1194 = vmatprep.subr.mxu0 0.0
        %1195 = vmatpush1.xpose.msra.mxu0 0.0
        %1196 = vmatprep.subr.mxu0 0.0
        %1197 = vmatpush1.xpose.msra.mxu0 0.0
        %1198 = vmatprep.subr.mxu0 0.0
        %1199 = vmatpush1.xpose.msra.mxu0 0.0
        %1200 = vmatprep.mubr.f32.mxu0 0.0
        %1201 = vmatmul.mubr.f32.gmra.mrb[0].mxu0 %v1132
        %v1202 = vpop.f32.mrb[0].mxu0
        %v1203 = vadd.f32 0.0, %v1202
        %v1204 = vpop.f32.mrb[0].mxu0
        %1205 = vdwg.mxu0
        %v1206 = vmul.f32 %v1203, 0.35355338
        %v1207 = vsel %vm873, %v1206, -1000000.0
        %v1208 = vsel %vm964, %v1207, -inf
        %1209 = vmax.xlane.f32.xlu0 %v1208
        %v1210 = vpop.xlane.xlu0 %1209
        %v1211 = vsub.f32 %v1207, %v1210
        %v1212 = vmul.f32 %v1211, 1.442695
        %v1213 = vpow.pop %v1212
        %v1214 = vsel %vm964, %v1213, 0.0
        %1215 = vadd.xlane.f32.xlu0 %v1214
        %v1216 = vpop.xlane.xlu0 %1215
        %v1217 = vrcp.pop %v1216
        %v1218 = vmul.f32 %v1213, %v1217
        %1219 = vrot.lane.b32.xlu0 %v958, 56
        %v1220 = vpop.permute.xlu0 %1219
        %v1223 = vsel %vm964, %v1218, 0
        %1225 = vmatprep.subr.mxu0 0.0
        %1226 = vmatpush1.msra.mxu0 %v1220
        %1227 = vmatprep.subr.mxu0 0.0
        %1228 = vmatpush1.msra.mxu0 0.0
        %1229 = vmatprep.subr.mxu0 0.0
        %1230 = vmatpush1.msra.mxu0 0.0
        %1231 = vmatprep.subr.mxu0 0.0
        %1232 = vmatpush1.msra.mxu0 0.0
        %1233 = vmatprep.subr.mxu0 0.0
        %1234 = vmatpush1.msra.mxu0 0.0
        %1235 = vmatprep.subr.mxu0 0.0
        %1236 = vmatpush1.msra.mxu0 0.0
        %1237 = vmatprep.subr.mxu0 0.0
        %1238 = vmatpush1.msra.mxu0 0.0
        %1239 = vmatprep.subr.mxu0 0.0
        %1240 = vmatpush1.msra.mxu0 0.0
        %1241 = vmatprep.subr.mxu0 0.0
        %1242 = vmatpush1.msra.mxu0 0.0
        %1243 = vmatprep.subr.mxu0 0.0
        %1244 = vmatpush1.msra.mxu0 0.0
        %1245 = vmatprep.subr.mxu0 0.0
        %1246 = vmatpush1.msra.mxu0 0.0
        %1247 = vmatprep.subr.mxu0 0.0
        %1248 = vmatpush1.msra.mxu0 0.0
        %1249 = vmatprep.subr.mxu0 0.0
        %1250 = vmatpush1.msra.mxu0 0.0
        %1251 = vmatprep.subr.mxu0 0.0
        %1252 = vmatpush1.msra.mxu0 0.0
        %1253 = vmatprep.subr.mxu0 0.0
        %1254 = vmatpush1.msra.mxu0 0.0
        %1255 = vmatprep.subr.mxu0 0.0
        %1256 = vmatpush1.msra.mxu0 0.0
        %1257 = vmatprep.subr.mxu0 0.0
        %1258 = vmatpush1.msra.mxu0 0.0
        %1259 = vmatprep.subr.mxu0 0.0
        %1260 = vmatpush1.msra.mxu0 0.0
        %1261 = vmatprep.subr.mxu0 0.0
        %1262 = vmatpush1.msra.mxu0 0.0
        %1263 = vmatprep.subr.mxu0 0.0
        %1264 = vmatpush1.msra.mxu0 0.0
        %1265 = vmatprep.subr.mxu0 0.0
        %1266 = vmatpush1.msra.mxu0 0.0
        %1267 = vmatprep.subr.mxu0 0.0
        %1268 = vmatpush1.msra.mxu0 0.0
        %1269 = vmatprep.subr.mxu0 0.0
        %1270 = vmatpush1.msra.mxu0 0.0
        %1271 = vmatprep.subr.mxu0 0.0
        %1272 = vmatpush1.msra.mxu0 0.0
        %1273 = vmatprep.subr.mxu0 0.0
        %1274 = vmatpush1.msra.mxu0 0.0
        %1275 = vmatprep.subr.mxu0 0.0
        %1276 = vmatpush1.msra.mxu0 0.0
        %1277 = vmatprep.subr.mxu0 0.0
        %1278 = vmatpush1.msra.mxu0 0.0
        %1279 = vmatprep.subr.mxu0 0.0
        %1280 = vmatpush1.msra.mxu0 0.0
        %1281 = vmatprep.subr.mxu0 0.0
        %1282 = vmatpush1.msra.mxu0 0.0
        %1283 = vmatprep.subr.mxu0 0.0
        %1284 = vmatpush1.msra.mxu0 0.0
        %1285 = vmatprep.subr.mxu0 0.0
        %1286 = vmatpush1.msra.mxu0 0.0
        %1287 = vmatprep.subr.mxu0 0.0
        %1288 = vmatpush1.msra.mxu0 0.0
        %1289 = vmatprep.mubr.f32.mxu0 0.0
        %1290 = vmatmul.mubr.f32.gmra.mrb[0].mxu0 %v1223
        %v1291 = vpop.f32.mrb[0].mxu0
        %v1292 = vadd.f32 0.0, %v1291
        %v1293 = vpop.f32.mrb[0].mxu0
        %1294 = vdwg.mxu0
        %v1296 = vsel %vm964, %v1292, 0
        %1298 = vmatprep.subr.mxu0 0.0
        %1299 = vmatpush1.msra.mxu0 %v882
        %1300 = vmatprep.subr.mxu0 0.0
        %1301 = vmatpush1.msra.mxu0 0.0
        %1302 = vmatprep.subr.mxu0 0.0
        %1303 = vmatpush1.msra.mxu0 0.0
        %1304 = vmatprep.subr.mxu0 0.0
        %1305 = vmatpush1.msra.mxu0 0.0
        %1306 = vmatprep.subr.mxu0 0.0
        %1307 = vmatpush1.msra.mxu0 0.0
        %1308 = vmatprep.subr.mxu0 0.0
        %1309 = vmatpush1.msra.mxu0 0.0
        %1310 = vmatprep.subr.mxu0 0.0
        %1311 = vmatpush1.msra.mxu0 0.0
        %1312 = vmatprep.subr.mxu0 0.0
        %1313 = vmatpush1.msra.mxu0 0.0
        %1314 = vmatprep.subr.mxu0 0.0
        %1315 = vmatpush1.msra.mxu0 0.0
        %1316 = vmatprep.subr.mxu0 0.0
        %1317 = vmatpush1.msra.mxu0 0.0
        %1318 = vmatprep.subr.mxu0 0.0
        %1319 = vmatpush1.msra.mxu0 0.0
        %1320 = vmatprep.subr.mxu0 0.0
        %1321 = vmatpush1.msra.mxu0 0.0
        %1322 = vmatprep.subr.mxu0 0.0
        %1323 = vmatpush1.msra.mxu0 0.0
        %1324 = vmatprep.subr.mxu0 0.0
        %1325 = vmatpush1.msra.mxu0 0.0
        %1326 = vmatprep.subr.mxu0 0.0
        %1327 = vmatpush1.msra.mxu0 0.0
        %1328 = vmatprep.subr.mxu0 0.0
        %1329 = vmatpush1.msra.mxu0 0.0
        %1330 = vmatprep.subr.mxu0 0.0
        %1331 = vmatpush1.msra.mxu0 0.0
        %1332 = vmatprep.subr.mxu0 0.0
        %1333 = vmatpush1.msra.mxu0 0.0
        %1334 = vmatprep.subr.mxu0 0.0
        %1335 = vmatpush1.msra.mxu0 0.0
        %1336 = vmatprep.subr.mxu0 0.0
        %1337 = vmatpush1.msra.mxu0 0.0
        %1338 = vmatprep.subr.mxu0 0.0
        %1339 = vmatpush1.msra.mxu0 0.0
        %1340 = vmatprep.subr.mxu0 0.0
        %1341 = vmatpush1.msra.mxu0 0.0
        %1342 = vmatprep.subr.mxu0 0.0
        %1343 = vmatpush1.msra.mxu0 0.0
        %1344 = vmatprep.subr.mxu0 0.0
        %1345 = vmatpush1.msra.mxu0 0.0
        %1346 = vmatprep.subr.mxu0 0.0
        %1347 = vmatpush1.msra.mxu0 0.0
        %1348 = vmatprep.subr.mxu0 0.0
        %1349 = vmatpush1.msra.mxu0 0.0
        %1350 = vmatprep.subr.mxu0 0.0
        %1351 = vmatpush1.msra.mxu0 0.0
        %1352 = vmatprep.subr.mxu0 0.0
        %1353 = vmatpush1.msra.mxu0 0.0
        %1354 = vmatprep.subr.mxu0 0.0
        %1355 = vmatpush1.msra.mxu0 0.0
        %1356 = vmatprep.subr.mxu0 0.0
        %1357 = vmatpush1.msra.mxu0 0.0
        %1358 = vmatprep.subr.mxu0 0.0
        %1359 = vmatpush1.msra.mxu0 0.0
        %1360 = vmatprep.subr.mxu0 0.0
        %1361 = vmatpush1.msra.mxu0 0.0
        %1362 = vmatprep.mubr.f32.mxu0 0.0
        %1363 = vmatmul.mubr.f32.gmra.mrb[0].mxu0 %v1296
        %v1364 = vpop.f32.mrb[0].mxu0
        %v1365 = vadd.f32 0.0, %v1364
        %v1366 = vpop.f32.mrb[0].mxu0
        %1367 = vdwg.mxu0
        %v1369 = vsel %vm964, %v1125, 0
        %1371 = vmatprep.subr.mxu0 0.0
        %1372 = vmatpush1.msra.mxu0 %v881
        %1373 = vmatprep.subr.mxu0 0.0
        %1374 = vmatpush1.msra.mxu0 0.0
        %1375 = vmatprep.subr.mxu0 0.0
        %1376 = vmatpush1.msra.mxu0 0.0
        %1377 = vmatprep.subr.mxu0 0.0
        %1378 = vmatpush1.msra.mxu0 0.0
        %1379 = vmatprep.subr.mxu0 0.0
        %1380 = vmatpush1.msra.mxu0 0.0
        %1381 = vmatprep.subr.mxu0 0.0
        %1382 = vmatpush1.msra.mxu0 0.0
        %1383 = vmatprep.subr.mxu0 0.0
        %1384 = vmatpush1.msra.mxu0 0.0
        %1385 = vmatprep.subr.mxu0 0.0
        %1386 = vmatpush1.msra.mxu0 0.0
        %1387 = vmatprep.subr.mxu0 0.0
        %1388 = vmatpush1.msra.mxu0 0.0
        %1389 = vmatprep.subr.mxu0 0.0
        %1390 = vmatpush1.msra.mxu0 0.0
        %1391 = vmatprep.subr.mxu0 0.0
        %1392 = vmatpush1.msra.mxu0 0.0
        %1393 = vmatprep.subr.mxu0 0.0
        %1394 = vmatpush1.msra.mxu0 0.0
        %1395 = vmatprep.subr.mxu0 0.0
        %1396 = vmatpush1.msra.mxu0 0.0
        %1397 = vmatprep.subr.mxu0 0.0
        %1398 = vmatpush1.msra.mxu0 0.0
        %1399 = vmatprep.subr.mxu0 0.0
        %1400 = vmatpush1.msra.mxu0 0.0
        %1401 = vmatprep.subr.mxu0 0.0
        %1402 = vmatpush1.msra.mxu0 0.0
        %1403 = vmatprep.subr.mxu0 0.0
        %1404 = vmatpush1.msra.mxu0 0.0
        %1405 = vmatprep.subr.mxu0 0.0
        %1406 = vmatpush1.msra.mxu0 0.0
        %1407 = vmatprep.subr.mxu0 0.0
        %1408 = vmatpush1.msra.mxu0 0.0
        %1409 = vmatprep.subr.mxu0 0.0
        %1410 = vmatpush1.msra.mxu0 0.0
        %1411 = vmatprep.subr.mxu0 0.0
        %1412 = vmatpush1.msra.mxu0 0.0
        %1413 = vmatprep.subr.mxu0 0.0
        %1414 = vmatpush1.msra.mxu0 0.0
        %1415 = vmatprep.subr.mxu0 0.0
        %1416 = vmatpush1.msra.mxu0 0.0
        %1417 = vmatprep.subr.mxu0 0.0
        %1418 = vmatpush1.msra.mxu0 0.0
        %1419 = vmatprep.subr.mxu0 0.0
        %1420 = vmatpush1.msra.mxu0 0.0
        %1421 = vmatprep.subr.mxu0 0.0
        %1422 = vmatpush1.msra.mxu0 0.0
        %1423 = vmatprep.subr.mxu0 0.0
        %1424 = vmatpush1.msra.mxu0 0.0
        %1425 = vmatprep.subr.mxu0 0.0
        %1426 = vmatpush1.msra.mxu0 0.0
        %1427 = vmatprep.subr.mxu0 0.0
        %1428 = vmatpush1.msra.mxu0 0.0
        %1429 = vmatprep.subr.mxu0 0.0
        %1430 = vmatpush1.msra.mxu0 0.0
        %1431 = vmatprep.subr.mxu0 0.0
        %1432 = vmatpush1.msra.mxu0 0.0
        %1433 = vmatprep.subr.mxu0 0.0
        %1434 = vmatpush1.msra.mxu0 0.0
        %1435 = vmatprep.mubr.f32.mxu0 0.0
        %1436 = vmatmul.mubr.f32.gmra.mrb[0].mxu0 %v1369
        %v1437 = vpop.f32.mrb[0].mxu0
        %v1438 = vadd.f32 %v1365, %v1437
        %v1439 = vpop.f32.mrb[0].mxu0
        %1440 = vdwg.mxu0
        %1441 = vrot.lane.b32.xlu0 %v958, 112
        %v1442 = vpop.permute.xlu0 %1441
        %1443 = vrot.lane.b32.xlu0 %v958, 80
        %v1444 = vpop.permute.xlu0 %1443
        %v1445 = vsel %vm964, %v1442, 0
        %v1447 = vsel %vm964, %v1444, 0
        %1449 = vmatprep.subr.mxu0 0.0
        %1450 = vmatpush1.xpose.msra.mxu0 %v1447
        %1451 = vmatprep.subr.mxu0 0.0
        %1452 = vmatpush1.xpose.msra.mxu0 0.0
        %1453 = vmatprep.subr.mxu0 0.0
        %1454 = vmatpush1.xpose.msra.mxu0 0.0
        %1455 = vmatprep.subr.mxu0 0.0
        %1456 = vmatpush1.xpose.msra.mxu0 0.0
        %1457 = vmatprep.subr.mxu0 0.0
        %1458 = vmatpush1.xpose.msra.mxu0 0.0
        %1459 = vmatprep.subr.mxu0 0.0
        %1460 = vmatpush1.xpose.msra.mxu0 0.0
        %1461 = vmatprep.subr.mxu0 0.0
        %1462 = vmatpush1.xpose.msra.mxu0 0.0
        %1463 = vmatprep.subr.mxu0 0.0
        %1464 = vmatpush1.xpose.msra.mxu0 0.0
        %1465 = vmatprep.subr.mxu0 0.0
        %1466 = vmatpush1.xpose.msra.mxu0 0.0
        %1467 = vmatprep.subr.mxu0 0.0
        %1468 = vmatpush1.xpose.msra.mxu0 0.0
        %1469 = vmatprep.subr.mxu0 0.0
        %1470 = vmatpush1.xpose.msra.mxu0 0.0
        %1471 = vmatprep.subr.mxu0 0.0
        %1472 = vmatpush1.xpose.msra.mxu0 0.0
        %1473 = vmatprep.subr.mxu0 0.0
        %1474 = vmatpush1.xpose.msra.mxu0 0.0
        %1475 = vmatprep.subr.mxu0 0.0
        %1476 = vmatpush1.xpose.msra.mxu0 0.0
        %1477 = vmatprep.subr.mxu0 0.0
        %1478 = vmatpush1.xpose.msra.mxu0 0.0
        %1479 = vmatprep.subr.mxu0 0.0
        %1480 = vmatpush1.xpose.msra.mxu0 0.0
        %1481 = vmatprep.subr.mxu0 0.0
        %1482 = vmatpush1.xpose.msra.mxu0 0.0
        %1483 = vmatprep.subr.mxu0 0.0
        %1484 = vmatpush1.xpose.msra.mxu0 0.0
        %1485 = vmatprep.subr.mxu0 0.0
        %1486 = vmatpush1.xpose.msra.mxu0 0.0
        %1487 = vmatprep.subr.mxu0 0.0
        %1488 = vmatpush1.xpose.msra.mxu0 0.0
        %1489 = vmatprep.subr.mxu0 0.0
        %1490 = vmatpush1.xpose.msra.mxu0 0.0
        %1491 = vmatprep.subr.mxu0 0.0
        %1492 = vmatpush1.xpose.msra.mxu0 0.0
        %1493 = vmatprep.subr.mxu0 0.0
        %1494 = vmatpush1.xpose.msra.mxu0 0.0
        %1495 = vmatprep.subr.mxu0 0.0
        %1496 = vmatpush1.xpose.msra.mxu0 0.0
        %1497 = vmatprep.subr.mxu0 0.0
        %1498 = vmatpush1.xpose.msra.mxu0 0.0
        %1499 = vmatprep.subr.mxu0 0.0
        %1500 = vmatpush1.xpose.msra.mxu0 0.0
        %1501 = vmatprep.subr.mxu0 0.0
        %1502 = vmatpush1.xpose.msra.mxu0 0.0
        %1503 = vmatprep.subr.mxu0 0.0
        %1504 = vmatpush1.xpose.msra.mxu0 0.0
        %1505 = vmatprep.subr.mxu0 0.0
        %1506 = vmatpush1.xpose.msra.mxu0 0.0
        %1507 = vmatprep.subr.mxu0 0.0
        %1508 = vmatpush1.xpose.msra.mxu0 0.0
        %1509 = vmatprep.subr.mxu0 0.0
        %1510 = vmatpush1.xpose.msra.mxu0 0.0
        %1511 = vmatprep.subr.mxu0 0.0
        %1512 = vmatpush1.xpose.msra.mxu0 0.0
        %1513 = vmatprep.mubr.f32.mxu0 0.0
        %1514 = vmatmul.mubr.f32.gmra.mrb[0].mxu0 %v1445
        %v1515 = vpop.f32.mrb[0].mxu0
        %v1516 = vadd.f32 0.0, %v1515
        %v1517 = vpop.f32.mrb[0].mxu0
        %1518 = vdwg.mxu0
        %v1519 = vmul.f32 %v1516, 0.35355338
        %v1520 = vsel %vm873, %v1519, -1000000.0
        %v1521 = vsel %vm964, %v1520, -inf
        %1522 = vmax.xlane.f32.xlu0 %v1521
        %v1523 = vpop.xlane.xlu0 %1522
        %v1524 = vsub.f32 %v1520, %v1523
        %v1525 = vmul.f32 %v1524, 1.442695
        %v1526 = vpow.pop %v1525
        %v1527 = vsel %vm964, %v1526, 0.0
        %1528 = vadd.xlane.f32.xlu0 %v1527
        %v1529 = vpop.xlane.xlu0 %1528
        %v1530 = vrcp.pop %v1529
        %v1531 = vmul.f32 %v1526, %v1530
        %1532 = vrot.lane.b32.xlu0 %v958, 48
        %v1533 = vpop.permute.xlu0 %1532
        %v1536 = vsel %vm964, %v1531, 0
        %1538 = vmatprep.subr.mxu0 0.0
        %1539 = vmatpush1.msra.mxu0 %v1533
        %1540 = vmatprep.subr.mxu0 0.0
        %1541 = vmatpush1.msra.mxu0 0.0
        %1542 = vmatprep.subr.mxu0 0.0
        %1543 = vmatpush1.msra.mxu0 0.0
        %1544 = vmatprep.subr.mxu0 0.0
        %1545 = vmatpush1.msra.mxu0 0.0
        %1546 = vmatprep.subr.mxu0 0.0
        %1547 = vmatpush1.msra.mxu0 0.0
        %1548 = vmatprep.subr.mxu0 0.0
        %1549 = vmatpush1.msra.mxu0 0.0
        %1550 = vmatprep.subr.mxu0 0.0
        %1551 = vmatpush1.msra.mxu0 0.0
        %1552 = vmatprep.subr.mxu0 0.0
        %1553 = vmatpush1.msra.mxu0 0.0
        %1554 = vmatprep.subr.mxu0 0.0
        %1555 = vmatpush1.msra.mxu0 0.0
        %1556 = vmatprep.subr.mxu0 0.0
        %1557 = vmatpush1.msra.mxu0 0.0
        %1558 = vmatprep.subr.mxu0 0.0
        %1559 = vmatpush1.msra.mxu0 0.0
        %1560 = vmatprep.subr.mxu0 0.0
        %1561 = vmatpush1.msra.mxu0 0.0
        %1562 = vmatprep.subr.mxu0 0.0
        %1563 = vmatpush1.msra.mxu0 0.0
        %1564 = vmatprep.subr.mxu0 0.0
        %1565 = vmatpush1.msra.mxu0 0.0
        %1566 = vmatprep.subr.mxu0 0.0
        %1567 = vmatpush1.msra.mxu0 0.0
        %1568 = vmatprep.subr.mxu0 0.0
        %1569 = vmatpush1.msra.mxu0 0.0
        %1570 = vmatprep.subr.mxu0 0.0
        %1571 = vmatpush1.msra.mxu0 0.0
        %1572 = vmatprep.subr.mxu0 0.0
        %1573 = vmatpush1.msra.mxu0 0.0
        %1574 = vmatprep.subr.mxu0 0.0
        %1575 = vmatpush1.msra.mxu0 0.0
        %1576 = vmatprep.subr.mxu0 0.0
        %1577 = vmatpush1.msra.mxu0 0.0
        %1578 = vmatprep.subr.mxu0 0.0
        %1579 = vmatpush1.msra.mxu0 0.0
        %1580 = vmatprep.subr.mxu0 0.0
        %1581 = vmatpush1.msra.mxu0 0.0
        %1582 = vmatprep.subr.mxu0 0.0
        %1583 = vmatpush1.msra.mxu0 0.0
        %1584 = vmatprep.subr.mxu0 0.0
        %1585 = vmatpush1.msra.mxu0 0.0
        %1586 = vmatprep.subr.mxu0 0.0
        %1587 = vmatpush1.msra.mxu0 0.0
        %1588 = vmatprep.subr.mxu0 0.0
        %1589 = vmatpush1.msra.mxu0 0.0
        %1590 = vmatprep.subr.mxu0 0.0
        %1591 = vmatpush1.msra.mxu0 0.0
        %1592 = vmatprep.subr.mxu0 0.0
        %1593 = vmatpush1.msra.mxu0 0.0
        %1594 = vmatprep.subr.mxu0 0.0
        %1595 = vmatpush1.msra.mxu0 0.0
        %1596 = vmatprep.subr.mxu0 0.0
        %1597 = vmatpush1.msra.mxu0 0.0
        %1598 = vmatprep.subr.mxu0 0.0
        %1599 = vmatpush1.msra.mxu0 0.0
        %1600 = vmatprep.subr.mxu0 0.0
        %1601 = vmatpush1.msra.mxu0 0.0
        %1602 = vmatprep.mubr.f32.mxu0 0.0
        %1603 = vmatmul.mubr.f32.gmra.mrb[0].mxu0 %v1536
        %v1604 = vpop.f32.mrb[0].mxu0
        %v1605 = vadd.f32 0.0, %v1604
        %v1606 = vpop.f32.mrb[0].mxu0
        %1607 = vdwg.mxu0
        %v1609 = vsel %vm964, %v1605, 0
        %1611 = vmatprep.subr.mxu0 0.0
        %1612 = vmatpush1.msra.mxu0 %v883
        %1613 = vmatprep.subr.mxu0 0.0
        %1614 = vmatpush1.msra.mxu0 0.0
        %1615 = vmatprep.subr.mxu0 0.0
        %1616 = vmatpush1.msra.mxu0 0.0
        %1617 = vmatprep.subr.mxu0 0.0
        %1618 = vmatpush1.msra.mxu0 0.0
        %1619 = vmatprep.subr.mxu0 0.0
        %1620 = vmatpush1.msra.mxu0 0.0
        %1621 = vmatprep.subr.mxu0 0.0
        %1622 = vmatpush1.msra.mxu0 0.0
        %1623 = vmatprep.subr.mxu0 0.0
        %1624 = vmatpush1.msra.mxu0 0.0
        %1625 = vmatprep.subr.mxu0 0.0
        %1626 = vmatpush1.msra.mxu0 0.0
        %1627 = vmatprep.subr.mxu0 0.0
        %1628 = vmatpush1.msra.mxu0 0.0
        %1629 = vmatprep.subr.mxu0 0.0
        %1630 = vmatpush1.msra.mxu0 0.0
        %1631 = vmatprep.subr.mxu0 0.0
        %1632 = vmatpush1.msra.mxu0 0.0
        %1633 = vmatprep.subr.mxu0 0.0
        %1634 = vmatpush1.msra.mxu0 0.0
        %1635 = vmatprep.subr.mxu0 0.0
        %1636 = vmatpush1.msra.mxu0 0.0
        %1637 = vmatprep.subr.mxu0 0.0
        %1638 = vmatpush1.msra.mxu0 0.0
        %1639 = vmatprep.subr.mxu0 0.0
        %1640 = vmatpush1.msra.mxu0 0.0
        %1641 = vmatprep.subr.mxu0 0.0
        %1642 = vmatpush1.msra.mxu0 0.0
        %1643 = vmatprep.subr.mxu0 0.0
        %1644 = vmatpush1.msra.mxu0 0.0
        %1645 = vmatprep.subr.mxu0 0.0
        %1646 = vmatpush1.msra.mxu0 0.0
        %1647 = vmatprep.subr.mxu0 0.0
        %1648 = vmatpush1.msra.mxu0 0.0
        %1649 = vmatprep.subr.mxu0 0.0
        %1650 = vmatpush1.msra.mxu0 0.0
        %1651 = vmatprep.subr.mxu0 0.0
        %1652 = vmatpush1.msra.mxu0 0.0
        %1653 = vmatprep.subr.mxu0 0.0
        %1654 = vmatpush1.msra.mxu0 0.0
        %1655 = vmatprep.subr.mxu0 0.0
        %1656 = vmatpush1.msra.mxu0 0.0
        %1657 = vmatprep.subr.mxu0 0.0
        %1658 = vmatpush1.msra.mxu0 0.0
        %1659 = vmatprep.subr.mxu0 0.0
        %1660 = vmatpush1.msra.mxu0 0.0
        %1661 = vmatprep.subr.mxu0 0.0
        %1662 = vmatpush1.msra.mxu0 0.0
        %1663 = vmatprep.subr.mxu0 0.0
        %1664 = vmatpush1.msra.mxu0 0.0
        %1665 = vmatprep.subr.mxu0 0.0
        %1666 = vmatpush1.msra.mxu0 0.0
        %1667 = vmatprep.subr.mxu0 0.0
        %1668 = vmatpush1.msra.mxu0 0.0
        %1669 = vmatprep.subr.mxu0 0.0
        %1670 = vmatpush1.msra.mxu0 0.0
        %1671 = vmatprep.subr.mxu0 0.0
        %1672 = vmatpush1.msra.mxu0 0.0
        %1673 = vmatprep.subr.mxu0 0.0
        %1674 = vmatpush1.msra.mxu0 0.0
        %1675 = vmatprep.mubr.f32.mxu0 0.0
        %1676 = vmatmul.mubr.f32.gmra.mrb[0].mxu0 %v1609
        %v1677 = vpop.f32.mrb[0].mxu0
        %v1678 = vadd.f32 0.0, %v1677
        %v1679 = vpop.f32.mrb[0].mxu0
        %1680 = vdwg.mxu0
        %v1681 = vadd.f32 %v1438, %v1678
        %1682 = vrot.lane.b32.xlu0 %v958, 104
        %v1683 = vpop.permute.xlu0 %1682
        %1684 = vrot.lane.b32.xlu0 %v958, 72
        %v1685 = vpop.permute.xlu0 %1684
        %v1686 = vsel %vm964, %v1683, 0
        %v1688 = vsel %vm964, %v1685, 0
        %1690 = vmatprep.subr.mxu0 0.0
        %1691 = vmatpush1.xpose.msra.mxu0 %v1688
        %1692 = vmatprep.subr.mxu0 0.0
        %1693 = vmatpush1.xpose.msra.mxu0 0.0
        %1694 = vmatprep.subr.mxu0 0.0
        %1695 = vmatpush1.xpose.msra.mxu0 0.0
        %1696 = vmatprep.subr.mxu0 0.0
        %1697 = vmatpush1.xpose.msra.mxu0 0.0
        %1698 = vmatprep.subr.mxu0 0.0
        %1699 = vmatpush1.xpose.msra.mxu0 0.0
        %1700 = vmatprep.subr.mxu0 0.0
        %1701 = vmatpush1.xpose.msra.mxu0 0.0
        %1702 = vmatprep.subr.mxu0 0.0
        %1703 = vmatpush1.xpose.msra.mxu0 0.0
        %1704 = vmatprep.subr.mxu0 0.0
        %1705 = vmatpush1.xpose.msra.mxu0 0.0
        %1706 = vmatprep.subr.mxu0 0.0
        %1707 = vmatpush1.xpose.msra.mxu0 0.0
        %1708 = vmatprep.subr.mxu0 0.0
        %1709 = vmatpush1.xpose.msra.mxu0 0.0
        %1710 = vmatprep.subr.mxu0 0.0
        %1711 = vmatpush1.xpose.msra.mxu0 0.0
        %1712 = vmatprep.subr.mxu0 0.0
        %1713 = vmatpush1.xpose.msra.mxu0 0.0
        %1714 = vmatprep.subr.mxu0 0.0
        %1715 = vmatpush1.xpose.msra.mxu0 0.0
        %1716 = vmatprep.subr.mxu0 0.0
        %1717 = vmatpush1.xpose.msra.mxu0 0.0
        %1718 = vmatprep.subr.mxu0 0.0
        %1719 = vmatpush1.xpose.msra.mxu0 0.0
        %1720 = vmatprep.subr.mxu0 0.0
        %1721 = vmatpush1.xpose.msra.mxu0 0.0
        %1722 = vmatprep.subr.mxu0 0.0
        %1723 = vmatpush1.xpose.msra.mxu0 0.0
        %1724 = vmatprep.subr.mxu0 0.0
        %1725 = vmatpush1.xpose.msra.mxu0 0.0
        %1726 = vmatprep.subr.mxu0 0.0
        %1727 = vmatpush1.xpose.msra.mxu0 0.0
        %1728 = vmatprep.subr.mxu0 0.0
        %1729 = vmatpush1.xpose.msra.mxu0 0.0
        %1730 = vmatprep.subr.mxu0 0.0
        %1731 = vmatpush1.xpose.msra.mxu0 0.0
        %1732 = vmatprep.subr.mxu0 0.0
        %1733 = vmatpush1.xpose.msra.mxu0 0.0
        %1734 = vmatprep.subr.mxu0 0.0
        %1735 = vmatpush1.xpose.msra.mxu0 0.0
        %1736 = vmatprep.subr.mxu0 0.0
        %1737 = vmatpush1.xpose.msra.mxu0 0.0
        %1738 = vmatprep.subr.mxu0 0.0
        %1739 = vmatpush1.xpose.msra.mxu0 0.0
        %1740 = vmatprep.subr.mxu0 0.0
        %1741 = vmatpush1.xpose.msra.mxu0 0.0
        %1742 = vmatprep.subr.mxu0 0.0
        %1743 = vmatpush1.xpose.msra.mxu0 0.0
        %1744 = vmatprep.subr.mxu0 0.0
        %1745 = vmatpush1.xpose.msra.mxu0 0.0
        %1746 = vmatprep.subr.mxu0 0.0
        %1747 = vmatpush1.xpose.msra.mxu0 0.0
        %1748 = vmatprep.subr.mxu0 0.0
        %1749 = vmatpush1.xpose.msra.mxu0 0.0
        %1750 = vmatprep.subr.mxu0 0.0
        %1751 = vmatpush1.xpose.msra.mxu0 0.0
        %1752 = vmatprep.subr.mxu0 0.0
        %1753 = vmatpush1.xpose.msra.mxu0 0.0
        %1754 = vmatprep.mubr.f32.mxu0 0.0
        %1755 = vmatmul.mubr.f32.gmra.mrb[0].mxu0 %v1686
        %v1756 = vpop.f32.mrb[0].mxu0
        %v1757 = vadd.f32 0.0, %v1756
        %v1758 = vpop.f32.mrb[0].mxu0
        %1759 = vdwg.mxu0
        %v1760 = vmul.f32 %v1757, 0.35355338
        %v1761 = vsel %vm873, %v1760, -1000000.0
        %v1762 = vsel %vm964, %v1761, -inf
        %1763 = vmax.xlane.f32.xlu0 %v1762
        %v1764 = vpop.xlane.xlu0 %1763
        %v1765 = vsub.f32 %v1761, %v1764
        %v1766 = vmul.f32 %v1765, 1.442695
        %v1767 = vpow.pop %v1766
        %v1768 = vsel %vm964, %v1767, 0.0
        %1769 = vadd.xlane.f32.xlu0 %v1768
        %v1770 = vpop.xlane.xlu0 %1769
        %v1771 = vrcp.pop %v1770
        %v1772 = vmul.f32 %v1767, %v1771
        %1773 = vrot.lane.b32.xlu0 %v958, 40
        %v1774 = vpop.permute.xlu0 %1773
        %v1777 = vsel %vm964, %v1772, 0
        %1779 = vmatprep.subr.mxu0 0.0
        %1780 = vmatpush1.msra.mxu0 %v1774
        %1781 = vmatprep.subr.mxu0 0.0
        %1782 = vmatpush1.msra.mxu0 0.0
        %1783 = vmatprep.subr.mxu0 0.0
        %1784 = vmatpush1.msra.mxu0 0.0
        %1785 = vmatprep.subr.mxu0 0.0
        %1786 = vmatpush1.msra.mxu0 0.0
        %1787 = vmatprep.subr.mxu0 0.0
        %1788 = vmatpush1.msra.mxu0 0.0
        %1789 = vmatprep.subr.mxu0 0.0
        %1790 = vmatpush1.msra.mxu0 0.0
        %1791 = vmatprep.subr.mxu0 0.0
        %1792 = vmatpush1.msra.mxu0 0.0
        %1793 = vmatprep.subr.mxu0 0.0
        %1794 = vmatpush1.msra.mxu0 0.0
        %1795 = vmatprep.subr.mxu0 0.0
        %1796 = vmatpush1.msra.mxu0 0.0
        %1797 = vmatprep.subr.mxu0 0.0
        %1798 = vmatpush1.msra.mxu0 0.0
        %1799 = vmatprep.subr.mxu0 0.0
        %1800 = vmatpush1.msra.mxu0 0.0
        %1801 = vmatprep.subr.mxu0 0.0
        %1802 = vmatpush1.msra.mxu0 0.0
        %1803 = vmatprep.subr.mxu0 0.0
        %1804 = vmatpush1.msra.mxu0 0.0
        %1805 = vmatprep.subr.mxu0 0.0
        %1806 = vmatpush1.msra.mxu0 0.0
        %1807 = vmatprep.subr.mxu0 0.0
        %1808 = vmatpush1.msra.mxu0 0.0
        %1809 = vmatprep.subr.mxu0 0.0
        %1810 = vmatpush1.msra.mxu0 0.0
        %1811 = vmatprep.subr.mxu0 0.0
        %1812 = vmatpush1.msra.mxu0 0.0
        %1813 = vmatprep.subr.mxu0 0.0
        %1814 = vmatpush1.msra.mxu0 0.0
        %1815 = vmatprep.subr.mxu0 0.0
        %1816 = vmatpush1.msra.mxu0 0.0
        %1817 = vmatprep.subr.mxu0 0.0
        %1818 = vmatpush1.msra.mxu0 0.0
        %1819 = vmatprep.subr.mxu0 0.0
        %1820 = vmatpush1.msra.mxu0 0.0
        %1821 = vmatprep.subr.mxu0 0.0
        %1822 = vmatpush1.msra.mxu0 0.0
        %1823 = vmatprep.subr.mxu0 0.0
        %1824 = vmatpush1.msra.mxu0 0.0
        %1825 = vmatprep.subr.mxu0 0.0
        %1826 = vmatpush1.msra.mxu0 0.0
        %1827 = vmatprep.subr.mxu0 0.0
        %1828 = vmatpush1.msra.mxu0 0.0
        %1829 = vmatprep.subr.mxu0 0.0
        %1830 = vmatpush1.msra.mxu0 0.0
        %1831 = vmatprep.subr.mxu0 0.0
        %1832 = vmatpush1.msra.mxu0 0.0
        %1833 = vmatprep.subr.mxu0 0.0
        %1834 = vmatpush1.msra.mxu0 0.0
        %1835 = vmatprep.subr.mxu0 0.0
        %1836 = vmatpush1.msra.mxu0 0.0
        %1837 = vmatprep.subr.mxu0 0.0
        %1838 = vmatpush1.msra.mxu0 0.0
        %1839 = vmatprep.subr.mxu0 0.0
        %1840 = vmatpush1.msra.mxu0 0.0
        %1841 = vmatprep.subr.mxu0 0.0
        %1842 = vmatpush1.msra.mxu0 0.0
        %1843 = vmatprep.mubr.f32.mxu0 0.0
        %1844 = vmatmul.mubr.f32.gmra.mrb[0].mxu0 %v1777
        %v1845 = vpop.f32.mrb[0].mxu0
        %v1846 = vadd.f32 0.0, %v1845
        %v1847 = vpop.f32.mrb[0].mxu0
        %1848 = vdwg.mxu0
        %v1850 = vsel %vm964, %v1846, 0
        %1852 = vmatprep.subr.mxu0 0.0
        %1853 = vmatpush1.msra.mxu0 %v884
        %1854 = vmatprep.subr.mxu0 0.0
        %1855 = vmatpush1.msra.mxu0 0.0
        %1856 = vmatprep.subr.mxu0 0.0
        %1857 = vmatpush1.msra.mxu0 0.0
        %1858 = vmatprep.subr.mxu0 0.0
        %1859 = vmatpush1.msra.mxu0 0.0
        %1860 = vmatprep.subr.mxu0 0.0
        %1861 = vmatpush1.msra.mxu0 0.0
        %1862 = vmatprep.subr.mxu0 0.0
        %1863 = vmatpush1.msra.mxu0 0.0
        %1864 = vmatprep.subr.mxu0 0.0
        %1865 = vmatpush1.msra.mxu0 0.0
        %1866 = vmatprep.subr.mxu0 0.0
        %1867 = vmatpush1.msra.mxu0 0.0
        %1868 = vmatprep.subr.mxu0 0.0
        %1869 = vmatpush1.msra.mxu0 0.0
        %1870 = vmatprep.subr.mxu0 0.0
        %1871 = vmatpush1.msra.mxu0 0.0
        %1872 = vmatprep.subr.mxu0 0.0
        %1873 = vmatpush1.msra.mxu0 0.0
        %1874 = vmatprep.subr.mxu0 0.0
        %1875 = vmatpush1.msra.mxu0 0.0
        %1876 = vmatprep.subr.mxu0 0.0
        %1877 = vmatpush1.msra.mxu0 0.0
        %1878 = vmatprep.subr.mxu0 0.0
        %1879 = vmatpush1.msra.mxu0 0.0
        %1880 = vmatprep.subr.mxu0 0.0
        %1881 = vmatpush1.msra.mxu0 0.0
        %1882 = vmatprep.subr.mxu0 0.0
        %1883 = vmatpush1.msra.mxu0 0.0
        %1884 = vmatprep.subr.mxu0 0.0
        %1885 = vmatpush1.msra.mxu0 0.0
        %1886 = vmatprep.subr.mxu0 0.0
        %1887 = vmatpush1.msra.mxu0 0.0
        %1888 = vmatprep.subr.mxu0 0.0
        %1889 = vmatpush1.msra.mxu0 0.0
        %1890 = vmatprep.subr.mxu0 0.0
        %1891 = vmatpush1.msra.mxu0 0.0
        %1892 = vmatprep.subr.mxu0 0.0
        %1893 = vmatpush1.msra.mxu0 0.0
        %1894 = vmatprep.subr.mxu0 0.0
        %1895 = vmatpush1.msra.mxu0 0.0
        %1896 = vmatprep.subr.mxu0 0.0
        %1897 = vmatpush1.msra.mxu0 0.0
        %1898 = vmatprep.subr.mxu0 0.0
        %1899 = vmatpush1.msra.mxu0 0.0
        %1900 = vmatprep.subr.mxu0 0.0
        %1901 = vmatpush1.msra.mxu0 0.0
        %1902 = vmatprep.subr.mxu0 0.0
        %1903 = vmatpush1.msra.mxu0 0.0
        %1904 = vmatprep.subr.mxu0 0.0
        %1905 = vmatpush1.msra.mxu0 0.0
        %1906 = vmatprep.subr.mxu0 0.0
        %1907 = vmatpush1.msra.mxu0 0.0
        %1908 = vmatprep.subr.mxu0 0.0
        %1909 = vmatpush1.msra.mxu0 0.0
        %1910 = vmatprep.subr.mxu0 0.0
        %1911 = vmatpush1.msra.mxu0 0.0
        %1912 = vmatprep.subr.mxu0 0.0
        %1913 = vmatpush1.msra.mxu0 0.0
        %1914 = vmatprep.subr.mxu0 0.0
        %1915 = vmatpush1.msra.mxu0 0.0
        %1916 = vmatprep.mubr.f32.mxu0 0.0
        %1917 = vmatmul.mubr.f32.gmra.mrb[0].mxu0 %v1850
        %v1918 = vpop.f32.mrb[0].mxu0
        %v1919 = vadd.f32 0.0, %v1918
        %v1920 = vpop.f32.mrb[0].mxu0
        %1921 = vdwg.mxu0
        %v1922 = vadd.f32 %v1681, %v1919
        %v1923 = vadd.f32 %v1922, %v867
        %v1924 = vsel %vm887, %v1923, 0.0
        %1925 = vadd.xlane.f32.xlu0 %v1924
        %v1926 = vpop.xlane.xlu0 %1925
        %v1927 = vrcp.pop 32.0
        %v1928 = vmul.f32 %v1926, %v1927
        %v1929 = vsub.f32 %v1923, %v1928
        %v1930 = vmul.f32 %v1929, %v1929
        %v1931 = vsel %vm887, %v1930, 0.0
        %1932 = vadd.xlane.f32.xlu0 %v1931
        %v1933 = vpop.xlane.xlu0 %1932
        %v1934 = vmul.f32 %v1933, %v1927
        %v1935 = vadd.f32 %v1934, 1e-05
        %v1936 = vrsqrt.pop %v1935
        %v1937 = vmul.f32 %v1929, %v1936
        %v1939 = vlaneseq
        %v1940 = vshrl.u32 %v1939, 7
        %v1941 = vsub.s32 0, %v1940
        %v1942 = vrot.slane %v885, %v1941
        %v1944 = vmul.f32 %v1937, %v1942
        %v1946 = vlaneseq
        %v1947 = vshrl.u32 %v1946, 7
        %v1948 = vsub.s32 0, %v1947
        %v1949 = vrot.slane %v886, %v1948
        %v1951 = vadd.f32 %v1944, %v1949
        %v1952 = vld [vmem:[%s836] sm:$0xff]
        %v1953 = vld [vmem:[%s836 + $0x8] sm:$0xff]
        %v1954 = vld [vmem:[%s836 + $0x10] sm:$0xff]
        %v1955 = vld [vmem:[%s836 + $0x18] sm:$0xff]
        %v1956 = vld [vmem:[%s699] sm:$0xff]
        %v1957 = vld [vmem:[%s699 + $0x8] sm:$0xff]
        %v1958 = vld [vmem:[%s699 + $0x10] sm:$0xff]
        %v1959 = vld [vmem:[%s699 + $0x18] sm:$0xff]
        %v1960 = vld [vmem:[%s839] sm:$0x1]
        %v1961 = vld [vmem:[%s842] sm:$0x1]
        %v1963 = vsel %vm887, %v1951, 0
        %1965 = vmatprep.subr.mxu0 0.0
        %1966 = vmatpush1.msra.mxu0 %v1952
        %1967 = vmatprep.subr.mxu0 0.0
        %1968 = vmatpush1.msra.mxu0 %v1953
        %1969 = vmatprep.subr.mxu0 0.0
        %1970 = vmatpush1.msra.mxu0 %v1954
        %1971 = vmatprep.subr.mxu0 0.0
        %1972 = vmatpush1.msra.mxu0 %v1955
        %1973 = vmatprep.subr.mxu0 0.0
        %1974 = vmatpush1.msra.mxu0 0.0
        %1975 = vmatprep.subr.mxu0 0.0
        %1976 = vmatpush1.msra.mxu0 0.0
        %1977 = vmatprep.subr.mxu0 0.0
        %1978 = vmatpush1.msra.mxu0 0.0
        %1979 = vmatprep.subr.mxu0 0.0
        %1980 = vmatpush1.msra.mxu0 0.0
        %1981 = vmatprep.subr.mxu0 0.0
        %1982 = vmatpush1.msra.mxu0 0.0
        %1983 = vmatprep.subr.mxu0 0.0
        %1984 = vmatpush1.msra.mxu0 0.0
        %1985 = vmatprep.subr.mxu0 0.0
        %1986 = vmatpush1.msra.mxu0 0.0
        %1987 = vmatprep.subr.mxu0 0.0
        %1988 = vmatpush1.msra.mxu0 0.0
        %1989 = vmatprep.subr.mxu0 0.0
        %1990 = vmatpush1.msra.mxu0 0.0
        %1991 = vmatprep.subr.mxu0 0.0
        %1992 = vmatpush1.msra.mxu0 0.0
        %1993 = vmatprep.subr.mxu0 0.0
        %1994 = vmatpush1.msra.mxu0 0.0
        %1995 = vmatprep.subr.mxu0 0.0
        %1996 = vmatpush1.msra.mxu0 0.0
        %1997 = vmatprep.subr.mxu0 0.0
        %1998 = vmatpush1.msra.mxu0 0.0
        %1999 = vmatprep.subr.mxu0 0.0
        %2000 = vmatpush1.msra.mxu0 0.0
        %2001 = vmatprep.subr.mxu0 0.0
        %2002 = vmatpush1.msra.mxu0 0.0
        %2003 = vmatprep.subr.mxu0 0.0
        %2004 = vmatpush1.msra.mxu0 0.0
        %2005 = vmatprep.subr.mxu0 0.0
        %2006 = vmatpush1.msra.mxu0 0.0
        %2007 = vmatprep.subr.mxu0 0.0
        %2008 = vmatpush1.msra.mxu0 0.0
        %2009 = vmatprep.subr.mxu0 0.0
        %2010 = vmatpush1.msra.mxu0 0.0
        %2011 = vmatprep.subr.mxu0 0.0
        %2012 = vmatpush1.msra.mxu0 0.0
        %2013 = vmatprep.subr.mxu0 0.0
        %2014 = vmatpush1.msra.mxu0 0.0
        %2015 = vmatprep.subr.mxu0 0.0
        %2016 = vmatpush1.msra.mxu0 0.0
        %2017 = vmatprep.subr.mxu0 0.0
        %2018 = vmatpush1.msra.mxu0 0.0
        %2019 = vmatprep.subr.mxu0 0.0
        %2020 = vmatpush1.msra.mxu0 0.0
        %2021 = vmatprep.subr.mxu0 0.0
        %2022 = vmatpush1.msra.mxu0 0.0
        %2023 = vmatprep.subr.mxu0 0.0
        %2024 = vmatpush1.msra.mxu0 0.0
        %2025 = vmatprep.subr.mxu0 0.0
        %2026 = vmatpush1.msra.mxu0 0.0
        %2027 = vmatprep.subr.mxu0 0.0
        %2028 = vmatpush1.msra.mxu0 0.0
        %2029 = vmatprep.mubr.f32.mxu0 0.0
        %2030 = vmatmul.mubr.f32.gmra.mrb[0].mxu0 %v1963
        %v2031 = vpop.f32.mrb[0].mxu0
        %v2032 = vadd.f32 0.0, %v2031
        %v2033 = vpop.f32.mrb[0].mxu0
        %2034 = vdwg.mxu0
        %2039 = vrot.lane.b32.xlu0 %v1952, 96
        %v2040 = vpop.permute.xlu0 %2039
        %2041 = vrot.lane.b32.xlu0 %v1953, 96
        %v2042 = vpop.permute.xlu0 %2041
        %2043 = vrot.lane.b32.xlu0 %v1954, 96
        %v2044 = vpop.permute.xlu0 %2043
        %2045 = vrot.lane.b32.xlu0 %v1955, 96
        %v2046 = vpop.permute.xlu0 %2045
        %v2052 = vsel %vm887, %v868, 0
        %2054 = vmatprep.subr.mxu0 0.0
        %2055 = vmatpush1.msra.mxu0 %v2040
        %2056 = vmatprep.subr.mxu0 0.0
        %2057 = vmatpush1.msra.mxu0 %v2042
        %2058 = vmatprep.subr.mxu0 0.0
        %2059 = vmatpush1.msra.mxu0 %v2044
        %2060 = vmatprep.subr.mxu0 0.0
        %2061 = vmatpush1.msra.mxu0 %v2046
        %2062 = vmatprep.subr.mxu0 0.0
        %2063 = vmatpush1.msra.mxu0 0.0
        %2064 = vmatprep.subr.mxu0 0.0
        %2065 = vmatpush1.msra.mxu0 0.0
        %2066 = vmatprep.subr.mxu0 0.0
        %2067 = vmatpush1.msra.mxu0 0.0
        %2068 = vmatprep.subr.mxu0 0.0
        %2069 = vmatpush1.msra.mxu0 0.0
        %2070 = vmatprep.subr.mxu0 0.0
        %2071 = vmatpush1.msra.mxu0 0.0
        %2072 = vmatprep.subr.mxu0 0.0
        %2073 = vmatpush1.msra.mxu0 0.0
        %2074 = vmatprep.subr.mxu0 0.0
        %2075 = vmatpush1.msra.mxu0 0.0
        %2076 = vmatprep.subr.mxu0 0.0
        %2077 = vmatpush1.msra.mxu0 0.0
        %2078 = vmatprep.subr.mxu0 0.0
        %2079 = vmatpush1.msra.mxu0 0.0
        %2080 = vmatprep.subr.mxu0 0.0
        %2081 = vmatpush1.msra.mxu0 0.0
        %2082 = vmatprep.subr.mxu0 0.0
        %2083 = vmatpush1.msra.mxu0 0.0
        %2084 = vmatprep.subr.mxu0 0.0
        %2085 = vmatpush1.msra.mxu0 0.0
        %2086 = vmatprep.subr.mxu0 0.0
        %2087 = vmatpush1.msra.mxu0 0.0
        %2088 = vmatprep.subr.mxu0 0.0
        %2089 = vmatpush1.msra.mxu0 0.0
        %2090 = vmatprep.subr.mxu0 0.0
        %2091 = vmatpush1.msra.mxu0 0.0
        %2092 = vmatprep.subr.mxu0 0.0
        %2093 = vmatpush1.msra.mxu0 0.0
        %2094 = vmatprep.subr.mxu0 0.0
        %2095 = vmatpush1.msra.mxu0 0.0
        %2096 = vmatprep.subr.mxu0 0.0
        %2097 = vmatpush1.msra.mxu0 0.0
        %2098 = vmatprep.subr.mxu0 0.0
        %2099 = vmatpush1.msra.mxu0 0.0
        %2100 = vmatprep.subr.mxu0 0.0
        %2101 = vmatpush1.msra.mxu0 0.0
        %2102 = vmatprep.subr.mxu0 0.0
        %2103 = vmatpush1.msra.mxu0 0.0
        %2104 = vmatprep.subr.mxu0 0.0
        %2105 = vmatpush1.msra.mxu0 0.0
        %2106 = vmatprep.subr.mxu0 0.0
        %2107 = vmatpush1.msra.mxu0 0.0
        %2108 = vmatprep.subr.mxu0 0.0
        %2109 = vmatpush1.msra.mxu0 0.0
        %2110 = vmatprep.subr.mxu0 0.0
        %2111 = vmatpush1.msra.mxu0 0.0
        %2112 = vmatprep.subr.mxu0 0.0
        %2113 = vmatpush1.msra.mxu0 0.0
        %2114 = vmatprep.subr.mxu0 0.0
        %2115 = vmatpush1.msra.mxu0 0.0
        %2116 = vmatprep.subr.mxu0 0.0
        %2117 = vmatpush1.msra.mxu0 0.0
        %2118 = vmatprep.mubr.f32.mxu0 0.0
        %2119 = vmatmul.mubr.f32.gmra.mrb[0].mxu0 %v2052
        %v2120 = vpop.f32.mrb[0].mxu0
        %v2121 = vadd.f32 0.0, %v2120
        %v2122 = vpop.f32.mrb[0].mxu0
        %2123 = vdwg.mxu0
        %v2125 = vsel %vm964, %v2032, 0
        %v2128 = vsel %vm964, %v2121, 0
        %2130 = vmatprep.subr.mxu0 0.0
        %2131 = vmatpush1.xpose.msra.mxu0 %v2128
        %2132 = vmatprep.subr.mxu0 0.0
        %2133 = vmatpush1.xpose.msra.mxu0 0.0
        %2134 = vmatprep.subr.mxu0 0.0
        %2135 = vmatpush1.xpose.msra.mxu0 0.0
        %2136 = vmatprep.subr.mxu0 0.0
        %2137 = vmatpush1.xpose.msra.mxu0 0.0
        %2138 = vmatprep.subr.mxu0 0.0
        %2139 = vmatpush1.xpose.msra.mxu0 0.0
        %2140 = vmatprep.subr.mxu0 0.0
        %2141 = vmatpush1.xpose.msra.mxu0 0.0
        %2142 = vmatprep.subr.mxu0 0.0
        %2143 = vmatpush1.xpose.msra.mxu0 0.0
        %2144 = vmatprep.subr.mxu0 0.0
        %2145 = vmatpush1.xpose.msra.mxu0 0.0
        %2146 = vmatprep.subr.mxu0 0.0
        %2147 = vmatpush1.xpose.msra.mxu0 0.0
        %2148 = vmatprep.subr.mxu0 0.0
        %2149 = vmatpush1.xpose.msra.mxu0 0.0
        %2150 = vmatprep.subr.mxu0 0.0
        %2151 = vmatpush1.xpose.msra.mxu0 0.0
        %2152 = vmatprep.subr.mxu0 0.0
        %2153 = vmatpush1.xpose.msra.mxu0 0.0
        %2154 = vmatprep.subr.mxu0 0.0
        %2155 = vmatpush1.xpose.msra.mxu0 0.0
        %2156 = vmatprep.subr.mxu0 0.0
        %2157 = vmatpush1.xpose.msra.mxu0 0.0
        %2158 = vmatprep.subr.mxu0 0.0
        %2159 = vmatpush1.xpose.msra.mxu0 0.0
        %2160 = vmatprep.subr.mxu0 0.0
        %2161 = vmatpush1.xpose.msra.mxu0 0.0
        %2162 = vmatprep.subr.mxu0 0.0
        %2163 = vmatpush1.xpose.msra.mxu0 0.0
        %2164 = vmatprep.subr.mxu0 0.0
        %2165 = vmatpush1.xpose.msra.mxu0 0.0
        %2166 = vmatprep.subr.mxu0 0.0
        %2167 = vmatpush1.xpose.msra.mxu0 0.0
        %2168 = vmatprep.subr.mxu0 0.0
        %2169 = vmatpush1.xpose.msra.mxu0 0.0
        %2170 = vmatprep.subr.mxu0 0.0
        %2171 = vmatpush1.xpose.msra.mxu0 0.0
        %2172 = vmatprep.subr.mxu0 0.0
        %2173 = vmatpush1.xpose.msra.mxu0 0.0
        %2174 = vmatprep.subr.mxu0 0.0
        %2175 = vmatpush1.xpose.msra.mxu0 0.0
        %2176 = vmatprep.subr.mxu0 0.0
        %2177 = vmatpush1.xpose.msra.mxu0 0.0
        %2178 = vmatprep.subr.mxu0 0.0
        %2179 = vmatpush1.xpose.msra.mxu0 0.0
        %2180 = vmatprep.subr.mxu0 0.0
        %2181 = vmatpush1.xpose.msra.mxu0 0.0
        %2182 = vmatprep.subr.mxu0 0.0
        %2183 = vmatpush1.xpose.msra.mxu0 0.0
        %2184 = vmatprep.subr.mxu0 0.0
        %2185 = vmatpush1.xpose.msra.mxu0 0.0
        %2186 = vmatprep.subr.mxu0 0.0
        %2187 = vmatpush1.xpose.msra.mxu0 0.0
        %2188 = vmatprep.subr.mxu0 0.0
        %2189 = vmatpush1.xpose.msra.mxu0 0.0
        %2190 = vmatprep.subr.mxu0 0.0
        %2191 = vmatpush1.xpose.msra.mxu0 0.0
        %2192 = vmatprep.subr.mxu0 0.0
        %2193 = vmatpush1.xpose.msra.mxu0 0.0
        %2194 = vmatprep.mubr.f32.mxu0 0.0
        %2195 = vmatmul.mubr.f32.gmra.mrb[0].mxu0 %v2125
        %v2196 = vpop.f32.mrb[0].mxu0
        %v2197 = vadd.f32 0.0, %v2196
        %v2198 = vpop.f32.mrb[0].mxu0
        %2199 = vdwg.mxu0
        %v2200 = vmul.f32 %v2197, 0.35355338
        %v2201 = vsel %vm876, %v2200, -1000000.0
        %v2202 = vsel %vm964, %v2201, -inf
        %2203 = vmax.xlane.f32.xlu0 %v2202
        %v2204 = vpop.xlane.xlu0 %2203
        %v2205 = vsub.f32 %v2201, %v2204
        %v2206 = vmul.f32 %v2205, 1.442695
        %v2207 = vpow.pop %v2206
        %v2208 = vsel %vm964, %v2207, 0.0
        %2209 = vadd.xlane.f32.xlu0 %v2208
        %v2210 = vpop.xlane.xlu0 %2209
        %v2211 = vrcp.pop %v2210
        %v2212 = vmul.f32 %v2207, %v2211
        %2213 = vrot.lane.b32.xlu0 %v2121, 96
        %v2214 = vpop.permute.xlu0 %2213
        %v2217 = vsel %vm964, %v2212, 0
        %2219 = vmatprep.subr.mxu0 0.0
        %2220 = vmatpush1.msra.mxu0 %v2214
        %2221 = vmatprep.subr.mxu0 0.0
        %2222 = vmatpush1.msra.mxu0 0.0
        %2223 = vmatprep.subr.mxu0 0.0
        %2224 = vmatpush1.msra.mxu0 0.0
        %2225 = vmatprep.subr.mxu0 0.0
        %2226 = vmatpush1.msra.mxu0 0.0
        %2227 = vmatprep.subr.mxu0 0.0
        %2228 = vmatpush1.msra.mxu0 0.0
        %2229 = vmatprep.subr.mxu0 0.0
        %2230 = vmatpush1.msra.mxu0 0.0
        %2231 = vmatprep.subr.mxu0 0.0
        %2232 = vmatpush1.msra.mxu0 0.0
        %2233 = vmatprep.subr.mxu0 0.0
        %2234 = vmatpush1.msra.mxu0 0.0
        %2235 = vmatprep.subr.mxu0 0.0
        %2236 = vmatpush1.msra.mxu0 0.0
        %2237 = vmatprep.subr.mxu0 0.0
        %2238 = vmatpush1.msra.mxu0 0.0
        %2239 = vmatprep.subr.mxu0 0.0
        %2240 = vmatpush1.msra.mxu0 0.0
        %2241 = vmatprep.subr.mxu0 0.0
        %2242 = vmatpush1.msra.mxu0 0.0
        %2243 = vmatprep.subr.mxu0 0.0
        %2244 = vmatpush1.msra.mxu0 0.0
        %2245 = vmatprep.subr.mxu0 0.0
        %2246 = vmatpush1.msra.mxu0 0.0
        %2247 = vmatprep.subr.mxu0 0.0
        %2248 = vmatpush1.msra.mxu0 0.0
        %2249 = vmatprep.subr.mxu0 0.0
        %2250 = vmatpush1.msra.mxu0 0.0
        %2251 = vmatprep.subr.mxu0 0.0
        %2252 = vmatpush1.msra.mxu0 0.0
        %2253 = vmatprep.subr.mxu0 0.0
        %2254 = vmatpush1.msra.mxu0 0.0
        %2255 = vmatprep.subr.mxu0 0.0
        %2256 = vmatpush1.msra.mxu0 0.0
        %2257 = vmatprep.subr.mxu0 0.0
        %2258 = vmatpush1.msra.mxu0 0.0
        %2259 = vmatprep.subr.mxu0 0.0
        %2260 = vmatpush1.msra.mxu0 0.0
        %2261 = vmatprep.subr.mxu0 0.0
        %2262 = vmatpush1.msra.mxu0 0.0
        %2263 = vmatprep.subr.mxu0 0.0
        %2264 = vmatpush1.msra.mxu0 0.0
        %2265 = vmatprep.subr.mxu0 0.0
        %2266 = vmatpush1.msra.mxu0 0.0
        %2267 = vmatprep.subr.mxu0 0.0
        %2268 = vmatpush1.msra.mxu0 0.0
        %2269 = vmatprep.subr.mxu0 0.0
        %2270 = vmatpush1.msra.mxu0 0.0
        %2271 = vmatprep.subr.mxu0 0.0
        %2272 = vmatpush1.msra.mxu0 0.0
        %2273 = vmatprep.subr.mxu0 0.0
        %2274 = vmatpush1.msra.mxu0 0.0
        %2275 = vmatprep.subr.mxu0 0.0
        %2276 = vmatpush1.msra.mxu0 0.0
        %2277 = vmatprep.subr.mxu0 0.0
        %2278 = vmatpush1.msra.mxu0 0.0
        %2279 = vmatprep.subr.mxu0 0.0
        %2280 = vmatpush1.msra.mxu0 0.0
        %2281 = vmatprep.subr.mxu0 0.0
        %2282 = vmatpush1.msra.mxu0 0.0
        %2283 = vmatprep.mubr.f32.mxu0 0.0
        %2284 = vmatmul.mubr.f32.gmra.mrb[0].mxu0 %v2217
        %v2285 = vpop.f32.mrb[0].mxu0
        %v2286 = vadd.f32 0.0, %v2285
        %v2287 = vpop.f32.mrb[0].mxu0
        %2288 = vdwg.mxu0
        %2289 = vrot.lane.b32.xlu0 %v2032, 120
        %v2290 = vpop.permute.xlu0 %2289
        %2291 = vrot.lane.b32.xlu0 %v2121, 120
        %v2292 = vpop.permute.xlu0 %2291
        %v2293 = vsel %vm964, %v2290, 0
        %v2295 = vsel %vm964, %v2292, 0
        %2297 = vmatprep.subr.mxu0 0.0
        %2298 = vmatpush1.xpose.msra.mxu0 %v2295
        %2299 = vmatprep.subr.mxu0 0.0
        %2300 = vmatpush1.xpose.msra.mxu0 0.0
        %2301 = vmatprep.subr.mxu0 0.0
        %2302 = vmatpush1.xpose.msra.mxu0 0.0
        %2303 = vmatprep.subr.mxu0 0.0
        %2304 = vmatpush1.xpose.msra.mxu0 0.0
        %2305 = vmatprep.subr.mxu0 0.0
        %2306 = vmatpush1.xpose.msra.mxu0 0.0
        %2307 = vmatprep.subr.mxu0 0.0
        %2308 = vmatpush1.xpose.msra.mxu0 0.0
        %2309 = vmatprep.subr.mxu0 0.0
        %2310 = vmatpush1.xpose.msra.mxu0 0.0
        %2311 = vmatprep.subr.mxu0 0.0
        %2312 = vmatpush1.xpose.msra.mxu0 0.0
        %2313 = vmatprep.subr.mxu0 0.0
        %2314 = vmatpush1.xpose.msra.mxu0 0.0
        %2315 = vmatprep.subr.mxu0 0.0
        %2316 = vmatpush1.xpose.msra.mxu0 0.0
        %2317 = vmatprep.subr.mxu0 0.0
        %2318 = vmatpush1.xpose.msra.mxu0 0.0
        %2319 = vmatprep.subr.mxu0 0.0
        %2320 = vmatpush1.xpose.msra.mxu0 0.0
        %2321 = vmatprep.subr.mxu0 0.0
        %2322 = vmatpush1.xpose.msra.mxu0 0.0
        %2323 = vmatprep.subr.mxu0 0.0
        %2324 = vmatpush1.xpose.msra.mxu0 0.0
        %2325 = vmatprep.subr.mxu0 0.0
        %2326 = vmatpush1.xpose.msra.mxu0 0.0
        %2327 = vmatprep.subr.mxu0 0.0
        %2328 = vmatpush1.xpose.msra.mxu0 0.0
        %2329 = vmatprep.subr.mxu0 0.0
        %2330 = vmatpush1.xpose.msra.mxu0 0.0
        %2331 = vmatprep.subr.mxu0 0.0
        %2332 = vmatpush1.xpose.msra.mxu0 0.0
        %2333 = vmatprep.subr.mxu0 0.0
        %2334 = vmatpush1.xpose.msra.mxu0 0.0
        %2335 = vmatprep.subr.mxu0 0.0
        %2336 = vmatpush1.xpose.msra.mxu0 0.0
        %2337 = vmatprep.subr.mxu0 0.0
        %2338 = vmatpush1.xpose.msra.mxu0 0.0
        %2339 = vmatprep.subr.mxu0 0.0
        %2340 = vmatpush1.xpose.msra.mxu0 0.0
        %2341 = vmatprep.subr.mxu0 0.0
        %2342 = vmatpush1.xpose.msra.mxu0 0.0
        %2343 = vmatprep.subr.mxu0 0.0
        %2344 = vmatpush1.xpose.msra.mxu0 0.0
        %2345 = vmatprep.subr.mxu0 0.0
        %2346 = vmatpush1.xpose.msra.mxu0 0.0
        %2347 = vmatprep.subr.mxu0 0.0
        %2348 = vmatpush1.xpose.msra.mxu0 0.0
        %2349 = vmatprep.subr.mxu0 0.0
        %2350 = vmatpush1.xpose.msra.mxu0 0.0
        %2351 = vmatprep.subr.mxu0 0.0
        %2352 = vmatpush1.xpose.msra.mxu0 0.0
        %2353 = vmatprep.subr.mxu0 0.0
        %2354 = vmatpush1.xpose.msra.mxu0 0.0
        %2355 = vmatprep.subr.mxu0 0.0
        %2356 = vmatpush1.xpose.msra.mxu0 0.0
        %2357 = vmatprep.subr.mxu0 0.0
        %2358 = vmatpush1.xpose.msra.mxu0 0.0
        %2359 = vmatprep.subr.mxu0 0.0
        %2360 = vmatpush1.xpose.msra.mxu0 0.0
        %2361 = vmatprep.mubr.f32.mxu0 0.0
        %2362 = vmatmul.mubr.f32.gmra.mrb[0].mxu0 %v2293
        %v2363 = vpop.f32.mrb[0].mxu0
        %v2364 = vadd.f32 0.0, %v2363
        %v2365 = vpop.f32.mrb[0].mxu0
        %2366 = vdwg.mxu0
        %v2367 = vmul.f32 %v2364, 0.35355338
        %v2368 = vsel %vm876, %v2367, -1000000.0
        %v2369 = vsel %vm964, %v2368, -inf
        %2370 = vmax.xlane.f32.xlu0 %v2369
        %v2371 = vpop.xlane.xlu0 %2370
        %v2372 = vsub.f32 %v2368, %v2371
        %v2373 = vmul.f32 %v2372, 1.442695
        %v2374 = vpow.pop %v2373
        %v2375 = vsel %vm964, %v2374, 0.0
        %2376 = vadd.xlane.f32.xlu0 %v2375
        %v2377 = vpop.xlane.xlu0 %2376
        %v2378 = vrcp.pop %v2377
        %v2379 = vmul.f32 %v2374, %v2378
        %2380 = vrot.lane.b32.xlu0 %v2121, 88
        %v2381 = vpop.permute.xlu0 %2380
        %v2384 = vsel %vm964, %v2379, 0
        %2386 = vmatprep.subr.mxu0 0.0
        %2387 = vmatpush1.msra.mxu0 %v2381
        %2388 = vmatprep.subr.mxu0 0.0
        %2389 = vmatpush1.msra.mxu0 0.0
        %2390 = vmatprep.subr.mxu0 0.0
        %2391 = vmatpush1.msra.mxu0 0.0
        %2392 = vmatprep.subr.mxu0 0.0
        %2393 = vmatpush1.msra.mxu0 0.0
        %2394 = vmatprep.subr.mxu0 0.0
        %2395 = vmatpush1.msra.mxu0 0.0
        %2396 = vmatprep.subr.mxu0 0.0
        %2397 = vmatpush1.msra.mxu0 0.0
        %2398 = vmatprep.subr.mxu0 0.0
        %2399 = vmatpush1.msra.mxu0 0.0
        %2400 = vmatprep.subr.mxu0 0.0
        %2401 = vmatpush1.msra.mxu0 0.0
        %2402 = vmatprep.subr.mxu0 0.0
        %2403 = vmatpush1.msra.mxu0 0.0
        %2404 = vmatprep.subr.mxu0 0.0
        %2405 = vmatpush1.msra.mxu0 0.0
        %2406 = vmatprep.subr.mxu0 0.0
        %2407 = vmatpush1.msra.mxu0 0.0
        %2408 = vmatprep.subr.mxu0 0.0
        %2409 = vmatpush1.msra.mxu0 0.0
        %2410 = vmatprep.subr.mxu0 0.0
        %2411 = vmatpush1.msra.mxu0 0.0
        %2412 = vmatprep.subr.mxu0 0.0
        %2413 = vmatpush1.msra.mxu0 0.0
        %2414 = vmatprep.subr.mxu0 0.0
        %2415 = vmatpush1.msra.mxu0 0.0
        %2416 = vmatprep.subr.mxu0 0.0
        %2417 = vmatpush1.msra.mxu0 0.0
        %2418 = vmatprep.subr.mxu0 0.0
        %2419 = vmatpush1.msra.mxu0 0.0
        %2420 = vmatprep.subr.mxu0 0.0
        %2421 = vmatpush1.msra.mxu0 0.0
        %2422 = vmatprep.subr.mxu0 0.0
        %2423 = vmatpush1.msra.mxu0 0.0
        %2424 = vmatprep.subr.mxu0 0.0
        %2425 = vmatpush1.msra.mxu0 0.0
        %2426 = vmatprep.subr.mxu0 0.0
        %2427 = vmatpush1.msra.mxu0 0.0
        %2428 = vmatprep.subr.mxu0 0.0
        %2429 = vmatpush1.msra.mxu0 0.0
        %2430 = vmatprep.subr.mxu0 0.0
        %2431 = vmatpush1.msra.mxu0 0.0
        %2432 = vmatprep.subr.mxu0 0.0
        %2433 = vmatpush1.msra.mxu0 0.0
        %2434 = vmatprep.subr.mxu0 0.0
        %2435 = vmatpush1.msra.mxu0 0.0
        %2436 = vmatprep.subr.mxu0 0.0
        %2437 = vmatpush1.msra.mxu0 0.0
        %2438 = vmatprep.subr.mxu0 0.0
        %2439 = vmatpush1.msra.mxu0 0.0
        %2440 = vmatprep.subr.mxu0 0.0
        %2441 = vmatpush1.msra.mxu0 0.0
        %2442 = vmatprep.subr.mxu0 0.0
        %2443 = vmatpush1.msra.mxu0 0.0
        %2444 = vmatprep.subr.mxu0 0.0
        %2445 = vmatpush1.msra.mxu0 0.0
        %2446 = vmatprep.subr.mxu0 0.0
        %2447 = vmatpush1.msra.mxu0 0.0
        %2448 = vmatprep.subr.mxu0 0.0
        %2449 = vmatpush1.msra.mxu0 0.0
        %2450 = vmatprep.mubr.f32.mxu0 0.0
        %2451 = vmatmul.mubr.f32.gmra.mrb[0].mxu0 %v2384
        %v2452 = vpop.f32.mrb[0].mxu0
        %v2453 = vadd.f32 0.0, %v2452
        %v2454 = vpop.f32.mrb[0].mxu0
        %2455 = vdwg.mxu0
        %v2457 = vsel %vm964, %v2453, 0
        %2459 = vmatprep.subr.mxu0 0.0
        %2460 = vmatpush1.msra.mxu0 %v1957
        %2461 = vmatprep.subr.mxu0 0.0
        %2462 = vmatpush1.msra.mxu0 0.0
        %2463 = vmatprep.subr.mxu0 0.0
        %2464 = vmatpush1.msra.mxu0 0.0
        %2465 = vmatprep.subr.mxu0 0.0
        %2466 = vmatpush1.msra.mxu0 0.0
        %2467 = vmatprep.subr.mxu0 0.0
        %2468 = vmatpush1.msra.mxu0 0.0
        %2469 = vmatprep.subr.mxu0 0.0
        %2470 = vmatpush1.msra.mxu0 0.0
        %2471 = vmatprep.subr.mxu0 0.0
        %2472 = vmatpush1.msra.mxu0 0.0
        %2473 = vmatprep.subr.mxu0 0.0
        %2474 = vmatpush1.msra.mxu0 0.0
        %2475 = vmatprep.subr.mxu0 0.0
        %2476 = vmatpush1.msra.mxu0 0.0
        %2477 = vmatprep.subr.mxu0 0.0
        %2478 = vmatpush1.msra.mxu0 0.0
        %2479 = vmatprep.subr.mxu0 0.0
        %2480 = vmatpush1.msra.mxu0 0.0
        %2481 = vmatprep.subr.mxu0 0.0
        %2482 = vmatpush1.msra.mxu0 0.0
        %2483 = vmatprep.subr.mxu0 0.0
        %2484 = vmatpush1.msra.mxu0 0.0
        %2485 = vmatprep.subr.mxu0 0.0
        %2486 = vmatpush1.msra.mxu0 0.0
        %2487 = vmatprep.subr.mxu0 0.0
        %2488 = vmatpush1.msra.mxu0 0.0
        %2489 = vmatprep.subr.mxu0 0.0
        %2490 = vmatpush1.msra.mxu0 0.0
        %2491 = vmatprep.subr.mxu0 0.0
        %2492 = vmatpush1.msra.mxu0 0.0
        %2493 = vmatprep.subr.mxu0 0.0
        %2494 = vmatpush1.msra.mxu0 0.0
        %2495 = vmatprep.subr.mxu0 0.0
        %2496 = vmatpush1.msra.mxu0 0.0
        %2497 = vmatprep.subr.mxu0 0.0
        %2498 = vmatpush1.msra.mxu0 0.0
        %2499 = vmatprep.subr.mxu0 0.0
        %2500 = vmatpush1.msra.mxu0 0.0
        %2501 = vmatprep.subr.mxu0 0.0
        %2502 = vmatpush1.msra.mxu0 0.0
        %2503 = vmatprep.subr.mxu0 0.0
        %2504 = vmatpush1.msra.mxu0 0.0
        %2505 = vmatprep.subr.mxu0 0.0
        %2506 = vmatpush1.msra.mxu0 0.0
        %2507 = vmatprep.subr.mxu0 0.0
        %2508 = vmatpush1.msra.mxu0 0.0
        %2509 = vmatprep.subr.mxu0 0.0
        %2510 = vmatpush1.msra.mxu0 0.0
        %2511 = vmatprep.subr.mxu0 0.0
        %2512 = vmatpush1.msra.mxu0 0.0
        %2513 = vmatprep.subr.mxu0 0.0
        %2514 = vmatpush1.msra.mxu0 0.0
        %2515 = vmatprep.subr.mxu0 0.0
        %2516 = vmatpush1.msra.mxu0 0.0
        %2517 = vmatprep.subr.mxu0 0.0
        %2518 = vmatpush1.msra.mxu0 0.0
        %2519 = vmatprep.subr.mxu0 0.0
        %2520 = vmatpush1.msra.mxu0 0.0
        %2521 = vmatprep.subr.mxu0 0.0
        %2522 = vmatpush1.msra.mxu0 0.0
        %2523 = vmatprep.mubr.f32.mxu0 0.0
        %2524 = vmatmul.mubr.f32.gmra.mrb[0].mxu0 %v2457
        %v2525 = vpop.f32.mrb[0].mxu0
        %v2526 = vadd.f32 0.0, %v2525
        %v2527 = vpop.f32.mrb[0].mxu0
        %2528 = vdwg.mxu0
        %v2530 = vsel %vm964, %v2286, 0
        %2532 = vmatprep.subr.mxu0 0.0
        %2533 = vmatpush1.msra.mxu0 %v1956
        %2534 = vmatprep.subr.mxu0 0.0
        %2535 = vmatpush1.msra.mxu0 0.0
        %2536 = vmatprep.subr.mxu0 0.0
        %2537 = vmatpush1.msra.mxu0 0.0
        %2538 = vmatprep.subr.mxu0 0.0
        %2539 = vmatpush1.msra.mxu0 0.0
        %2540 = vmatprep.subr.mxu0 0.0
        %2541 = vmatpush1.msra.mxu0 0.0
        %2542 = vmatprep.subr.mxu0 0.0
        %2543 = vmatpush1.msra.mxu0 0.0
        %2544 = vmatprep.subr.mxu0 0.0
        %2545 = vmatpush1.msra.mxu0 0.0
        %2546 = vmatprep.subr.mxu0 0.0
        %2547 = vmatpush1.msra.mxu0 0.0
        %2548 = vmatprep.subr.mxu0 0.0
        %2549 = vmatpush1.msra.mxu0 0.0
        %2550 = vmatprep.subr.mxu0 0.0
        %2551 = vmatpush1.msra.mxu0 0.0
        %2552 = vmatprep.subr.mxu0 0.0
        %2553 = vmatpush1.msra.mxu0 0.0
        %2554 = vmatprep.subr.mxu0 0.0
        %2555 = vmatpush1.msra.mxu0 0.0
        %2556 = vmatprep.subr.mxu0 0.0
        %2557 = vmatpush1.msra.mxu0 0.0
        %2558 = vmatprep.subr.mxu0 0.0
        %2559 = vmatpush1.msra.mxu0 0.0
        %2560 = vmatprep.subr.mxu0 0.0
        %2561 = vmatpush1.msra.mxu0 0.0
        %2562 = vmatprep.subr.mxu0 0.0
        %2563 = vmatpush1.msra.mxu0 0.0
        %2564 = vmatprep.subr.mxu0 0.0
        %2565 = vmatpush1.msra.mxu0 0.0
        %2566 = vmatprep.subr.mxu0 0.0
        %2567 = vmatpush1.msra.mxu0 0.0
        %2568 = vmatprep.subr.mxu0 0.0
        %2569 = vmatpush1.msra.mxu0 0.0
        %2570 = vmatprep.subr.mxu0 0.0
        %2571 = vmatpush1.msra.mxu0 0.0
        %2572 = vmatprep.subr.mxu0 0.0
        %2573 = vmatpush1.msra.mxu0 0.0
        %2574 = vmatprep.subr.mxu0 0.0
        %2575 = vmatpush1.msra.mxu0 0.0
        %2576 = vmatprep.subr.mxu0 0.0
        %2577 = vmatpush1.msra.mxu0 0.0
        %2578 = vmatprep.subr.mxu0 0.0
        %2579 = vmatpush1.msra.mxu0 0.0
        %2580 = vmatprep.subr.mxu0 0.0
        %2581 = vmatpush1.msra.mxu0 0.0
        %2582 = vmatprep.subr.mxu0 0.0
        %2583 = vmatpush1.msra.mxu0 0.0
        %2584 = vmatprep.subr.mxu0 0.0
        %2585 = vmatpush1.msra.mxu0 0.0
        %2586 = vmatprep.subr.mxu0 0.0
        %2587 = vmatpush1.msra.mxu0 0.0
        %2588 = vmatprep.subr.mxu0 0.0
        %2589 = vmatpush1.msra.mxu0 0.0
        %2590 = vmatprep.subr.mxu0 0.0
        %2591 = vmatpush1.msra.mxu0 0.0
        %2592 = vmatprep.subr.mxu0 0.0
        %2593 = vmatpush1.msra.mxu0 0.0
        %2594 = vmatprep.subr.mxu0 0.0
        %2595 = vmatpush1.msra.mxu0 0.0
        %2596 = vmatprep.mubr.f32.mxu0 0.0
        %2597 = vmatmul.mubr.f32.gmra.mrb[0].mxu0 %v2530
        %v2598 = vpop.f32.mrb[0].mxu0
        %v2599 = vadd.f32 %v2526, %v2598
        %v2600 = vpop.f32.mrb[0].mxu0
        %2601 = vdwg.mxu0
        %2602 = vrot.lane.b32.xlu0 %v2032, 112
        %v2603 = vpop.permute.xlu0 %2602
        %2604 = vrot.lane.b32.xlu0 %v2121, 112
        %v2605 = vpop.permute.xlu0 %2604
        %v2606 = vsel %vm964, %v2603, 0
        %v2608 = vsel %vm964, %v2605, 0
        %2610 = vmatprep.subr.mxu0 0.0
        %2611 = vmatpush1.xpose.msra.mxu0 %v2608
        %2612 = vmatprep.subr.mxu0 0.0
        %2613 = vmatpush1.xpose.msra.mxu0 0.0
        %2614 = vmatprep.subr.mxu0 0.0
        %2615 = vmatpush1.xpose.msra.mxu0 0.0
        %2616 = vmatprep.subr.mxu0 0.0
        %2617 = vmatpush1.xpose.msra.mxu0 0.0
        %2618 = vmatprep.subr.mxu0 0.0
        %2619 = vmatpush1.xpose.msra.mxu0 0.0
        %2620 = vmatprep.subr.mxu0 0.0
        %2621 = vmatpush1.xpose.msra.mxu0 0.0
        %2622 = vmatprep.subr.mxu0 0.0
        %2623 = vmatpush1.xpose.msra.mxu0 0.0
        %2624 = vmatprep.subr.mxu0 0.0
        %2625 = vmatpush1.xpose.msra.mxu0 0.0
        %2626 = vmatprep.subr.mxu0 0.0
        %2627 = vmatpush1.xpose.msra.mxu0 0.0
        %2628 = vmatprep.subr.mxu0 0.0
        %2629 = vmatpush1.xpose.msra.mxu0 0.0
        %2630 = vmatprep.subr.mxu0 0.0
        %2631 = vmatpush1.xpose.msra.mxu0 0.0
        %2632 = vmatprep.subr.mxu0 0.0
        %2633 = vmatpush1.xpose.msra.mxu0 0.0
        %2634 = vmatprep.subr.mxu0 0.0
        %2635 = vmatpush1.xpose.msra.mxu0 0.0
        %2636 = vmatprep.subr.mxu0 0.0
        %2637 = vmatpush1.xpose.msra.mxu0 0.0
        %2638 = vmatprep.subr.mxu0 0.0
        %2639 = vmatpush1.xpose.msra.mxu0 0.0
        %2640 = vmatprep.subr.mxu0 0.0
        %2641 = vmatpush1.xpose.msra.mxu0 0.0
        %2642 = vmatprep.subr.mxu0 0.0
        %2643 = vmatpush1.xpose.msra.mxu0 0.0
        %2644 = vmatprep.subr.mxu0 0.0
        %2645 = vmatpush1.xpose.msra.mxu0 0.0
        %2646 = vmatprep.subr.mxu0 0.0
        %2647 = vmatpush1.xpose.msra.mxu0 0.0
        %2648 = vmatprep.subr.mxu0 0.0
        %2649 = vmatpush1.xpose.msra.mxu0 0.0
        %2650 = vmatprep.subr.mxu0 0.0
        %2651 = vmatpush1.xpose.msra.mxu0 0.0
        %2652 = vmatprep.subr.mxu0 0.0
        %2653 = vmatpush1.xpose.msra.mxu0 0.0
        %2654 = vmatprep.subr.mxu0 0.0
        %2655 = vmatpush1.xpose.msra.mxu0 0.0
        %2656 = vmatprep.subr.mxu0 0.0
        %2657 = vmatpush1.xpose.msra.mxu0 0.0
        %2658 = vmatprep.subr.mxu0 0.0
        %2659 = vmatpush1.xpose.msra.mxu0 0.0
        %2660 = vmatprep.subr.mxu0 0.0
        %2661 = vmatpush1.xpose.msra.mxu0 0.0
        %2662 = vmatprep.subr.mxu0 0.0
        %2663 = vmatpush1.xpose.msra.mxu0 0.0
        %2664 = vmatprep.subr.mxu0 0.0
        %2665 = vmatpush1.xpose.msra.mxu0 0.0
        %2666 = vmatprep.subr.mxu0 0.0
        %2667 = vmatpush1.xpose.msra.mxu0 0.0
        %2668 = vmatprep.subr.mxu0 0.0
        %2669 = vmatpush1.xpose.msra.mxu0 0.0
        %2670 = vmatprep.subr.mxu0 0.0
        %2671 = vmatpush1.xpose.msra.mxu0 0.0
        %2672 = vmatprep.subr.mxu0 0.0
        %2673 = vmatpush1.xpose.msra.mxu0 0.0
        %2674 = vmatprep.mubr.f32.mxu0 0.0
        %2675 = vmatmul.mubr.f32.gmra.mrb[0].mxu0 %v2606
        %v2676 = vpop.f32.mrb[0].mxu0
        %v2677 = vadd.f32 0.0, %v2676
        %v2678 = vpop.f32.mrb[0].mxu0
        %2679 = vdwg.mxu0
        %v2680 = vmul.f32 %v2677, 0.35355338
        %v2681 = vsel %vm876, %v2680, -1000000.0
        %v2682 = vsel %vm964, %v2681, -inf
        %2683 = vmax.xlane.f32.xlu0 %v2682
        %v2684 = vpop.xlane.xlu0 %2683
        %v2685 = vsub.f32 %v2681, %v2684
        %v2686 = vmul.f32 %v2685, 1.442695
        %v2687 = vpow.pop %v2686
        %v2688 = vsel %vm964, %v2687, 0.0
        %2689 = vadd.xlane.f32.xlu0 %v2688
        %v2690 = vpop.xlane.xlu0 %2689
        %v2691 = vrcp.pop %v2690
        %v2692 = vmul.f32 %v2687, %v2691
        %2693 = vrot.lane.b32.xlu0 %v2121, 80
        %v2694 = vpop.permute.xlu0 %2693
        %v2697 = vsel %vm964, %v2692, 0
        %2699 = vmatprep.subr.mxu0 0.0
        %2700 = vmatpush1.msra.mxu0 %v2694
        %2701 = vmatprep.subr.mxu0 0.0
        %2702 = vmatpush1.msra.mxu0 0.0
        %2703 = vmatprep.subr.mxu0 0.0
        %2704 = vmatpush1.msra.mxu0 0.0
        %2705 = vmatprep.subr.mxu0 0.0
        %2706 = vmatpush1.msra.mxu0 0.0
        %2707 = vmatprep.subr.mxu0 0.0
        %2708 = vmatpush1.msra.mxu0 0.0
        %2709 = vmatprep.subr.mxu0 0.0
        %2710 = vmatpush1.msra.mxu0 0.0
        %2711 = vmatprep.subr.mxu0 0.0
        %2712 = vmatpush1.msra.mxu0 0.0
        %2713 = vmatprep.subr.mxu0 0.0
        %2714 = vmatpush1.msra.mxu0 0.0
        %2715 = vmatprep.subr.mxu0 0.0
        %2716 = vmatpush1.msra.mxu0 0.0
        %2717 = vmatprep.subr.mxu0 0.0
        %2718 = vmatpush1.msra.mxu0 0.0
        %2719 = vmatprep.subr.mxu0 0.0
        %2720 = vmatpush1.msra.mxu0 0.0
        %2721 = vmatprep.subr.mxu0 0.0
        %2722 = vmatpush1.msra.mxu0 0.0
        %2723 = vmatprep.subr.mxu0 0.0
        %2724 = vmatpush1.msra.mxu0 0.0
        %2725 = vmatprep.subr.mxu0 0.0
        %2726 = vmatpush1.msra.mxu0 0.0
        %2727 = vmatprep.subr.mxu0 0.0
        %2728 = vmatpush1.msra.mxu0 0.0
        %2729 = vmatprep.subr.mxu0 0.0
        %2730 = vmatpush1.msra.mxu0 0.0
        %2731 = vmatprep.subr.mxu0 0.0
        %2732 = vmatpush1.msra.mxu0 0.0
        %2733 = vmatprep.subr.mxu0 0.0
        %2734 = vmatpush1.msra.mxu0 0.0
        %2735 = vmatprep.subr.mxu0 0.0
        %2736 = vmatpush1.msra.mxu0 0.0
        %2737 = vmatprep.subr.mxu0 0.0
        %2738 = vmatpush1.msra.mxu0 0.0
        %2739 = vmatprep.subr.mxu0 0.0
        %2740 = vmatpush1.msra.mxu0 0.0
        %2741 = vmatprep.subr.mxu0 0.0
        %2742 = vmatpush1.msra.mxu0 0.0
        %2743 = vmatprep.subr.mxu0 0.0
        %2744 = vmatpush1.msra.mxu0 0.0
        %2745 = vmatprep.subr.mxu0 0.0
        %2746 = vmatpush1.msra.mxu0 0.0
        %2747 = vmatprep.subr.mxu0 0.0
        %2748 = vmatpush1.msra.mxu0 0.0
        %2749 = vmatprep.subr.mxu0 0.0
        %2750 = vmatpush1.msra.mxu0 0.0
        %2751 = vmatprep.subr.mxu0 0.0
        %2752 = vmatpush1.msra.mxu0 0.0
        %2753 = vmatprep.subr.mxu0 0.0
        %2754 = vmatpush1.msra.mxu0 0.0
        %2755 = vmatprep.subr.mxu0 0.0
        %2756 = vmatpush1.msra.mxu0 0.0
        %2757 = vmatprep.subr.mxu0 0.0
        %2758 = vmatpush1.msra.mxu0 0.0
        %2759 = vmatprep.subr.mxu0 0.0
        %2760 = vmatpush1.msra.mxu0 0.0
        %2761 = vmatprep.subr.mxu0 0.0
        %2762 = vmatpush1.msra.mxu0 0.0
        %2763 = vmatprep.mubr.f32.mxu0 0.0
        %2764 = vmatmul.mubr.f32.gmra.mrb[0].mxu0 %v2697
        %v2765 = vpop.f32.mrb[0].mxu0
        %v2766 = vadd.f32 0.0, %v2765
        %v2767 = vpop.f32.mrb[0].mxu0
        %2768 = vdwg.mxu0
        %v2770 = vsel %vm964, %v2766, 0
        %2772 = vmatprep.subr.mxu0 0.0
        %2773 = vmatpush1.msra.mxu0 %v1958
        %2774 = vmatprep.subr.mxu0 0.0
        %2775 = vmatpush1.msra.mxu0 0.0
        %2776 = vmatprep.subr.mxu0 0.0
        %2777 = vmatpush1.msra.mxu0 0.0
        %2778 = vmatprep.subr.mxu0 0.0
        %2779 = vmatpush1.msra.mxu0 0.0
        %2780 = vmatprep.subr.mxu0 0.0
        %2781 = vmatpush1.msra.mxu0 0.0
        %2782 = vmatprep.subr.mxu0 0.0
        %2783 = vmatpush1.msra.mxu0 0.0
        %2784 = vmatprep.subr.mxu0 0.0
        %2785 = vmatpush1.msra.mxu0 0.0
        %2786 = vmatprep.subr.mxu0 0.0
        %2787 = vmatpush1.msra.mxu0 0.0
        %2788 = vmatprep.subr.mxu0 0.0
        %2789 = vmatpush1.msra.mxu0 0.0
        %2790 = vmatprep.subr.mxu0 0.0
        %2791 = vmatpush1.msra.mxu0 0.0
        %2792 = vmatprep.subr.mxu0 0.0
        %2793 = vmatpush1.msra.mxu0 0.0
        %2794 = vmatprep.subr.mxu0 0.0
        %2795 = vmatpush1.msra.mxu0 0.0
        %2796 = vmatprep.subr.mxu0 0.0
        %2797 = vmatpush1.msra.mxu0 0.0
        %2798 = vmatprep.subr.mxu0 0.0
        %2799 = vmatpush1.msra.mxu0 0.0
        %2800 = vmatprep.subr.mxu0 0.0
        %2801 = vmatpush1.msra.mxu0 0.0
        %2802 = vmatprep.subr.mxu0 0.0
        %2803 = vmatpush1.msra.mxu0 0.0
        %2804 = vmatprep.subr.mxu0 0.0
        %2805 = vmatpush1.msra.mxu0 0.0
        %2806 = vmatprep.subr.mxu0 0.0
        %2807 = vmatpush1.msra.mxu0 0.0
        %2808 = vmatprep.subr.mxu0 0.0
        %2809 = vmatpush1.msra.mxu0 0.0
        %2810 = vmatprep.subr.mxu0 0.0
        %2811 = vmatpush1.msra.mxu0 0.0
        %2812 = vmatprep.subr.mxu0 0.0
        %2813 = vmatpush1.msra.mxu0 0.0
        %2814 = vmatprep.subr.mxu0 0.0
        %2815 = vmatpush1.msra.mxu0 0.0
        %2816 = vmatprep.subr.mxu0 0.0
        %2817 = vmatpush1.msra.mxu0 0.0
        %2818 = vmatprep.subr.mxu0 0.0
        %2819 = vmatpush1.msra.mxu0 0.0
        %2820 = vmatprep.subr.mxu0 0.0
        %2821 = vmatpush1.msra.mxu0 0.0
        %2822 = vmatprep.subr.mxu0 0.0
        %2823 = vmatpush1.msra.mxu0 0.0
        %2824 = vmatprep.subr.mxu0 0.0
        %2825 = vmatpush1.msra.mxu0 0.0
        %2826 = vmatprep.subr.mxu0 0.0
        %2827 = vmatpush1.msra.mxu0 0.0
        %2828 = vmatprep.subr.mxu0 0.0
        %2829 = vmatpush1.msra.mxu0 0.0
        %2830 = vmatprep.subr.mxu0 0.0
        %2831 = vmatpush1.msra.mxu0 0.0
        %2832 = vmatprep.subr.mxu0 0.0
        %2833 = vmatpush1.msra.mxu0 0.0
        %2834 = vmatprep.subr.mxu0 0.0
        %2835 = vmatpush1.msra.mxu0 0.0
        %2836 = vmatprep.mubr.f32.mxu0 0.0
        %2837 = vmatmul.mubr.f32.gmra.mrb[0].mxu0 %v2770
        %v2838 = vpop.f32.mrb[0].mxu0
        %v2839 = vadd.f32 0.0, %v2838
        %v2840 = vpop.f32.mrb[0].mxu0
        %2841 = vdwg.mxu0
        %v2842 = vadd.f32 %v2599, %v2839
        %2843 = vrot.lane.b32.xlu0 %v2032, 104
        %v2844 = vpop.permute.xlu0 %2843
        %2845 = vrot.lane.b32.xlu0 %v2121, 104
        %v2846 = vpop.permute.xlu0 %2845
        %v2847 = vsel %vm964, %v2844, 0
        %v2849 = vsel %vm964, %v2846, 0
        %2851 = vmatprep.subr.mxu0 0.0
        %2852 = vmatpush1.xpose.msra.mxu0 %v2849
        %2853 = vmatprep.subr.mxu0 0.0
        %2854 = vmatpush1.xpose.msra.mxu0 0.0
        %2855 = vmatprep.subr.mxu0 0.0
        %2856 = vmatpush1.xpose.msra.mxu0 0.0
        %2857 = vmatprep.subr.mxu0 0.0
        %2858 = vmatpush1.xpose.msra.mxu0 0.0
        %2859 = vmatprep.subr.mxu0 0.0
        %2860 = vmatpush1.xpose.msra.mxu0 0.0
        %2861 = vmatprep.subr.mxu0 0.0
        %2862 = vmatpush1.xpose.msra.mxu0 0.0
        %2863 = vmatprep.subr.mxu0 0.0
        %2864 = vmatpush1.xpose.msra.mxu0 0.0
        %2865 = vmatprep.subr.mxu0 0.0
        %2866 = vmatpush1.xpose.msra.mxu0 0.0
        %2867 = vmatprep.subr.mxu0 0.0
        %2868 = vmatpush1.xpose.msra.mxu0 0.0
        %2869 = vmatprep.subr.mxu0 0.0
        %2870 = vmatpush1.xpose.msra.mxu0 0.0
        %2871 = vmatprep.subr.mxu0 0.0
        %2872 = vmatpush1.xpose.msra.mxu0 0.0
        %2873 = vmatprep.subr.mxu0 0.0
        %2874 = vmatpush1.xpose.msra.mxu0 0.0
        %2875 = vmatprep.subr.mxu0 0.0
        %2876 = vmatpush1.xpose.msra.mxu0 0.0
        %2877 = vmatprep.subr.mxu0 0.0
        %2878 = vmatpush1.xpose.msra.mxu0 0.0
        %2879 = vmatprep.subr.mxu0 0.0
        %2880 = vmatpush1.xpose.msra.mxu0 0.0
        %2881 = vmatprep.subr.mxu0 0.0
        %2882 = vmatpush1.xpose.msra.mxu0 0.0
        %2883 = vmatprep.subr.mxu0 0.0
        %2884 = vmatpush1.xpose.msra.mxu0 0.0
        %2885 = vmatprep.subr.mxu0 0.0
        %2886 = vmatpush1.xpose.msra.mxu0 0.0
        %2887 = vmatprep.subr.mxu0 0.0
        %2888 = vmatpush1.xpose.msra.mxu0 0.0
        %2889 = vmatprep.subr.mxu0 0.0
        %2890 = vmatpush1.xpose.msra.mxu0 0.0
        %2891 = vmatprep.subr.mxu0 0.0
        %2892 = vmatpush1.xpose.msra.mxu0 0.0
        %2893 = vmatprep.subr.mxu0 0.0
        %2894 = vmatpush1.xpose.msra.mxu0 0.0
        %2895 = vmatprep.subr.mxu0 0.0
        %2896 = vmatpush1.xpose.msra.mxu0 0.0
        %2897 = vmatprep.subr.mxu0 0.0
        %2898 = vmatpush1.xpose.msra.mxu0 0.0
        %2899 = vmatprep.subr.mxu0 0.0
        %2900 = vmatpush1.xpose.msra.mxu0 0.0
        %2901 = vmatprep.subr.mxu0 0.0
        %2902 = vmatpush1.xpose.msra.mxu0 0.0
        %2903 = vmatprep.subr.mxu0 0.0
        %2904 = vmatpush1.xpose.msra.mxu0 0.0
        %2905 = vmatprep.subr.mxu0 0.0
        %2906 = vmatpush1.xpose.msra.mxu0 0.0
        %2907 = vmatprep.subr.mxu0 0.0
        %2908 = vmatpush1.xpose.msra.mxu0 0.0
        %2909 = vmatprep.subr.mxu0 0.0
        %2910 = vmatpush1.xpose.msra.mxu0 0.0
        %2911 = vmatprep.subr.mxu0 0.0
        %2912 = vmatpush1.xpose.msra.mxu0 0.0
        %2913 = vmatprep.subr.mxu0 0.0
        %2914 = vmatpush1.xpose.msra.mxu0 0.0
        %2915 = vmatprep.mubr.f32.mxu0 0.0
        %2916 = vmatmul.mubr.f32.gmra.mrb[0].mxu0 %v2847
        %v2917 = vpop.f32.mrb[0].mxu0
        %v2918 = vadd.f32 0.0, %v2917
        %v2919 = vpop.f32.mrb[0].mxu0
        %2920 = vdwg.mxu0
        %v2921 = vmul.f32 %v2918, 0.35355338
        %v2922 = vsel %vm876, %v2921, -1000000.0
        %v2923 = vsel %vm964, %v2922, -inf
        %2924 = vmax.xlane.f32.xlu0 %v2923
        %v2925 = vpop.xlane.xlu0 %2924
        %v2926 = vsub.f32 %v2922, %v2925
        %v2927 = vmul.f32 %v2926, 1.442695
        %v2928 = vpow.pop %v2927
        %v2929 = vsel %vm964, %v2928, 0.0
        %2930 = vadd.xlane.f32.xlu0 %v2929
        %v2931 = vpop.xlane.xlu0 %2930
        %v2932 = vrcp.pop %v2931
        %v2933 = vmul.f32 %v2928, %v2932
        %2934 = vrot.lane.b32.xlu0 %v2121, 72
        %v2935 = vpop.permute.xlu0 %2934
        %v2938 = vsel %vm964, %v2933, 0
        %2940 = vmatprep.subr.mxu0 0.0
        %2941 = vmatpush1.msra.mxu0 %v2935
        %2942 = vmatprep.subr.mxu0 0.0
        %2943 = vmatpush1.msra.mxu0 0.0
        %2944 = vmatprep.subr.mxu0 0.0
        %2945 = vmatpush1.msra.mxu0 0.0
        %2946 = vmatprep.subr.mxu0 0.0
        %2947 = vmatpush1.msra.mxu0 0.0
        %2948 = vmatprep.subr.mxu0 0.0
        %2949 = vmatpush1.msra.mxu0 0.0
        %2950 = vmatprep.subr.mxu0 0.0
        %2951 = vmatpush1.msra.mxu0 0.0
        %2952 = vmatprep.subr.mxu0 0.0
        %2953 = vmatpush1.msra.mxu0 0.0
        %2954 = vmatprep.subr.mxu0 0.0
        %2955 = vmatpush1.msra.mxu0 0.0
        %2956 = vmatprep.subr.mxu0 0.0
        %2957 = vmatpush1.msra.mxu0 0.0
        %2958 = vmatprep.subr.mxu0 0.0
        %2959 = vmatpush1.msra.mxu0 0.0
        %2960 = vmatprep.subr.mxu0 0.0
        %2961 = vmatpush1.msra.mxu0 0.0
        %2962 = vmatprep.subr.mxu0 0.0
        %2963 = vmatpush1.msra.mxu0 0.0
        %2964 = vmatprep.subr.mxu0 0.0
        %2965 = vmatpush1.msra.mxu0 0.0
        %2966 = vmatprep.subr.mxu0 0.0
        %2967 = vmatpush1.msra.mxu0 0.0
        %2968 = vmatprep.subr.mxu0 0.0
        %2969 = vmatpush1.msra.mxu0 0.0
        %2970 = vmatprep.subr.mxu0 0.0
        %2971 = vmatpush1.msra.mxu0 0.0
        %2972 = vmatprep.subr.mxu0 0.0
        %2973 = vmatpush1.msra.mxu0 0.0
        %2974 = vmatprep.subr.mxu0 0.0
        %2975 = vmatpush1.msra.mxu0 0.0
        %2976 = vmatprep.subr.mxu0 0.0
        %2977 = vmatpush1.msra.mxu0 0.0
        %2978 = vmatprep.subr.mxu0 0.0
        %2979 = vmatpush1.msra.mxu0 0.0
        %2980 = vmatprep.subr.mxu0 0.0
        %2981 = vmatpush1.msra.mxu0 0.0
        %2982 = vmatprep.subr.mxu0 0.0
        %2983 = vmatpush1.msra.mxu0 0.0
        %2984 = vmatprep.subr.mxu0 0.0
        %2985 = vmatpush1.msra.mxu0 0.0
        %2986 = vmatprep.subr.mxu0 0.0
        %2987 = vmatpush1.msra.mxu0 0.0
        %2988 = vmatprep.subr.mxu0 0.0
        %2989 = vmatpush1.msra.mxu0 0.0
        %2990 = vmatprep.subr.mxu0 0.0
        %2991 = vmatpush1.msra.mxu0 0.0
        %2992 = vmatprep.subr.mxu0 0.0
        %2993 = vmatpush1.msra.mxu0 0.0
        %2994 = vmatprep.subr.mxu0 0.0
        %2995 = vmatpush1.msra.mxu0 0.0
        %2996 = vmatprep.subr.mxu0 0.0
        %2997 = vmatpush1.msra.mxu0 0.0
        %2998 = vmatprep.subr.mxu0 0.0
        %2999 = vmatpush1.msra.mxu0 0.0
        %3000 = vmatprep.subr.mxu0 0.0
        %3001 = vmatpush1.msra.mxu0 0.0
        %3002 = vmatprep.subr.mxu0 0.0
        %3003 = vmatpush1.msra.mxu0 0.0
        %3004 = vmatprep.mubr.f32.mxu0 0.0
        %3005 = vmatmul.mubr.f32.gmra.mrb[0].mxu0 %v2938
        %v3006 = vpop.f32.mrb[0].mxu0
        %v3007 = vadd.f32 0.0, %v3006
        %v3008 = vpop.f32.mrb[0].mxu0
        %3009 = vdwg.mxu0
        %v3011 = vsel %vm964, %v3007, 0
        %3013 = vmatprep.subr.mxu0 0.0
        %3014 = vmatpush1.msra.mxu0 %v1959
        %3015 = vmatprep.subr.mxu0 0.0
        %3016 = vmatpush1.msra.mxu0 0.0
        %3017 = vmatprep.subr.mxu0 0.0
        %3018 = vmatpush1.msra.mxu0 0.0
        %3019 = vmatprep.subr.mxu0 0.0
        %3020 = vmatpush1.msra.mxu0 0.0
        %3021 = vmatprep.subr.mxu0 0.0
        %3022 = vmatpush1.msra.mxu0 0.0
        %3023 = vmatprep.subr.mxu0 0.0
        %3024 = vmatpush1.msra.mxu0 0.0
        %3025 = vmatprep.subr.mxu0 0.0
        %3026 = vmatpush1.msra.mxu0 0.0
        %3027 = vmatprep.subr.mxu0 0.0
        %3028 = vmatpush1.msra.mxu0 0.0
        %3029 = vmatprep.subr.mxu0 0.0
        %3030 = vmatpush1.msra.mxu0 0.0
        %3031 = vmatprep.subr.mxu0 0.0
        %3032 = vmatpush1.msra.mxu0 0.0
        %3033 = vmatprep.subr.mxu0 0.0
        %3034 = vmatpush1.msra.mxu0 0.0
        %3035 = vmatprep.subr.mxu0 0.0
        %3036 = vmatpush1.msra.mxu0 0.0
        %3037 = vmatprep.subr.mxu0 0.0
        %3038 = vmatpush1.msra.mxu0 0.0
        %3039 = vmatprep.subr.mxu0 0.0
        %3040 = vmatpush1.msra.mxu0 0.0
        %3041 = vmatprep.subr.mxu0 0.0
        %3042 = vmatpush1.msra.mxu0 0.0
        %3043 = vmatprep.subr.mxu0 0.0
        %3044 = vmatpush1.msra.mxu0 0.0
        %3045 = vmatprep.subr.mxu0 0.0
        %3046 = vmatpush1.msra.mxu0 0.0
        %3047 = vmatprep.subr.mxu0 0.0
        %3048 = vmatpush1.msra.mxu0 0.0
        %3049 = vmatprep.subr.mxu0 0.0
        %3050 = vmatpush1.msra.mxu0 0.0
        %3051 = vmatprep.subr.mxu0 0.0
        %3052 = vmatpush1.msra.mxu0 0.0
        %3053 = vmatprep.subr.mxu0 0.0
        %3054 = vmatpush1.msra.mxu0 0.0
        %3055 = vmatprep.subr.mxu0 0.0
        %3056 = vmatpush1.msra.mxu0 0.0
        %3057 = vmatprep.subr.mxu0 0.0
        %3058 = vmatpush1.msra.mxu0 0.0
        %3059 = vmatprep.subr.mxu0 0.0
        %3060 = vmatpush1.msra.mxu0 0.0
        %3061 = vmatprep.subr.mxu0 0.0
        %3062 = vmatpush1.msra.mxu0 0.0
        %3063 = vmatprep.subr.mxu0 0.0
        %3064 = vmatpush1.msra.mxu0 0.0
        %3065 = vmatprep.subr.mxu0 0.0
        %3066 = vmatpush1.msra.mxu0 0.0
        %3067 = vmatprep.subr.mxu0 0.0
        %3068 = vmatpush1.msra.mxu0 0.0
        %3069 = vmatprep.subr.mxu0 0.0
        %3070 = vmatpush1.msra.mxu0 0.0
        %3071 = vmatprep.subr.mxu0 0.0
        %3072 = vmatpush1.msra.mxu0 0.0
        %3073 = vmatprep.subr.mxu0 0.0
        %3074 = vmatpush1.msra.mxu0 0.0
        %3075 = vmatprep.subr.mxu0 0.0
        %3076 = vmatpush1.msra.mxu0 0.0
        %3077 = vmatprep.mubr.f32.mxu0 0.0
        %3078 = vmatmul.mubr.f32.gmra.mrb[0].mxu0 %v3011
        %v3079 = vpop.f32.mrb[0].mxu0
        %v3080 = vadd.f32 0.0, %v3079
        %v3081 = vpop.f32.mrb[0].mxu0
        %3082 = vdwg.mxu0
        %v3083 = vadd.f32 %v2842, %v3080
        %v3084 = vadd.f32 %v3083, %v1951
        %v3085 = vsel %vm887, %v3084, 0.0
        %3086 = vadd.xlane.f32.xlu0 %v3085
        %v3087 = vpop.xlane.xlu0 %3086
        %v3088 = vmul.f32 %v3087, %v1927
        %v3089 = vsub.f32 %v3084, %v3088
        %v3090 = vmul.f32 %v3089, %v3089
        %v3091 = vsel %vm887, %v3090, 0.0
        %3092 = vadd.xlane.f32.xlu0 %v3091
        %v3093 = vpop.xlane.xlu0 %3092
        %v3094 = vmul.f32 %v3093, %v1927
        %v3095 = vadd.f32 %v3094, 1e-05
        %v3096 = vrsqrt.pop %v3095
        %v3097 = vmul.f32 %v3089, %v3096
        %v3099 = vlaneseq
        %v3100 = vshrl.u32 %v3099, 7
        %v3101 = vsub.s32 0, %v3100
        %v3102 = vrot.slane %v1960, %v3101
        %v3104 = vmul.f32 %v3097, %v3102
        %v3106 = vlaneseq
        %v3107 = vshrl.u32 %v3106, 7
        %v3108 = vsub.s32 0, %v3107
        %v3109 = vrot.slane %v1961, %v3108
        %v3111 = vadd.f32 %v3104, %v3109
        %v3112 = vld [vmem:[%s708] sm:$0xff]
        %v3113 = vld [vmem:[%s708 + $0x8] sm:$0xff]
        %v3114 = vld [vmem:[%s708 + $0x10] sm:$0xff]
        %v3115 = vld [vmem:[%s708 + $0x18] sm:$0xff]
        %v3116 = vld [vmem:[%s845] sm:$0x1]
        %v3118 = vlaneseq
        %v3119 = vshrl.u32 %v3118, 7
        %v3120 = vsub.s32 0, %v3119
        %v3121 = vrot.slane %v3116, %v3120
        %v3124 = vsel %vm887, %v3111, 0
        %3126 = vmatprep.subr.mxu0 0.0
        %3127 = vmatpush1.msra.mxu0 %v3112
        %3128 = vmatprep.subr.mxu0 0.0
        %3129 = vmatpush1.msra.mxu0 %v3113
        %3130 = vmatprep.subr.mxu0 0.0
        %3131 = vmatpush1.msra.mxu0 %v3114
        %3132 = vmatprep.subr.mxu0 0.0
        %3133 = vmatpush1.msra.mxu0 %v3115
        %3134 = vmatprep.subr.mxu0 0.0
        %3135 = vmatpush1.msra.mxu0 0.0
        %3136 = vmatprep.subr.mxu0 0.0
        %3137 = vmatpush1.msra.mxu0 0.0
        %3138 = vmatprep.subr.mxu0 0.0
        %3139 = vmatpush1.msra.mxu0 0.0
        %3140 = vmatprep.subr.mxu0 0.0
        %3141 = vmatpush1.msra.mxu0 0.0
        %3142 = vmatprep.subr.mxu0 0.0
        %3143 = vmatpush1.msra.mxu0 0.0
        %3144 = vmatprep.subr.mxu0 0.0
        %3145 = vmatpush1.msra.mxu0 0.0
        %3146 = vmatprep.subr.mxu0 0.0
        %3147 = vmatpush1.msra.mxu0 0.0
        %3148 = vmatprep.subr.mxu0 0.0
        %3149 = vmatpush1.msra.mxu0 0.0
        %3150 = vmatprep.subr.mxu0 0.0
        %3151 = vmatpush1.msra.mxu0 0.0
        %3152 = vmatprep.subr.mxu0 0.0
        %3153 = vmatpush1.msra.mxu0 0.0
        %3154 = vmatprep.subr.mxu0 0.0
        %3155 = vmatpush1.msra.mxu0 0.0
        %3156 = vmatprep.subr.mxu0 0.0
        %3157 = vmatpush1.msra.mxu0 0.0
        %3158 = vmatprep.subr.mxu0 0.0
        %3159 = vmatpush1.msra.mxu0 0.0
        %3160 = vmatprep.subr.mxu0 0.0
        %3161 = vmatpush1.msra.mxu0 0.0
        %3162 = vmatprep.subr.mxu0 0.0
        %3163 = vmatpush1.msra.mxu0 0.0
        %3164 = vmatprep.subr.mxu0 0.0
        %3165 = vmatpush1.msra.mxu0 0.0
        %3166 = vmatprep.subr.mxu0 0.0
        %3167 = vmatpush1.msra.mxu0 0.0
        %3168 = vmatprep.subr.mxu0 0.0
        %3169 = vmatpush1.msra.mxu0 0.0
        %3170 = vmatprep.subr.mxu0 0.0
        %3171 = vmatpush1.msra.mxu0 0.0
        %3172 = vmatprep.subr.mxu0 0.0
        %3173 = vmatpush1.msra.mxu0 0.0
        %3174 = vmatprep.subr.mxu0 0.0
        %3175 = vmatpush1.msra.mxu0 0.0
        %3176 = vmatprep.subr.mxu0 0.0
        %3177 = vmatpush1.msra.mxu0 0.0
        %3178 = vmatprep.subr.mxu0 0.0
        %3179 = vmatpush1.msra.mxu0 0.0
        %3180 = vmatprep.subr.mxu0 0.0
        %3181 = vmatpush1.msra.mxu0 0.0
        %3182 = vmatprep.subr.mxu0 0.0
        %3183 = vmatpush1.msra.mxu0 0.0
        %3184 = vmatprep.subr.mxu0 0.0
        %3185 = vmatpush1.msra.mxu0 0.0
        %3186 = vmatprep.subr.mxu0 0.0
        %3187 = vmatpush1.msra.mxu0 0.0
        %3188 = vmatprep.subr.mxu0 0.0
        %3189 = vmatpush1.msra.mxu0 0.0
        %3190 = vmatprep.mubr.f32.mxu0 0.0
        %3191 = vmatmul.mubr.f32.gmra.mrb[0].mxu0 %v3124
        %v3192 = vpop.f32.mrb[0].mxu0
        %v3193 = vadd.f32 %v3121, %v3192
        %v3194 = vpop.f32.mrb[0].mxu0
        %3195 = vdwg.mxu0
        %v3196 = vmax.f32 %v3193, 0.0
        %v3197 = vld [vmem:[%s850] sm:$0xff]
        %v3198 = vld [vmem:[%s850 + $0x8] sm:$0xff]
        %v3199 = vld [vmem:[%s850 + $0x10] sm:$0xff]
        %v3200 = vld [vmem:[%s850 + $0x18] sm:$0xff]
        %v3201 = vld [vmem:[%s850 + $0x20] sm:$0xff]
        %v3202 = vld [vmem:[%s850 + $0x28] sm:$0xff]
        %v3203 = vld [vmem:[%s850 + $0x30] sm:$0xff]
        %v3204 = vld [vmem:[%s850 + $0x38] sm:$0xff]
        %v3205 = vld [vmem:[%s853] sm:$0x1]
        %v3207 = vlaneseq
        %v3208 = vshrl.u32 %v3207, 7
        %v3209 = vsub.s32 0, %v3208
        %v3210 = vrot.slane %v3205, %v3209
        %vm3212 = vcmask 523264
        %v3214 = vsel %vm3212, %v3196, 0
        %3216 = vmatprep.subr.mxu0 0.0
        %3217 = vmatpush1.msra.mxu0 %v3197
        %3218 = vmatprep.subr.mxu0 0.0
        %3219 = vmatpush1.msra.mxu0 %v3198
        %3220 = vmatprep.subr.mxu0 0.0
        %3221 = vmatpush1.msra.mxu0 %v3199
        %3222 = vmatprep.subr.mxu0 0.0
        %3223 = vmatpush1.msra.mxu0 %v3200
        %3224 = vmatprep.subr.mxu0 0.0
        %3225 = vmatpush1.msra.mxu0 %v3201
        %3226 = vmatprep.subr.mxu0 0.0
        %3227 = vmatpush1.msra.mxu0 %v3202
        %3228 = vmatprep.subr.mxu0 0.0
        %3229 = vmatpush1.msra.mxu0 %v3203
        %3230 = vmatprep.subr.mxu0 0.0
        %3231 = vmatpush1.msra.mxu0 %v3204
        %3232 = vmatprep.subr.mxu0 0.0
        %3233 = vmatpush1.msra.mxu0 0.0
        %3234 = vmatprep.subr.mxu0 0.0
        %3235 = vmatpush1.msra.mxu0 0.0
        %3236 = vmatprep.subr.mxu0 0.0
        %3237 = vmatpush1.msra.mxu0 0.0
        %3238 = vmatprep.subr.mxu0 0.0
        %3239 = vmatpush1.msra.mxu0 0.0
        %3240 = vmatprep.subr.mxu0 0.0
        %3241 = vmatpush1.msra.mxu0 0.0
        %3242 = vmatprep.subr.mxu0 0.0
        %3243 = vmatpush1.msra.mxu0 0.0
        %3244 = vmatprep.subr.mxu0 0.0
        %3245 = vmatpush1.msra.mxu0 0.0
        %3246 = vmatprep.subr.mxu0 0.0
        %3247 = vmatpush1.msra.mxu0 0.0
        %3248 = vmatprep.subr.mxu0 0.0
        %3249 = vmatpush1.msra.mxu0 0.0
        %3250 = vmatprep.subr.mxu0 0.0
        %3251 = vmatpush1.msra.mxu0 0.0
        %3252 = vmatprep.subr.mxu0 0.0
        %3253 = vmatpush1.msra.mxu0 0.0
        %3254 = vmatprep.subr.mxu0 0.0
        %3255 = vmatpush1.msra.mxu0 0.0
        %3256 = vmatprep.subr.mxu0 0.0
        %3257 = vmatpush1.msra.mxu0 0.0
        %3258 = vmatprep.subr.mxu0 0.0
        %3259 = vmatpush1.msra.mxu0 0.0
        %3260 = vmatprep.subr.mxu0 0.0
        %3261 = vmatpush1.msra.mxu0 0.0
        %3262 = vmatprep.subr.mxu0 0.0
        %3263 = vmatpush1.msra.mxu0 0.0
        %3264 = vmatprep.subr.mxu0 0.0
        %3265 = vmatpush1.msra.mxu0 0.0
        %3266 = vmatprep.subr.mxu0 0.0
        %3267 = vmatpush1.msra.mxu0 0.0
        %3268 = vmatprep.subr.mxu0 0.0
        %3269 = vmatpush1.msra.mxu0 0.0
        %3270 = vmatprep.subr.mxu0 0.0
        %3271 = vmatpush1.msra.mxu0 0.0
        %3272 = vmatprep.subr.mxu0 0.0
        %3273 = vmatpush1.msra.mxu0 0.0
        %3274 = vmatprep.subr.mxu0 0.0
        %3275 = vmatpush1.msra.mxu0 0.0
        %3276 = vmatprep.subr.mxu0 0.0
        %3277 = vmatpush1.msra.mxu0 0.0
        %3278 = vmatprep.subr.mxu0 0.0
        %3279 = vmatpush1.msra.mxu0 0.0
        %3280 = vmatprep.mubr.f32.mxu0 0.0
        %3281 = vmatmul.mubr.f32.gmra.mrb[0].mxu0 %v3214
        %v3282 = vpop.f32.mrb[0].mxu0
        %v3283 = vadd.f32 %v3210, %v3282
        %v3284 = vpop.f32.mrb[0].mxu0
        %3285 = vdwg.mxu0
        %v3286 = vadd.f32 %v3283, %v3111
        %v3287 = vld [vmem:[%s856] sm:$0x1]
        %v3288 = vld [vmem:[%s859] sm:$0x1]
        %v3289 = vsel %vm887, %v3286, 0.0
        %3290 = vadd.xlane.f32.xlu0 %v3289
        %v3291 = vpop.xlane.xlu0 %3290
        %v3292 = vmul.f32 %v3291, %v1927
        %v3293 = vsub.f32 %v3286, %v3292
        %v3294 = vmul.f32 %v3293, %v3293
        %v3295 = vsel %vm887, %v3294, 0.0
        %3296 = vadd.xlane.f32.xlu0 %v3295
        %v3297 = vpop.xlane.xlu0 %3296
        %v3298 = vmul.f32 %v3297, %v1927
        %v3299 = vadd.f32 %v3298, 1e-05
        %v3300 = vrsqrt.pop %v3299
        %v3301 = vmul.f32 %v3293, %v3300
        %v3303 = vlaneseq
        %v3304 = vshrl.u32 %v3303, 7
        %v3305 = vsub.s32 0, %v3304
        %v3306 = vrot.slane %v3287, %v3305
        %v3308 = vmul.f32 %v3301, %v3306
        %v3310 = vlaneseq
        %v3311 = vshrl.u32 %v3310, 7
        %v3312 = vsub.s32 0, %v3311
        %v3313 = vrot.slane %v3288, %v3312
        %v3315 = vadd.f32 %v3308, %v3313
        %3316 = vst.msk [vmem:[%s815] sm:$0xff] %vm887, %v3315
        %s3317 = sand.u32 %s480, 1
        %s3318 = scalar_lea.sflag [#allocation6], %s3317
        %s3319 = sand.u32 %s480, 1
        %s3320 = smul.addr %s3319, 8
        %s3321 = scalar_lea.vmem [#allocation12], %s3320
        // Predicated region
        $region105: #{tpu_custom_call.1} parent=83 // pred_check
          %p3322 = pneg %p490
        $region106: #{tpu_custom_call.1} parent=83 // pred_check_branch
          %3324 = sbr.rel (%p3322) target = $region108
        $region107: #{tpu_custom_call.1} parent=83 // pred_region
          %s3326 = ssub.s32 128, 128
          %3327 = vsyncadd %s3318, %s3326
          %s3328 = smul.addr %s48, 128
          %s3329 = scalar_lea.hbm %s17, %s3328
          %s3331 = sshll.u32 %s3321, 4
          %s3332 = int_to_ptr.vmem [resolvable:$true] %s3331
          %3334 = dma.vmem_to_hbm [thread:$0]  %s3332, 128, %s3329, %s3318
        $region108: #{tpu_custom_call.1} parent=83 // pred_fallthru
          _
      $region84: #{tpu_custom_call.1} parent=5 // pred_fallthru
        _
      %p3335 = scmp.le.s32.totalorder 2, %s39
      // Predicated region
      $region109: #{tpu_custom_call.1} parent=5 // pred_check
        %p3336 = pneg %p3335
      $region110: #{tpu_custom_call.1} parent=5 // pred_check_branch
        %3338 = sbr.rel (%p3336) target = $region112
      $region111: #{tpu_custom_call.1} parent=5 // pred_region
        %s3339 = ssub.s32 %s39, 2
        // Predicated region
        $region113: #{tpu_custom_call.1} parent=111 // pred_check
          %p3340 = pneg %p496
        $region114: #{tpu_custom_call.1} parent=111 // pred_check_branch
          %3342 = sbr.rel (%p3340) target = $region116
        $region115: #{tpu_custom_call.1} parent=111 // pred_region
          %s3343 = sand.u32 %s481, 1
          %s3344 = scalar_lea.sflag [#allocation6], %s3343
          %s3345 = sand.u32 %s481, 1
          %s3346 = smul.addr %s3345, 8
          %s3347 = scalar_lea.vmem [#allocation12], %s3346
          %3348 = dma.done %s3344, 128
        $region116: #{tpu_custom_call.1} parent=111 // pred_fallthru
          _
      $region112: #{tpu_custom_call.1} parent=5 // pred_fallthru
        _
    $region6: #{tpu_custom_call.1} parent=1 // loop_footer
      %s43 = sadd.s32 1, %s39
    $region7: #{tpu_custom_call.1} parent=1 // loop_footer_branch
      %38 = sbr.rel target = $region3
    $region8: #{tpu_custom_call.1} parent=1 // loop_exit
      _
    %3349 = vsyncpa [#allocation5], 1
    %s3350 = scalar_lea.sflag [#allocation5], 1
    %3351 = vsyncpa %s3350, 1
    %3352 = vsyncpa [#allocation8], 1
    %s3353 = scalar_lea.sflag [#allocation8], 1
    %3354 = vsyncpa %s3353, 1
    %3355 = vsyncpa [#allocation11], 1
    %s3356 = scalar_lea.sflag [#allocation11], 1
    %3357 = vsyncpa %s3356, 1
    %3358 = vsyncpa [#allocation6], 1
    %s3359 = scalar_lea.sflag [#allocation6], 1
    %3360 = vsyncpa %s3359, 1

</llo_original>
